<compile_context>
chip_gen: v7x
topology: tpu7x:2x2x1
jax: 0.10.0
libtpu: 0.0.40
codegen_flags: <defaults>
</compile_context>

<pallas_src>
import functools

import jax
import jax.numpy as jnp
from jax import lax
from jax.experimental import pallas as pl
from jax.experimental.pallas import tpu as pltpu


def _round_up(x, m):
    return (x + m - 1) // m * m


# ConvTranspose2d(k=4, s=2, p=1) polyphase taps.
# For an output phase p in {0,1} along one spatial dim, the contributing
# (offset into the zero-ring-padded y, kernel index) pairs are:
#   p=0 (oh=2i)  : ih=i   -> kh=1 ; ih=i-1 -> kh=3
#   p=1 (oh=2i+1): ih=i   -> kh=2 ; ih=i+1 -> kh=0
_UP_TAPS = {
    0: ((1, 1), (0, 3)),
    1: ((1, 2), (2, 0)),
}


# ----------------------------------------------------------------------------
# Kernel 1: fused  LeakyReLU -> Conv(4,2,1) -> ReLU -> polyphase ConvT(4,2,1)
#           + bias + per-batch BN partial statistics.
# ----------------------------------------------------------------------------
def _fused_down_up_kernel(xc_ref, wd_ref, bd_ref, wu_ref, bu_ref,
                          u_ref, st_ref, yp_scr, *, OH, OW, Kip, Kop):
    # ---------------- down path (y stays in VMEM, never hits HBM) ----------------
    xc = xc_ref[0].astype(jnp.float32)                # (PH, PW, 4*Cin): stride-2 phases, channel-concat
    xl = jnp.where(xc >= 0, xc, 0.2 * xc)             # LeakyReLU(0.2); zero pads stay zero

    acc = jnp.broadcast_to(bd_ref[...], (OH * OW, Kip)).astype(jnp.float32)
    for di in range(2):
        for dj in range(2):
            sub = xl[di:di + OH, dj:dj + OW, :]       # (OH, OW, 4*Cin) shifted slice
            a2 = sub.reshape(OH * OW, sub.shape[-1]).astype(jnp.bfloat16)
            acc = acc + jnp.dot(a2, wd_ref[di * 2 + dj],
                                preferred_element_type=jnp.float32)
    y = jnp.maximum(acc, 0.0)                         # (OH*OW, Kip) f32

    # stage zero-ring-padded y in VMEM scratch (full re-init: correct under megacore sharding)
    yp_scr[...] = jnp.zeros_like(yp_scr)
    yp_scr[pl.ds(1, OH), pl.ds(1, OW), :] = y.reshape(OH, OW, Kip)

    # ---------------- up path: polyphase transposed conv + BN partial stats ----------------
    bu = jnp.broadcast_to(bu_ref[...], (OH * OW, Kop)).astype(jnp.float32)
    tot_s = jnp.zeros((1, Kop), jnp.float32)
    tot_q = jnp.zeros((1, Kop), jnp.float32)
    for pi in range(2):
        for pj in range(2):
            uacc = bu
            for r_off, kh in _UP_TAPS[pi]:
                for c_off, kw in _UP_TAPS[pj]:
                    ysub = yp_scr[pl.ds(r_off, OH), pl.ds(c_off, OW), :]   # (OH, OW, Kip)
                    y2 = ysub.reshape(OH * OW, Kip).astype(jnp.bfloat16)
                    uacc = uacc + jnp.dot(y2, wu_ref[kh * 4 + kw],
                                          preferred_element_type=jnp.float32)
            u_ref[0, pi * 2 + pj] = uacc                                   # (OH*OW, Kop), lane-dense
            tot_s = tot_s + jnp.sum(uacc, axis=0, keepdims=True)
            tot_q = tot_q + jnp.sum(uacc * uacc, axis=0, keepdims=True)

    st_ref[0, pl.ds(0, 1), :] = tot_s
    st_ref[0, pl.ds(1, 1), :] = tot_q


# ----------------------------------------------------------------------------
# Kernel 2: BatchNorm as a per-channel affine epilogue (+ channel de-padding).
# ----------------------------------------------------------------------------
def _bn_affine_kernel(u_ref, sc_ref, sh_ref, o_ref, *, Co):
    v = u_ref[...] * sc_ref[...] + sh_ref[...]        # (1, 4, M, Kop) * (1, Kop) broadcast
    o_ref[...] = v[..., :Co]


# ----------------------------------------------------------------------------
# Forward pass (Pallas-backed)
# ----------------------------------------------------------------------------
def unet_innermost_forward(x_nchw, params):
    Wd, bd = params["Wd"], params["bd"]        # Conv2d weight (inner, outer, 4, 4), bias (inner,)
    Wu, bu = params["Wu"], params["bu"]        # ConvTranspose2d weight (inner, outer, 4, 4), bias (outer,)
    gamma, beta = params["gamma"], params["beta"]
    inner_nc, outer_nc = Wd.shape[0], Wd.shape[1]

    N, Cin, H, W = x_nchw.shape
    assert Cin == outer_nc and H % 2 == 0 and W % 2 == 0
    OH, OW = H // 2, W // 2
    PH, PW = OH + 1, OW + 1                    # stride-2 phase extents of the padded input
    Kip = _round_up(inner_nc, 128)             # lane-dense padded inner channels
    Kop = _round_up(outer_nc, 128)             # lane-dense padded outer channels
    eps = 1e-5

    # ---- glue: NCHW -> NHWC, zero-pad, stride-2 phase split (1x data, NO im2col) ----
    x_nhwc = jnp.transpose(x_nchw, (0, 2, 3, 1)).astype(jnp.float32)
    xp = jnp.pad(x_nhwc, ((0, 0), (1, 1), (1, 1), (0, 0)))
    # xcat[n, a, b, (pi*2+pj)*Cin + c] = xp[n, 2a+pi, 2b+pj, c]
    xcat = (xp.reshape(N, PH, 2, PW, 2, Cin)
              .transpose(0, 1, 3, 2, 4, 5)
              .reshape(N, PH, PW, 4 * Cin)
              .astype(jnp.bfloat16))

    # ---- weight prep (one-time, tiny) ----
    # down-conv taps grouped by the stride-2 offset (di, dj); rows ordered (pi, pj, cin)
    wd_t = jnp.transpose(Wd, (2, 3, 1, 0))                              # (kh, kw, cin, inner)
    wd6 = wd_t.reshape(2, 2, 2, 2, Cin, inner_nc).transpose(0, 2, 1, 3, 4, 5)
    wd_cat = jnp.pad(wd6.reshape(4, 4 * Cin, inner_nc),
                     ((0, 0), (0, 0), (0, Kip - inner_nc))).astype(jnp.bfloat16)
    bd_p = jnp.pad(bd, (0, Kip - inner_nc)).reshape(1, Kip).astype(jnp.float32)

    # up-conv taps: wu_taps[kh*4+kw, ci, co] = Wu[ci, co, kh, kw]  (no kernel flip: polyphase form)
    wu_taps = jnp.transpose(Wu, (2, 3, 0, 1)).reshape(16, inner_nc, outer_nc)
    wu_taps = jnp.pad(wu_taps,
                      ((0, 0), (0, Kip - inner_nc), (0, Kop - outer_nc))).astype(jnp.bfloat16)
    bu_p = jnp.pad(bu, (0, Kop - outer_nc)).reshape(1, Kop).astype(jnp.float32)

    # ---- kernel 1: fused down + up + partial BN stats, grid over batch (parallel) ----
    kern1 = functools.partial(_fused_down_up_kernel, OH=OH, OW=OW, Kip=Kip, Kop=Kop)
    u_ph, st = pl.pallas_call(
        kern1,
        out_shape=(jax.ShapeDtypeStruct((N, 4, OH * OW, Kop), jnp.float32),
                   jax.ShapeDtypeStruct((N, 2, Kop), jnp.float32)),
        grid=(N,),
        in_specs=[
            pl.BlockSpec((1, PH, PW, 4 * Cin), lambda n: (n, 0, 0, 0)),
            pl.BlockSpec((4, 4 * Cin, Kip), lambda n: (0, 0, 0)),       # weights resident
            pl.BlockSpec((1, Kip), lambda n: (0, 0)),
            pl.BlockSpec((16, Kip, Kop), lambda n: (0, 0, 0)),          # weights resident
            pl.BlockSpec((1, Kop), lambda n: (0, 0)),
        ],
        out_specs=(pl.BlockSpec((1, 4, OH * OW, Kop), lambda n: (n, 0, 0, 0)),
                   pl.BlockSpec((1, 2, Kop), lambda n: (n, 0, 0))),
        scratch_shapes=[pltpu.VMEM((OH + 2, OW + 2, Kip), jnp.float32)],
        compiler_params=pltpu.CompilerParams(dimension_semantics=("parallel",)),
    )(xcat, wd_cat, bd_p, wu_taps, bu_p)

    # ---- glue: combine per-batch partial stats, fold BN into a per-channel affine ----
    count = jnp.float32(N * H * W)
    s = jnp.sum(st[:, 0, :], axis=0)
    q = jnp.sum(st[:, 1, :], axis=0)
    mean = s / count
    var = q / count - mean * mean                       # biased variance (training-mode BN)
    gamma_p = jnp.pad(gamma, (0, Kop - outer_nc))
    beta_p = jnp.pad(beta, (0, Kop - outer_nc))
    scale_v = gamma_p * lax.rsqrt(var + eps)
    shift_v = beta_p - mean * scale_v
    scale = scale_v.reshape(1, Kop).astype(jnp.float32)
    shift = shift_v.reshape(1, Kop).astype(jnp.float32)

    # ---- kernel 2: BN affine epilogue + channel de-pad ----
    kern2 = functools.partial(_bn_affine_kernel, Co=outer_nc)
    u_norm = pl.pallas_call(
        kern2,
        out_shape=jax.ShapeDtypeStruct((N, 4, OH * OW, outer_nc), jnp.float32),
        grid=(N,),
        in_specs=[
            pl.BlockSpec((1, 4, OH * OW, Kop), lambda n: (n, 0, 0, 0)),
            pl.BlockSpec((1, Kop), lambda n: (0, 0)),
            pl.BlockSpec((1, Kop), lambda n: (0, 0)),
        ],
        out_specs=pl.BlockSpec((1, 4, OH * OW, outer_nc), lambda n: (n, 0, 0, 0)),
        compiler_params=pltpu.CompilerParams(dimension_semantics=("parallel",)),
    )(u_ph, scale, shift)

    # ---- glue: single transpose interleaves the 4 output phases straight into NCHW, then concat ----
    u6 = u_norm.reshape(N, 2, 2, OH, OW, outer_nc)                      # (n, pi, pj, i, j, c)
    u_nchw = u6.transpose(0, 5, 3, 1, 4, 2).reshape(N, outer_nc, H, W)  # h = 2i+pi, w = 2j+pj
    return jnp.concatenate([u_nchw, x_nchw.astype(jnp.float32)], axis=1)


# ----------------------------------------------------------------------------
# Pure-JAX reference (mirrors the PyTorch ops directly, for validation)
# ----------------------------------------------------------------------------
def reference_forward(x, params):
    Wd, bd, Wu, bu = params["Wd"], params["bd"], params["Wu"], params["bu"]
    gamma, beta = params["gamma"], params["beta"]

    y = jnp.where(x >= 0, x, 0.2 * x)
    y = lax.conv_general_dilated(
        y, Wd, window_strides=(2, 2), padding=((1, 1), (1, 1)),
        dimension_numbers=("NCHW", "OIHW", "NCHW"),
        precision=lax.Precision.HIGHEST) + bd[None, :, None, None]
    y = jnp.maximum(y, 0.0)

    Wc = jnp.flip(Wu, (2, 3)).transpose(1, 0, 2, 3)   # ConvT -> equivalent direct-conv kernel (OIHW)
    u = lax.conv_general_dilated(
        y, Wc, window_strides=(1, 1), padding=((2, 2), (2, 2)), lhs_dilation=(2, 2),
        dimension_numbers=("NCHW", "OIHW", "NCHW"),
        precision=lax.Precision.HIGHEST) + bu[None, :, None, None]

    mean = jnp.mean(u, axis=(0, 2, 3), keepdims=True)
    var = jnp.mean(jnp.square(u - mean), axis=(0, 2, 3), keepdims=True)
    u = (u - mean) * lax.rsqrt(var + 1e-5) * gamma[None, :, None, None] + beta[None, :, None, None]
    return jnp.concatenate([u, x], axis=1)


# ----------------------------------------------------------------------------
if __name__ == "__main__":
    outer_nc, inner_nc = 4, 8
    N, H, W = 2, 16, 16

    key = jax.random.PRNGKey(0)
    k1, k2, k3, k4, k5, k6, k7 = jax.random.split(key, 7)
    params = {
        "Wd": 0.1 * jax.random.normal(k1, (inner_nc, outer_nc, 4, 4), jnp.float32),
        "bd": 0.1 * jax.random.normal(k2, (inner_nc,), jnp.float32),
        "Wu": 0.1 * jax.random.normal(k3, (inner_nc, outer_nc, 4, 4), jnp.float32),
        "bu": 0.1 * jax.random.normal(k4, (outer_nc,), jnp.float32),
        "gamma": 1.0 + 0.1 * jax.random.normal(k5, (outer_nc,), jnp.float32),
        "beta": 0.1 * jax.random.normal(k6, (outer_nc,), jnp.float32),
    }
    x = jax.random.normal(k7, (N, outer_nc, H, W), jnp.float32)

    fwd = jax.jit(unet_innermost_forward)
    out = jax.block_until_ready(fwd(x, params))
    ref = jax.block_until_ready(reference_forward(x, params))

    assert out.shape == (N, 2 * outer_nc, H, W), out.shape
    # bf16 MXU operands (f32 accumulation) vs HIGHEST-precision XLA conv reference
    max_err = float(jnp.max(jnp.abs(out - ref)))
    assert jnp.allclose(out, ref, atol=3e-2, rtol=3e-2), max_err

    print("KERNEL_OK")
</pallas_src>

<mosaic_0001>
module attributes {stable_mosaic.version = 11 : i64} {
  func.func @_fused_down_up_kernel(%arg0: i32, %arg1: memref<1x9x9x16xbf16, #tpu.memory_space<vmem>>, %arg2: memref<4x16x128xbf16, #tpu.memory_space<vmem>>, %arg3: memref<1x128xf32, #tpu.memory_space<vmem>>, %arg4: memref<16x128x128xbf16, #tpu.memory_space<vmem>>, %arg5: memref<1x128xf32, #tpu.memory_space<vmem>>, %arg6: memref<1x4x64x128xf32, #tpu.memory_space<vmem>>, %arg7: memref<1x2x128xf32, #tpu.memory_space<vmem>>, %arg8: memref<10x10x128xf32, #tpu.memory_space<vmem>>) attributes {dimension_semantics = [#tpu.dimension_semantics<parallel>], iteration_bounds = array<i64: 2>, scalar_prefetch = 0 : i64, scratch_operands = 1 : i64, tpu.core_type = #tpu.core_type<tc>, window_params = [{transform_indices = @transform_0, window_bounds = array<i64: 1, 9, 9, 16>}, {pipeline_mode = #tpu.pipeline_mode<synchronous>, transform_indices = @transform_1, window_bounds = array<i64: 4, 16, 128>}, {pipeline_mode = #tpu.pipeline_mode<synchronous>, transform_indices = @transform_2, window_bounds = array<i64: 1, 128>}, {pipeline_mode = #tpu.pipeline_mode<synchronous>, transform_indices = @transform_3, window_bounds = array<i64: 16, 128, 128>}, {pipeline_mode = #tpu.pipeline_mode<synchronous>, transform_indices = @transform_4, window_bounds = array<i64: 1, 128>}, {transform_indices = @transform_5, window_bounds = array<i64: 1, 4, 64, 128>}, {transform_indices = @transform_6, window_bounds = array<i64: 1, 2, 128>}]} {
    %c0 = arith.constant 0 : index
    %c0_0 = arith.constant 0 : index
    %c0_1 = arith.constant 0 : index
    %c0_2 = arith.constant 0 : index
    %0 = vector.load %arg1[%c0, %c0_0, %c0_1, %c0_2] : memref<1x9x9x16xbf16, #tpu.memory_space<vmem>>, vector<1x9x9x16xbf16>
    %1 = vector.shape_cast %0 : vector<1x9x9x16xbf16> to vector<9x9x16xbf16>
    %2 = arith.extf %1 : vector<9x9x16xbf16> to vector<9x9x16xf32>
    %cst = arith.constant 0.000000e+00 : f32
    %3 = vector.broadcast %cst : f32 to vector<9x9x16xf32>
    %4 = arith.cmpf oge, %2, %3 : vector<9x9x16xf32>
    %cst_3 = arith.constant 2.000000e-01 : f32
    %5 = vector.broadcast %cst_3 : f32 to vector<9x9x16xf32>
    %6 = arith.mulf %5, %2 : vector<9x9x16xf32>
    %7 = arith.select %4, %2, %6 : vector<9x9x16xi1>, vector<9x9x16xf32>
    %c0_4 = arith.constant 0 : index
    %c0_5 = arith.constant 0 : index
    %8 = vector.load %arg3[%c0_4, %c0_5] : memref<1x128xf32, #tpu.memory_space<vmem>>, vector<1x128xf32>
    %9 = vector.shape_cast %8 : vector<1x128xf32> to vector<1x128xf32>
    %10 = vector.broadcast %9 : vector<1x128xf32> to vector<64x128xf32>
    %11 = vector.extract_strided_slice %7 {offsets = [0, 0, 0], sizes = [8, 8, 16], strides = [1, 1, 1]} : vector<9x9x16xf32> to vector<8x8x16xf32>
    %12 = vector.shape_cast %11 : vector<8x8x16xf32> to vector<64x16xf32>
    %13 = arith.truncf %12 : vector<64x16xf32> to vector<64x16xbf16>
    %c0_6 = arith.constant 0 : index
    %c0_7 = arith.constant 0 : index
    %c0_8 = arith.constant 0 : index
    %14 = vector.load %arg2[%c0_6, %c0_7, %c0_8] : memref<4x16x128xbf16, #tpu.memory_space<vmem>>, vector<1x16x128xbf16>
    %15 = vector.shape_cast %14 : vector<1x16x128xbf16> to vector<16x128xbf16>
    %cst_9 = arith.constant dense<0.000000e+00> : vector<64x128xf32>
    %16 = tpu.matmul %13, %15, %cst_9 {dimension_numbers = #tpu.dot_dimension_numbers<[1], [0], [0], [1], [0, 0, 1, 1], [], []>} : vector<64x16xbf16>, vector<16x128xbf16>, vector<64x128xf32> -> vector<64x128xf32>
    %17 = arith.addf %10, %16 : vector<64x128xf32>
    %18 = vector.extract_strided_slice %7 {offsets = [0, 1, 0], sizes = [8, 8, 16], strides = [1, 1, 1]} : vector<9x9x16xf32> to vector<8x8x16xf32>
    %19 = vector.shape_cast %18 : vector<8x8x16xf32> to vector<64x16xf32>
    %20 = arith.truncf %19 : vector<64x16xf32> to vector<64x16xbf16>
    %c1 = arith.constant 1 : index
    %c0_10 = arith.constant 0 : index
    %c0_11 = arith.constant 0 : index
    %21 = vector.load %arg2[%c1, %c0_10, %c0_11] : memref<4x16x128xbf16, #tpu.memory_space<vmem>>, vector<1x16x128xbf16>
    %22 = vector.shape_cast %21 : vector<1x16x128xbf16> to vector<16x128xbf16>
    %cst_12 = arith.constant dense<0.000000e+00> : vector<64x128xf32>
    %23 = tpu.matmul %20, %22, %cst_12 {dimension_numbers = #tpu.dot_dimension_numbers<[1], [0], [0], [1], [0, 0, 1, 1], [], []>} : vector<64x16xbf16>, vector<16x128xbf16>, vector<64x128xf32> -> vector<64x128xf32>
    %24 = arith.addf %17, %23 : vector<64x128xf32>
    %25 = vector.extract_strided_slice %7 {offsets = [1, 0, 0], sizes = [8, 8, 16], strides = [1, 1, 1]} : vector<9x9x16xf32> to vector<8x8x16xf32>
    %26 = vector.shape_cast %25 : vector<8x8x16xf32> to vector<64x16xf32>
    %27 = arith.truncf %26 : vector<64x16xf32> to vector<64x16xbf16>
    %c2 = arith.constant 2 : index
    %c0_13 = arith.constant 0 : index
    %c0_14 = arith.constant 0 : index
    %28 = vector.load %arg2[%c2, %c0_13, %c0_14] : memref<4x16x128xbf16, #tpu.memory_space<vmem>>, vector<1x16x128xbf16>
    %29 = vector.shape_cast %28 : vector<1x16x128xbf16> to vector<16x128xbf16>
    %cst_15 = arith.constant dense<0.000000e+00> : vector<64x128xf32>
    %30 = tpu.matmul %27, %29, %cst_15 {dimension_numbers = #tpu.dot_dimension_numbers<[1], [0], [0], [1], [0, 0, 1, 1], [], []>} : vector<64x16xbf16>, vector<16x128xbf16>, vector<64x128xf32> -> vector<64x128xf32>
    %31 = arith.addf %24, %30 : vector<64x128xf32>
    %32 = vector.extract_strided_slice %7 {offsets = [1, 1, 0], sizes = [8, 8, 16], strides = [1, 1, 1]} : vector<9x9x16xf32> to vector<8x8x16xf32>
    %33 = vector.shape_cast %32 : vector<8x8x16xf32> to vector<64x16xf32>
    %34 = arith.truncf %33 : vector<64x16xf32> to vector<64x16xbf16>
    %c3 = arith.constant 3 : index
    %c0_16 = arith.constant 0 : index
    %c0_17 = arith.constant 0 : index
    %35 = vector.load %arg2[%c3, %c0_16, %c0_17] : memref<4x16x128xbf16, #tpu.memory_space<vmem>>, vector<1x16x128xbf16>
    %36 = vector.shape_cast %35 : vector<1x16x128xbf16> to vector<16x128xbf16>
    %cst_18 = arith.constant dense<0.000000e+00> : vector<64x128xf32>
    %37 = tpu.matmul %34, %36, %cst_18 {dimension_numbers = #tpu.dot_dimension_numbers<[1], [0], [0], [1], [0, 0, 1, 1], [], []>} : vector<64x16xbf16>, vector<16x128xbf16>, vector<64x128xf32> -> vector<64x128xf32>
    %38 = arith.addf %31, %37 : vector<64x128xf32>
    %cst_19 = arith.constant 0.000000e+00 : f32
    %39 = vector.broadcast %cst_19 : f32 to vector<64x128xf32>
    %40 = arith.maximumf %38, %39 : vector<64x128xf32>
    %cst_20 = arith.constant 0.000000e+00 : f32
    %41 = vector.broadcast %cst_20 : f32 to vector<10x10x128xf32>
    %c0_21 = arith.constant 0 : index
    %c0_22 = arith.constant 0 : index
    %c0_23 = arith.constant 0 : index
    %42 = vector.load %arg8[%c0_21, %c0_22, %c0_23] : memref<10x10x128xf32, #tpu.memory_space<vmem>>, vector<10x10x128xf32>
    tpu.vector_store %arg8[%c0_21, %c0_22, %c0_23], %41 {strides = array<i32>} : memref<10x10x128xf32, #tpu.memory_space<vmem>>, vector<10x10x128xf32>,
    %43 = vector.shape_cast %40 : vector<64x128xf32> to vector<8x8x128xf32>
    %c1_24 = arith.constant 1 : index
    %c1_25 = arith.constant 1 : index
    %c0_26 = arith.constant 0 : index
    %44 = vector.load %arg8[%c1_24, %c1_25, %c0_26] : memref<10x10x128xf32, #tpu.memory_space<vmem>>, vector<8x8x128xf32>
    tpu.vector_store %arg8[%c1_24, %c1_25, %c0_26], %43 {strides = array<i32>} : memref<10x10x128xf32, #tpu.memory_space<vmem>>, vector<8x8x128xf32>,
    %c0_27 = arith.constant 0 : index
    %c0_28 = arith.constant 0 : index
    %45 = vector.load %arg5[%c0_27, %c0_28] : memref<1x128xf32, #tpu.memory_space<vmem>>, vector<1x128xf32>
    %46 = vector.shape_cast %45 : vector<1x128xf32> to vector<1x128xf32>
    %47 = vector.broadcast %46 : vector<1x128xf32> to vector<64x128xf32>
    %cst_29 = arith.constant 0.000000e+00 : f32
    %48 = vector.broadcast %cst_29 : f32 to vector<1x128xf32>
    %cst_30 = arith.constant 0.000000e+00 : f32
    %49 = vector.broadcast %cst_30 : f32 to vector<1x128xf32>
    %c1_31 = arith.constant 1 : index
    %c1_32 = arith.constant 1 : index
    %c0_33 = arith.constant 0 : index
    %50 = vector.load %arg8[%c1_31, %c1_32, %c0_33] : memref<10x10x128xf32, #tpu.memory_space<vmem>>, vector<8x8x128xf32>
    %51 = vector.shape_cast %50 : vector<8x8x128xf32> to vector<64x128xf32>
    %52 = arith.truncf %51 : vector<64x128xf32> to vector<64x128xbf16>
    %c5 = arith.constant 5 : index
    %c0_34 = arith.constant 0 : index
    %c0_35 = arith.constant 0 : index
    %53 = vector.load %arg4[%c5, %c0_34, %c0_35] : memref<16x128x128xbf16, #tpu.memory_space<vmem>>, vector<1x128x128xbf16>
    %54 = vector.shape_cast %53 : vector<1x128x128xbf16> to vector<128x128xbf16>
    %cst_36 = arith.constant dense<0.000000e+00> : vector<64x128xf32>
    %55 = tpu.matmul %52, %54, %cst_36 {dimension_numbers = #tpu.dot_dimension_numbers<[1], [0], [0], [1], [0, 0, 1, 1], [], []>} : vector<64x128xbf16>, vector<128x128xbf16>, vector<64x128xf32> -> vector<64x128xf32>
    %56 = arith.addf %47, %55 : vector<64x128xf32>
    %c1_37 = arith.constant 1 : index
    %c0_38 = arith.constant 0 : index
    %c0_39 = arith.constant 0 : index
    %57 = vector.load %arg8[%c1_37, %c0_38, %c0_39] : memref<10x10x128xf32, #tpu.memory_space<vmem>>, vector<8x8x128xf32>
    %58 = vector.shape_cast %57 : vector<8x8x128xf32> to vector<64x128xf32>
    %59 = arith.truncf %58 : vector<64x128xf32> to vector<64x128xbf16>
    %c7 = arith.constant 7 : index
    %c0_40 = arith.constant 0 : index
    %c0_41 = arith.constant 0 : index
    %60 = vector.load %arg4[%c7, %c0_40, %c0_41] : memref<16x128x128xbf16, #tpu.memory_space<vmem>>, vector<1x128x128xbf16>
    %61 = vector.shape_cast %60 : vector<1x128x128xbf16> to vector<128x128xbf16>
    %cst_42 = arith.constant dense<0.000000e+00> : vector<64x128xf32>
    %62 = tpu.matmul %59, %61, %cst_42 {dimension_numbers = #tpu.dot_dimension_numbers<[1], [0], [0], [1], [0, 0, 1, 1], [], []>} : vector<64x128xbf16>, vector<128x128xbf16>, vector<64x128xf32> -> vector<64x128xf32>
    %63 = arith.addf %56, %62 : vector<64x128xf32>
    %c0_43 = arith.constant 0 : index
    %c1_44 = arith.constant 1 : index
    %c0_45 = arith.constant 0 : index
    %64 = vector.load %arg8[%c0_43, %c1_44, %c0_45] : memref<10x10x128xf32, #tpu.memory_space<vmem>>, vector<8x8x128xf32>
    %65 = vector.shape_cast %64 : vector<8x8x128xf32> to vector<64x128xf32>
    %66 = arith.truncf %65 : vector<64x128xf32> to vector<64x128xbf16>
    %c13 = arith.constant 13 : index
    %c0_46 = arith.constant 0 : index
    %c0_47 = arith.constant 0 : index
    %67 = vector.load %arg4[%c13, %c0_46, %c0_47] : memref<16x128x128xbf16, #tpu.memory_space<vmem>>, vector<1x128x128xbf16>
    %68 = vector.shape_cast %67 : vector<1x128x128xbf16> to vector<128x128xbf16>
    %cst_48 = arith.constant dense<0.000000e+00> : vector<64x128xf32>
    %69 = tpu.matmul %66, %68, %cst_48 {dimension_numbers = #tpu.dot_dimension_numbers<[1], [0], [0], [1], [0, 0, 1, 1], [], []>} : vector<64x128xbf16>, vector<128x128xbf16>, vector<64x128xf32> -> vector<64x128xf32>
    %70 = arith.addf %63, %69 : vector<64x128xf32>
    %c0_49 = arith.constant 0 : index
    %c0_50 = arith.constant 0 : index
    %c0_51 = arith.constant 0 : index
    %71 = vector.load %arg8[%c0_49, %c0_50, %c0_51] : memref<10x10x128xf32, #tpu.memory_space<vmem>>, vector<8x8x128xf32>
    %72 = vector.shape_cast %71 : vector<8x8x128xf32> to vector<64x128xf32>
    %73 = arith.truncf %72 : vector<64x128xf32> to vector<64x128xbf16>
    %c15 = arith.constant 15 : index
    %c0_52 = arith.constant 0 : index
    %c0_53 = arith.constant 0 : index
    %74 = vector.load %arg4[%c15, %c0_52, %c0_53] : memref<16x128x128xbf16, #tpu.memory_space<vmem>>, vector<1x128x128xbf16>
    %75 = vector.shape_cast %74 : vector<1x128x128xbf16> to vector<128x128xbf16>
    %cst_54 = arith.constant dense<0.000000e+00> : vector<64x128xf32>
    %76 = tpu.matmul %73, %75, %cst_54 {dimension_numbers = #tpu.dot_dimension_numbers<[1], [0], [0], [1], [0, 0, 1, 1], [], []>} : vector<64x128xbf16>, vector<128x128xbf16>, vector<64x128xf32> -> vector<64x128xf32>
    %77 = arith.addf %70, %76 : vector<64x128xf32>
    %c0_55 = arith.constant 0 : index
    %c0_56 = arith.constant 0 : index
    %c0_57 = arith.constant 0 : index
    %c0_58 = arith.constant 0 : index
    %78 = vector.load %arg6[%c0_55, %c0_56, %c0_57, %c0_58] : memref<1x4x64x128xf32, #tpu.memory_space<vmem>>, vector<1x1x64x128xf32>
    %79 = vector.shape_cast %78 : vector<1x1x64x128xf32> to vector<64x128xf32>
    %80 = vector.shape_cast %77 : vector<64x128xf32> to vector<1x1x64x128xf32>
    tpu.vector_store %arg6[%c0_55, %c0_56, %c0_57, %c0_58], %80 {strides = array<i32>} : memref<1x4x64x128xf32, #tpu.memory_space<vmem>>, vector<1x1x64x128xf32>,
    %cst_59 = arith.constant dense<0.000000e+00> : vector<128xf32>
    %81 = vector.multi_reduction <add>, %77, %cst_59 [0] : vector<64x128xf32> to vector<128xf32>
    %82 = vector.shape_cast %81 : vector<128xf32> to vector<1x128xf32>
    %83 = arith.addf %48, %82 : vector<1x128xf32>
    %84 = arith.mulf %77, %77 : vector<64x128xf32>
    %cst_60 = arith.constant dense<0.000000e+00> : vector<128xf32>
    %85 = vector.multi_reduction <add>, %84, %cst_60 [0] : vector<64x128xf32> to vector<128xf32>
    %86 = vector.shape_cast %85 : vector<128xf32> to vector<1x128xf32>
    %87 = arith.addf %49, %86 : vector<1x128xf32>
    %c1_61 = arith.constant 1 : index
    %c1_62 = arith.constant 1 : index
    %c0_63 = arith.constant 0 : index
    %88 = vector.load %arg8[%c1_61, %c1_62, %c0_63] : memref<10x10x128xf32, #tpu.memory_space<vmem>>, vector<8x8x128xf32>
    %89 = vector.shape_cast %88 : vector<8x8x128xf32> to vector<64x128xf32>
    %90 = arith.truncf %89 : vector<64x128xf32> to vector<64x128xbf16>
    %c6 = arith.constant 6 : index
    %c0_64 = arith.constant 0 : index
    %c0_65 = arith.constant 0 : index
    %91 = vector.load %arg4[%c6, %c0_64, %c0_65] : memref<16x128x128xbf16, #tpu.memory_space<vmem>>, vector<1x128x128xbf16>
    %92 = vector.shape_cast %91 : vector<1x128x128xbf16> to vector<128x128xbf16>
    %cst_66 = arith.constant dense<0.000000e+00> : vector<64x128xf32>
    %93 = tpu.matmul %90, %92, %cst_66 {dimension_numbers = #tpu.dot_dimension_numbers<[1], [0], [0], [1], [0, 0, 1, 1], [], []>} : vector<64x128xbf16>, vector<128x128xbf16>, vector<64x128xf32> -> vector<64x128xf32>
    %94 = arith.addf %47, %93 : vector<64x128xf32>
    %c1_67 = arith.constant 1 : index
    %c2_68 = arith.constant 2 : index
    %c0_69 = arith.constant 0 : index
    %95 = vector.load %arg8[%c1_67, %c2_68, %c0_69] : memref<10x10x128xf32, #tpu.memory_space<vmem>>, vector<8x8x128xf32>
    %96 = vector.shape_cast %95 : vector<8x8x128xf32> to vector<64x128xf32>
    %97 = arith.truncf %96 : vector<64x128xf32> to vector<64x128xbf16>
    %c4 = arith.constant 4 : index
    %c0_70 = arith.constant 0 : index
    %c0_71 = arith.constant 0 : index
    %98 = vector.load %arg4[%c4, %c0_70, %c0_71] : memref<16x128x128xbf16, #tpu.memory_space<vmem>>, vector<1x128x128xbf16>
    %99 = vector.shape_cast %98 : vector<1x128x128xbf16> to vector<128x128xbf16>
    %cst_72 = arith.constant dense<0.000000e+00> : vector<64x128xf32>
    %100 = tpu.matmul %97, %99, %cst_72 {dimension_numbers = #tpu.dot_dimension_numbers<[1], [0], [0], [1], [0, 0, 1, 1], [], []>} : vector<64x128xbf16>, vector<128x128xbf16>, vector<64x128xf32> -> vector<64x128xf32>
    %101 = arith.addf %94, %100 : vector<64x128xf32>
    %c0_73 = arith.constant 0 : index
    %c1_74 = arith.constant 1 : index
    %c0_75 = arith.constant 0 : index
    %102 = vector.load %arg8[%c0_73, %c1_74, %c0_75] : memref<10x10x128xf32, #tpu.memory_space<vmem>>, vector<8x8x128xf32>
    %103 = vector.shape_cast %102 : vector<8x8x128xf32> to vector<64x128xf32>
    %104 = arith.truncf %103 : vector<64x128xf32> to vector<64x128xbf16>
    %c14 = arith.constant 14 : index
    %c0_76 = arith.constant 0 : index
    %c0_77 = arith.constant 0 : index
    %105 = vector.load %arg4[%c14, %c0_76, %c0_77] : memref<16x128x128xbf16, #tpu.memory_space<vmem>>, vector<1x128x128xbf16>
    %106 = vector.shape_cast %105 : vector<1x128x128xbf16> to vector<128x128xbf16>
    %cst_78 = arith.constant dense<0.000000e+00> : vector<64x128xf32>
    %107 = tpu.matmul %104, %106, %cst_78 {dimension_numbers = #tpu.dot_dimension_numbers<[1], [0], [0], [1], [0, 0, 1, 1], [], []>} : vector<64x128xbf16>, vector<128x128xbf16>, vector<64x128xf32> -> vector<64x128xf32>
    %108 = arith.addf %101, %107 : vector<64x128xf32>
    %c0_79 = arith.constant 0 : index
    %c2_80 = arith.constant 2 : index
    %c0_81 = arith.constant 0 : index
    %109 = vector.load %arg8[%c0_79, %c2_80, %c0_81] : memref<10x10x128xf32, #tpu.memory_space<vmem>>, vector<8x8x128xf32>
    %110 = vector.shape_cast %109 : vector<8x8x128xf32> to vector<64x128xf32>
    %111 = arith.truncf %110 : vector<64x128xf32> to vector<64x128xbf16>
    %c12 = arith.constant 12 : index
    %c0_82 = arith.constant 0 : index
    %c0_83 = arith.constant 0 : index
    %112 = vector.load %arg4[%c12, %c0_82, %c0_83] : memref<16x128x128xbf16, #tpu.memory_space<vmem>>, vector<1x128x128xbf16>
    %113 = vector.shape_cast %112 : vector<1x128x128xbf16> to vector<128x128xbf16>
    %cst_84 = arith.constant dense<0.000000e+00> : vector<64x128xf32>
    %114 = tpu.matmul %111, %113, %cst_84 {dimension_numbers = #tpu.dot_dimension_numbers<[1], [0], [0], [1], [0, 0, 1, 1], [], []>} : vector<64x128xbf16>, vector<128x128xbf16>, vector<64x128xf32> -> vector<64x128xf32>
    %115 = arith.addf %108, %114 : vector<64x128xf32>
    %c0_85 = arith.constant 0 : index
    %c1_86 = arith.constant 1 : index
    %c0_87 = arith.constant 0 : index
    %c0_88 = arith.constant 0 : index
    %116 = vector.load %arg6[%c0_85, %c1_86, %c0_87, %c0_88] : memref<1x4x64x128xf32, #tpu.memory_space<vmem>>, vector<1x1x64x128xf32>
    %117 = vector.shape_cast %116 : vector<1x1x64x128xf32> to vector<64x128xf32>
    %118 = vector.shape_cast %115 : vector<64x128xf32> to vector<1x1x64x128xf32>
    tpu.vector_store %arg6[%c0_85, %c1_86, %c0_87, %c0_88], %118 {strides = array<i32>} : memref<1x4x64x128xf32, #tpu.memory_space<vmem>>, vector<1x1x64x128xf32>,
    %cst_89 = arith.constant dense<0.000000e+00> : vector<128xf32>
    %119 = vector.multi_reduction <add>, %115, %cst_89 [0] : vector<64x128xf32> to vector<128xf32>
    %120 = vector.shape_cast %119 : vector<128xf32> to vector<1x128xf32>
    %121 = arith.addf %83, %120 : vector<1x128xf32>
    %122 = arith.mulf %115, %115 : vector<64x128xf32>
    %cst_90 = arith.constant dense<0.000000e+00> : vector<128xf32>
    %123 = vector.multi_reduction <add>, %122, %cst_90 [0] : vector<64x128xf32> to vector<128xf32>
    %124 = vector.shape_cast %123 : vector<128xf32> to vector<1x128xf32>
    %125 = arith.addf %87, %124 : vector<1x128xf32>
    %c1_91 = arith.constant 1 : index
    %c1_92 = arith.constant 1 : index
    %c0_93 = arith.constant 0 : index
    %126 = vector.load %arg8[%c1_91, %c1_92, %c0_93] : memref<10x10x128xf32, #tpu.memory_space<vmem>>, vector<8x8x128xf32>
    %127 = vector.shape_cast %126 : vector<8x8x128xf32> to vector<64x128xf32>
    %128 = arith.truncf %127 : vector<64x128xf32> to vector<64x128xbf16>
    %c9 = arith.constant 9 : index
    %c0_94 = arith.constant 0 : index
    %c0_95 = arith.constant 0 : index
    %129 = vector.load %arg4[%c9, %c0_94, %c0_95] : memref<16x128x128xbf16, #tpu.memory_space<vmem>>, vector<1x128x128xbf16>
    %130 = vector.shape_cast %129 : vector<1x128x128xbf16> to vector<128x128xbf16>
    %cst_96 = arith.constant dense<0.000000e+00> : vector<64x128xf32>
    %131 = tpu.matmul %128, %130, %cst_96 {dimension_numbers = #tpu.dot_dimension_numbers<[1], [0], [0], [1], [0, 0, 1, 1], [], []>} : vector<64x128xbf16>, vector<128x128xbf16>, vector<64x128xf32> -> vector<64x128xf32>
    %132 = arith.addf %47, %131 : vector<64x128xf32>
    %c1_97 = arith.constant 1 : index
    %c0_98 = arith.constant 0 : index
    %c0_99 = arith.constant 0 : index
    %133 = vector.load %arg8[%c1_97, %c0_98, %c0_99] : memref<10x10x128xf32, #tpu.memory_space<vmem>>, vector<8x8x128xf32>
    %134 = vector.shape_cast %133 : vector<8x8x128xf32> to vector<64x128xf32>
    %135 = arith.truncf %134 : vector<64x128xf32> to vector<64x128xbf16>
    %c11 = arith.constant 11 : index
    %c0_100 = arith.constant 0 : index
    %c0_101 = arith.constant 0 : index
    %136 = vector.load %arg4[%c11, %c0_100, %c0_101] : memref<16x128x128xbf16, #tpu.memory_space<vmem>>, vector<1x128x128xbf16>
    %137 = vector.shape_cast %136 : vector<1x128x128xbf16> to vector<128x128xbf16>
    %cst_102 = arith.constant dense<0.000000e+00> : vector<64x128xf32>
    %138 = tpu.matmul %135, %137, %cst_102 {dimension_numbers = #tpu.dot_dimension_numbers<[1], [0], [0], [1], [0, 0, 1, 1], [], []>} : vector<64x128xbf16>, vector<128x128xbf16>, vector<64x128xf32> -> vector<64x128xf32>
    %139 = arith.addf %132, %138 : vector<64x128xf32>
    %c2_103 = arith.constant 2 : index
    %c1_104 = arith.constant 1 : index
    %c0_105 = arith.constant 0 : index
    %140 = vector.load %arg8[%c2_103, %c1_104, %c0_105] : memref<10x10x128xf32, #tpu.memory_space<vmem>>, vector<8x8x128xf32>
    %141 = vector.shape_cast %140 : vector<8x8x128xf32> to vector<64x128xf32>
    %142 = arith.truncf %141 : vector<64x128xf32> to vector<64x128xbf16>
    %c1_106 = arith.constant 1 : index
    %c0_107 = arith.constant 0 : index
    %c0_108 = arith.constant 0 : index
    %143 = vector.load %arg4[%c1_106, %c0_107, %c0_108] : memref<16x128x128xbf16, #tpu.memory_space<vmem>>, vector<1x128x128xbf16>
    %144 = vector.shape_cast %143 : vector<1x128x128xbf16> to vector<128x128xbf16>
    %cst_109 = arith.constant dense<0.000000e+00> : vector<64x128xf32>
    %145 = tpu.matmul %142, %144, %cst_109 {dimension_numbers = #tpu.dot_dimension_numbers<[1], [0], [0], [1], [0, 0, 1, 1], [], []>} : vector<64x128xbf16>, vector<128x128xbf16>, vector<64x128xf32> -> vector<64x128xf32>
    %146 = arith.addf %139, %145 : vector<64x128xf32>
    %c2_110 = arith.constant 2 : index
    %c0_111 = arith.constant 0 : index
    %c0_112 = arith.constant 0 : index
    %147 = vector.load %arg8[%c2_110, %c0_111, %c0_112] : memref<10x10x128xf32, #tpu.memory_space<vmem>>, vector<8x8x128xf32>
    %148 = vector.shape_cast %147 : vector<8x8x128xf32> to vector<64x128xf32>
    %149 = arith.truncf %148 : vector<64x128xf32> to vector<64x128xbf16>
    %c3_113 = arith.constant 3 : index
    %c0_114 = arith.constant 0 : index
    %c0_115 = arith.constant 0 : index
    %150 = vector.load %arg4[%c3_113, %c0_114, %c0_115] : memref<16x128x128xbf16, #tpu.memory_space<vmem>>, vector<1x128x128xbf16>
    %151 = vector.shape_cast %150 : vector<1x128x128xbf16> to vector<128x128xbf16>
    %cst_116 = arith.constant dense<0.000000e+00> : vector<64x128xf32>
    %152 = tpu.matmul %149, %151, %cst_116 {dimension_numbers = #tpu.dot_dimension_numbers<[1], [0], [0], [1], [0, 0, 1, 1], [], []>} : vector<64x128xbf16>, vector<128x128xbf16>, vector<64x128xf32> -> vector<64x128xf32>
    %153 = arith.addf %146, %152 : vector<64x128xf32>
    %c0_117 = arith.constant 0 : index
    %c2_118 = arith.constant 2 : index
    %c0_119 = arith.constant 0 : index
    %c0_120 = arith.constant 0 : index
    %154 = vector.load %arg6[%c0_117, %c2_118, %c0_119, %c0_120] : memref<1x4x64x128xf32, #tpu.memory_space<vmem>>, vector<1x1x64x128xf32>
    %155 = vector.shape_cast %154 : vector<1x1x64x128xf32> to vector<64x128xf32>
    %156 = vector.shape_cast %153 : vector<64x128xf32> to vector<1x1x64x128xf32>
    tpu.vector_store %arg6[%c0_117, %c2_118, %c0_119, %c0_120], %156 {strides = array<i32>} : memref<1x4x64x128xf32, #tpu.memory_space<vmem>>, vector<1x1x64x128xf32>,
    %cst_121 = arith.constant dense<0.000000e+00> : vector<128xf32>
    %157 = vector.multi_reduction <add>, %153, %cst_121 [0] : vector<64x128xf32> to vector<128xf32>
    %158 = vector.shape_cast %157 : vector<128xf32> to vector<1x128xf32>
    %159 = arith.addf %121, %158 : vector<1x128xf32>
    %160 = arith.mulf %153, %153 : vector<64x128xf32>
    %cst_122 = arith.constant dense<0.000000e+00> : vector<128xf32>
    %161 = vector.multi_reduction <add>, %160, %cst_122 [0] : vector<64x128xf32> to vector<128xf32>
    %162 = vector.shape_cast %161 : vector<128xf32> to vector<1x128xf32>
    %163 = arith.addf %125, %162 : vector<1x128xf32>
    %c1_123 = arith.constant 1 : index
    %c1_124 = arith.constant 1 : index
    %c0_125 = arith.constant 0 : index
    %164 = vector.load %arg8[%c1_123, %c1_124, %c0_125] : memref<10x10x128xf32, #tpu.memory_space<vmem>>, vector<8x8x128xf32>
    %165 = vector.shape_cast %164 : vector<8x8x128xf32> to vector<64x128xf32>
    %166 = arith.truncf %165 : vector<64x128xf32> to vector<64x128xbf16>
    %c10 = arith.constant 10 : index
    %c0_126 = arith.constant 0 : index
    %c0_127 = arith.constant 0 : index
    %167 = vector.load %arg4[%c10, %c0_126, %c0_127] : memref<16x128x128xbf16, #tpu.memory_space<vmem>>, vector<1x128x128xbf16>
    %168 = vector.shape_cast %167 : vector<1x128x128xbf16> to vector<128x128xbf16>
    %cst_128 = arith.constant dense<0.000000e+00> : vector<64x128xf32>
    %169 = tpu.matmul %166, %168, %cst_128 {dimension_numbers = #tpu.dot_dimension_numbers<[1], [0], [0], [1], [0, 0, 1, 1], [], []>} : vector<64x128xbf16>, vector<128x128xbf16>, vector<64x128xf32> -> vector<64x128xf32>
    %170 = arith.addf %47, %169 : vector<64x128xf32>
    %c1_129 = arith.constant 1 : index
    %c2_130 = arith.constant 2 : index
    %c0_131 = arith.constant 0 : index
    %171 = vector.load %arg8[%c1_129, %c2_130, %c0_131] : memref<10x10x128xf32, #tpu.memory_space<vmem>>, vector<8x8x128xf32>
    %172 = vector.shape_cast %171 : vector<8x8x128xf32> to vector<64x128xf32>
    %173 = arith.truncf %172 : vector<64x128xf32> to vector<64x128xbf16>
    %c8 = arith.constant 8 : index
    %c0_132 = arith.constant 0 : index
    %c0_133 = arith.constant 0 : index
    %174 = vector.load %arg4[%c8, %c0_132, %c0_133] : memref<16x128x128xbf16, #tpu.memory_space<vmem>>, vector<1x128x128xbf16>
    %175 = vector.shape_cast %174 : vector<1x128x128xbf16> to vector<128x128xbf16>
    %cst_134 = arith.constant dense<0.000000e+00> : vector<64x128xf32>
    %176 = tpu.matmul %173, %175, %cst_134 {dimension_numbers = #tpu.dot_dimension_numbers<[1], [0], [0], [1], [0, 0, 1, 1], [], []>} : vector<64x128xbf16>, vector<128x128xbf16>, vector<64x128xf32> -> vector<64x128xf32>
    %177 = arith.addf %170, %176 : vector<64x128xf32>
    %c2_135 = arith.constant 2 : index
    %c1_136 = arith.constant 1 : index
    %c0_137 = arith.constant 0 : index
    %178 = vector.load %arg8[%c2_135, %c1_136, %c0_137] : memref<10x10x128xf32, #tpu.memory_space<vmem>>, vector<8x8x128xf32>
    %179 = vector.shape_cast %178 : vector<8x8x128xf32> to vector<64x128xf32>
    %180 = arith.truncf %179 : vector<64x128xf32> to vector<64x128xbf16>
    %c2_138 = arith.constant 2 : index
    %c0_139 = arith.constant 0 : index
    %c0_140 = arith.constant 0 : index
    %181 = vector.load %arg4[%c2_138, %c0_139, %c0_140] : memref<16x128x128xbf16, #tpu.memory_space<vmem>>, vector<1x128x128xbf16>
    %182 = vector.shape_cast %181 : vector<1x128x128xbf16> to vector<128x128xbf16>
    %cst_141 = arith.constant dense<0.000000e+00> : vector<64x128xf32>
    %183 = tpu.matmul %180, %182, %cst_141 {dimension_numbers = #tpu.dot_dimension_numbers<[1], [0], [0], [1], [0, 0, 1, 1], [], []>} : vector<64x128xbf16>, vector<128x128xbf16>, vector<64x128xf32> -> vector<64x128xf32>
    %184 = arith.addf %177, %183 : vector<64x128xf32>
    %c2_142 = arith.constant 2 : index
    %c2_143 = arith.constant 2 : index
    %c0_144 = arith.constant 0 : index
    %185 = vector.load %arg8[%c2_142, %c2_143, %c0_144] : memref<10x10x128xf32, #tpu.memory_space<vmem>>, vector<8x8x128xf32>
    %186 = vector.shape_cast %185 : vector<8x8x128xf32> to vector<64x128xf32>
    %187 = arith.truncf %186 : vector<64x128xf32> to vector<64x128xbf16>
    %c0_145 = arith.constant 0 : index
    %c0_146 = arith.constant 0 : index
    %c0_147 = arith.constant 0 : index
    %188 = vector.load %arg4[%c0_145, %c0_146, %c0_147] : memref<16x128x128xbf16, #tpu.memory_space<vmem>>, vector<1x128x128xbf16>
    %189 = vector.shape_cast %188 : vector<1x128x128xbf16> to vector<128x128xbf16>
    %cst_148 = arith.constant dense<0.000000e+00> : vector<64x128xf32>
    %190 = tpu.matmul %187, %189, %cst_148 {dimension_numbers = #tpu.dot_dimension_numbers<[1], [0], [0], [1], [0, 0, 1, 1], [], []>} : vector<64x128xbf16>, vector<128x128xbf16>, vector<64x128xf32> -> vector<64x128xf32>
    %191 = arith.addf %184, %190 : vector<64x128xf32>
    %c0_149 = arith.constant 0 : index
    %c3_150 = arith.constant 3 : index
    %c0_151 = arith.constant 0 : index
    %c0_152 = arith.constant 0 : index
    %192 = vector.load %arg6[%c0_149, %c3_150, %c0_151, %c0_152] : memref<1x4x64x128xf32, #tpu.memory_space<vmem>>, vector<1x1x64x128xf32>
    %193 = vector.shape_cast %192 : vector<1x1x64x128xf32> to vector<64x128xf32>
    %194 = vector.shape_cast %191 : vector<64x128xf32> to vector<1x1x64x128xf32>
    tpu.vector_store %arg6[%c0_149, %c3_150, %c0_151, %c0_152], %194 {strides = array<i32>} : memref<1x4x64x128xf32, #tpu.memory_space<vmem>>, vector<1x1x64x128xf32>,
    %cst_153 = arith.constant dense<0.000000e+00> : vector<128xf32>
    %195 = vector.multi_reduction <add>, %191, %cst_153 [0] : vector<64x128xf32> to vector<128xf32>
    %196 = vector.shape_cast %195 : vector<128xf32> to vector<1x128xf32>
    %197 = arith.addf %159, %196 : vector<1x128xf32>
    %198 = arith.mulf %191, %191 : vector<64x128xf32>
    %cst_154 = arith.constant dense<0.000000e+00> : vector<128xf32>
    %199 = vector.multi_reduction <add>, %198, %cst_154 [0] : vector<64x128xf32> to vector<128xf32>
    %200 = vector.shape_cast %199 : vector<128xf32> to vector<1x128xf32>
    %201 = arith.addf %163, %200 : vector<1x128xf32>
    %c0_155 = arith.constant 0 : index
    %c0_156 = arith.constant 0 : index
    %c0_157 = arith.constant 0 : index
    %202 = vector.load %arg7[%c0_155, %c0_156, %c0_157] : memref<1x2x128xf32, #tpu.memory_space<vmem>>, vector<1x1x128xf32>
    %203 = vector.shape_cast %202 : vector<1x1x128xf32> to vector<1x128xf32>
    %204 = vector.shape_cast %197 : vector<1x128xf32> to vector<1x1x128xf32>
    tpu.vector_store %arg7[%c0_155, %c0_156, %c0_157], %204 {strides = array<i32>} : memref<1x2x128xf32, #tpu.memory_space<vmem>>, vector<1x1x128xf32>,
    %c0_158 = arith.constant 0 : index
    %c1_159 = arith.constant 1 : index
    %c0_160 = arith.constant 0 : index
    %205 = vector.load %arg7[%c0_158, %c1_159, %c0_160] : memref<1x2x128xf32, #tpu.memory_space<vmem>>, vector<1x1x128xf32>
    %206 = vector.shape_cast %205 : vector<1x1x128xf32> to vector<1x128xf32>
    %207 = vector.shape_cast %201 : vector<1x128xf32> to vector<1x1x128xf32>
    tpu.vector_store %arg7[%c0_158, %c1_159, %c0_160], %207 {strides = array<i32>} : memref<1x2x128xf32, #tpu.memory_space<vmem>>, vector<1x1x128xf32>,
    return
  }
  func.func @transform_0(%arg0: i32) -> (i32, i32, i32, i32) {
    %c0_i32 = arith.constant 0 : i32
    %c0_i32_0 = arith.constant 0 : i32
    %c0_i32_1 = arith.constant 0 : i32
    %c0_i32_2 = arith.constant 0 : i32
    return %arg0, %c0_i32, %c0_i32_0, %c0_i32_1 : i32, i32, i32, i32
  }
  func.func @transform_1(%arg0: i32) -> (i32, i32, i32) {
    %c0_i32 = arith.constant 0 : i32
    %c0_i32_0 = arith.constant 0 : i32
    %c0_i32_1 = arith.constant 0 : i32
    %c0_i32_2 = arith.constant 0 : i32
    return %c0_i32, %c0_i32_0, %c0_i32_1 : i32, i32, i32
  }
  func.func @transform_2(%arg0: i32) -> (i32, i32) {
    %c0_i32 = arith.constant 0 : i32
    %c0_i32_0 = arith.constant 0 : i32
    %c0_i32_1 = arith.constant 0 : i32
    return %c0_i32, %c0_i32_0 : i32, i32
  }
  func.func @transform_3(%arg0: i32) -> (i32, i32, i32) {
    %c0_i32 = arith.constant 0 : i32
    %c0_i32_0 = arith.constant 0 : i32
    %c0_i32_1 = arith.constant 0 : i32
    %c0_i32_2 = arith.constant 0 : i32
    return %c0_i32, %c0_i32_0, %c0_i32_1 : i32, i32, i32
  }
  func.func @transform_4(%arg0: i32) -> (i32, i32) {
    %c0_i32 = arith.constant 0 : i32
    %c0_i32_0 = arith.constant 0 : i32
    %c0_i32_1 = arith.constant 0 : i32
    return %c0_i32, %c0_i32_0 : i32, i32
  }
  func.func @transform_5(%arg0: i32) -> (i32, i32, i32, i32) {
    %c0_i32 = arith.constant 0 : i32
    %c0_i32_0 = arith.constant 0 : i32
    %c0_i32_1 = arith.constant 0 : i32
    %c0_i32_2 = arith.constant 0 : i32
    return %arg0, %c0_i32, %c0_i32_0, %c0_i32_1 : i32, i32, i32, i32
  }
  func.func @transform_6(%arg0: i32) -> (i32, i32, i32) {
    %c0_i32 = arith.constant 0 : i32
    %c0_i32_0 = arith.constant 0 : i32
    %c0_i32_1 = arith.constant 0 : i32
    return %arg0, %c0_i32, %c0_i32_0 : i32, i32, i32
  }
}

module attributes {stable_mosaic.version = 11 : i64} {
  func.func @_bn_affine_kernel(%arg0: i32, %arg1: memref<1x4x64x128xf32, #tpu.memory_space<vmem>>, %arg2: memref<1x128xf32, #tpu.memory_space<vmem>>, %arg3: memref<1x128xf32, #tpu.memory_space<vmem>>, %arg4: memref<1x4x64x4xf32, #tpu.memory_space<vmem>>) attributes {dimension_semantics = [#tpu.dimension_semantics<parallel>], iteration_bounds = array<i64: 2>, scalar_prefetch = 0 : i64, scratch_operands = 0 : i64, tpu.core_type = #tpu.core_type<tc>, window_params = [{transform_indices = @transform_0, window_bounds = array<i64: 1, 4, 64, 128>}, {pipeline_mode = #tpu.pipeline_mode<synchronous>, transform_indices = @transform_1, window_bounds = array<i64: 1, 128>}, {pipeline_mode = #tpu.pipeline_mode<synchronous>, transform_indices = @transform_2, window_bounds = array<i64: 1, 128>}, {transform_indices = @transform_3, window_bounds = array<i64: 1, 4, 64, 4>}]} {
    %c0 = arith.constant 0 : index
    %c0_0 = arith.constant 0 : index
    %c0_1 = arith.constant 0 : index
    %c0_2 = arith.constant 0 : index
    %0 = vector.load %arg1[%c0, %c0_0, %c0_1, %c0_2] : memref<1x4x64x128xf32, #tpu.memory_space<vmem>>, vector<1x4x64x128xf32>
    %c0_3 = arith.constant 0 : index
    %c0_4 = arith.constant 0 : index
    %1 = vector.load %arg2[%c0_3, %c0_4] : memref<1x128xf32, #tpu.memory_space<vmem>>, vector<1x128xf32>
    %2 = vector.shape_cast %1 : vector<1x128xf32> to vector<1x1x1x128xf32>
    %3 = vector.broadcast %2 : vector<1x1x1x128xf32> to vector<1x4x64x128xf32>
    %4 = arith.mulf %0, %3 : vector<1x4x64x128xf32>
    %c0_5 = arith.constant 0 : index
    %c0_6 = arith.constant 0 : index
    %5 = vector.load %arg3[%c0_5, %c0_6] : memref<1x128xf32, #tpu.memory_space<vmem>>, vector<1x128xf32>
    %6 = vector.shape_cast %5 : vector<1x128xf32> to vector<1x1x1x128xf32>
    %7 = vector.broadcast %6 : vector<1x1x1x128xf32> to vector<1x4x64x128xf32>
    %8 = arith.addf %4, %7 : vector<1x4x64x128xf32>
    %9 = vector.extract_strided_slice %8 {offsets = [0, 0, 0, 0], sizes = [1, 4, 64, 4], strides = [1, 1, 1, 1]} : vector<1x4x64x128xf32> to vector<1x4x64x4xf32>
    %c0_7 = arith.constant 0 : index
    %c0_8 = arith.constant 0 : index
    %c0_9 = arith.constant 0 : index
    %c0_10 = arith.constant 0 : index
    %10 = vector.load %arg4[%c0_7, %c0_8, %c0_9, %c0_10] : memref<1x4x64x4xf32, #tpu.memory_space<vmem>>, vector<1x4x64x4xf32>
    tpu.vector_store %arg4[%c0_7, %c0_8, %c0_9, %c0_10], %9 {strides = array<i32>} : memref<1x4x64x4xf32, #tpu.memory_space<vmem>>, vector<1x4x64x4xf32>,
    return
  }
  func.func @transform_0(%arg0: i32) -> (i32, i32, i32, i32) {
    %c0_i32 = arith.constant 0 : i32
    %c0_i32_0 = arith.constant 0 : i32
    %c0_i32_1 = arith.constant 0 : i32
    %c0_i32_2 = arith.constant 0 : i32
    return %arg0, %c0_i32, %c0_i32_0, %c0_i32_1 : i32, i32, i32, i32
  }
  func.func @transform_1(%arg0: i32) -> (i32, i32) {
    %c0_i32 = arith.constant 0 : i32
    %c0_i32_0 = arith.constant 0 : i32
    %c0_i32_1 = arith.constant 0 : i32
    return %c0_i32, %c0_i32_0 : i32, i32
  }
  func.func @transform_2(%arg0: i32) -> (i32, i32) {
    %c0_i32 = arith.constant 0 : i32
    %c0_i32_0 = arith.constant 0 : i32
    %c0_i32_1 = arith.constant 0 : i32
    return %c0_i32, %c0_i32_0 : i32, i32
  }
  func.func @transform_3(%arg0: i32) -> (i32, i32, i32, i32) {
    %c0_i32 = arith.constant 0 : i32
    %c0_i32_0 = arith.constant 0 : i32
    %c0_i32_1 = arith.constant 0 : i32
    %c0_i32_2 = arith.constant 0 : i32
    return %arg0, %c0_i32, %c0_i32_0, %c0_i32_1 : i32, i32, i32, i32
  }
}

</mosaic_0001>

<llo_original>
// kernel: unet_innermost_forward.3
$region0: #{unet_innermost_forward.3}
  #allocation0 [shape = 'u32[]', space=smem, size = 0x4, offset = 0x4, fixed_abs, tag = 'smem constant byte address 0x4 - core index']
  #allocation1 [shape = 'u32[144,128]{1,0:T(1,128)}', space=vmem, size = 0x12000, scoped, tag = 'internal scratch']
  %s0 = inlined_call_operand.vmem [shape: f32[2,4,64,128], index: 0, kind: input, shape index: {}]
  %s1 = inlined_call_operand.vmem [shape: f32[1,128], index: 1, kind: input, shape index: {}]
  %s2 = inlined_call_operand.vmem [shape: f32[1,128], index: 2, kind: input, shape index: {}]
  %s3 = inlined_call_operand.vmem [shape: f32[2,4,64,4], index: 3, kind: output, shape index: {}]
  %s4 = sld [smem:[#allocation0]]
  $region45: #{unet_innermost_forward.3} parent=0
    _
  %s6 = ssub.s32 1, %s4
  %s7 = scalar_select 0, %s6, %s4
  loop: start=0, step=1, limit=4
  $region2: #{unet_innermost_forward.3} parent=0 // loop_pre_header
    _
  $region3: #{unet_innermost_forward.3} parent=0 // loop_header
    %s9 = sphi 0, %s13
    %p10 = scmp.ge.s32.totalorder %s9, 4
    %s19 = sphi 0, %s21
    %s22 = sphi 0, %s19
    %s23 = sphi 0, %s22
    %s39 = sphi 0, %s23
    %s43 = sphi 0, %s43
    %s45 = sphi 0, %s43
    %s46 = sphi 0, %s45
    %s60 = sphi 0, %s46
    %s64 = sphi 0, %s64
    %s66 = sphi 0, %s64
    %s67 = sphi 0, %s66
    %s81 = sphi 0, %s67
    %s87 = sphi 0, %s89
    %s90 = sphi 0, %s87
    %s91 = sphi 0, %s90
    %s107 = sphi 0, %s91
  $region4: #{unet_innermost_forward.3} parent=0 // loop_header_branch
    %12 = sbr.rel (%p10) target = $region8
  $region5: #{unet_innermost_forward.3} parent=0 // loop_body
    %s14 = ssub.s32 %s9, 1
    %s15 = ssub.s32 %s9, 2
    %s16 = sadd.s32 %s9, 1
    %s17 = ssub.s32 %s9, %s16
    %p18 = scmp.eq.s32.totalorder %s17, 0
    %s20 = sadd.s32 %s19, 1
    %s21 = scalar_select %p18, %s19, %s20
    %p24 = pneg %p18
    %p25 = scmp.eq.s32.totalorder %s9, 1
    %p26 = por %p24, %p25
    %p27 = scmp.ne.s32.totalorder %s19, %s22
    %p28 = scmp.eq.s32.totalorder %s9, 0
    %p29 = por %p27, %p28
    %p30 = scmp.ne.s32.totalorder %s19, %s22
    %p31 = scmp.eq.s32.totalorder %s14, 1
    %p32 = por %p30, %p31
    %p33 = scmp.ne.s32.totalorder %s22, %s23
    %p34 = scmp.eq.s32.totalorder %s14, 0
    %p35 = por %p33, %p34
    %p36 = scmp.ne.s32.totalorder %s22, %s23
    %p37 = scmp.eq.s32.totalorder %s15, 1
    %p38 = por %p36, %p37
    %p40 = scmp.ne.s32.totalorder %s23, %s39
    %p41 = scmp.eq.s32.totalorder %s15, 0
    %p42 = por %p40, %p41
    %s44 = sadd.s32 %s43, 1
    %p47 = scmp.eq.s32.totalorder %s9, 1
    %p48 = scmp.ne.s32.totalorder %s43, %s45
    %p49 = scmp.eq.s32.totalorder %s9, 0
    %p50 = por %p48, %p49
    %p51 = scmp.ne.s32.totalorder %s43, %s45
    %p52 = scmp.eq.s32.totalorder %s14, 1
    %p53 = por %p51, %p52
    %p54 = scmp.ne.s32.totalorder %s45, %s46
    %p55 = scmp.eq.s32.totalorder %s14, 0
    %p56 = por %p54, %p55
    %p57 = scmp.ne.s32.totalorder %s45, %s46
    %p58 = scmp.eq.s32.totalorder %s15, 1
    %p59 = por %p57, %p58
    %p61 = scmp.ne.s32.totalorder %s46, %s60
    %p62 = scmp.eq.s32.totalorder %s15, 0
    %p63 = por %p61, %p62
    %s65 = sadd.s32 %s64, 1
    %p68 = scmp.eq.s32.totalorder %s9, 1
    %p69 = scmp.ne.s32.totalorder %s64, %s66
    %p70 = scmp.eq.s32.totalorder %s9, 0
    %p71 = por %p69, %p70
    %p72 = scmp.ne.s32.totalorder %s64, %s66
    %p73 = scmp.eq.s32.totalorder %s14, 1
    %p74 = por %p72, %p73
    %p75 = scmp.ne.s32.totalorder %s66, %s67
    %p76 = scmp.eq.s32.totalorder %s14, 0
    %p77 = por %p75, %p76
    %p78 = scmp.ne.s32.totalorder %s66, %s67
    %p79 = scmp.eq.s32.totalorder %s15, 1
    %p80 = por %p78, %p79
    %p82 = scmp.ne.s32.totalorder %s67, %s81
    %p83 = scmp.eq.s32.totalorder %s15, 0
    %p84 = por %p82, %p83
    %s85 = ssub.s32 %s9, %s16
    %p86 = scmp.eq.s32.totalorder %s85, 0
    %s88 = sadd.s32 %s87, 1
    %s89 = scalar_select %p86, %s87, %s88
    %p92 = pneg %p86
    %p93 = scmp.eq.s32.totalorder %s9, 1
    %p94 = por %p92, %p93
    %p95 = scmp.ne.s32.totalorder %s87, %s90
    %p96 = scmp.eq.s32.totalorder %s9, 0
    %p97 = por %p95, %p96
    %p98 = scmp.ne.s32.totalorder %s87, %s90
    %p99 = scmp.eq.s32.totalorder %s14, 1
    %p100 = por %p98, %p99
    %p101 = scmp.ne.s32.totalorder %s90, %s91
    %p102 = scmp.eq.s32.totalorder %s14, 0
    %p103 = por %p101, %p102
    %p104 = scmp.ne.s32.totalorder %s90, %s91
    %p105 = scmp.eq.s32.totalorder %s15, 1
    %p106 = por %p104, %p105
    %p108 = scmp.ne.s32.totalorder %s91, %s107
    %p109 = scmp.eq.s32.totalorder %s15, 0
    %p110 = por %p108, %p109
    %p111 = scmp.le.s32.totalorder 1, %s9
    %p112 = scmp.lt.s32.totalorder %s9, 3
    %p113 = pnand %p111, %p112
    %p114 = pneg %p113
    // Predicated region
    $region9: #{unet_innermost_forward.3} parent=5 // pred_check
      _
    $region10: #{unet_innermost_forward.3} parent=5 // pred_check_branch
      %116 = sbr.rel (%p113) target = $region12
    $region11: #{unet_innermost_forward.3} parent=5 // pred_region
      %s117 = ssub.s32 %s9, 1
      // Predicated region
      $region13: #{unet_innermost_forward.3} parent=11 // pred_check
        %p118 = pneg %p56
      $region14: #{unet_innermost_forward.3} parent=11 // pred_check_branch
        %120 = sbr.rel (%p118) target = $region16
      $region15: #{unet_innermost_forward.3} parent=11 // pred_region
        _
      $region16: #{unet_innermost_forward.3} parent=11 // pred_fallthru
        _
      // Predicated region
      $region17: #{unet_innermost_forward.3} parent=11 // pred_check
        %p121 = pneg %p77
      $region18: #{unet_innermost_forward.3} parent=11 // pred_check_branch
        %123 = sbr.rel (%p121) target = $region20
      $region19: #{unet_innermost_forward.3} parent=11 // pred_region
        _
      $region20: #{unet_innermost_forward.3} parent=11 // pred_fallthru
        _
    $region12: #{unet_innermost_forward.3} parent=5 // pred_fallthru
      _
    %p124 = scmp.lt.s32.totalorder %s9, 2
    // Predicated region
    $region21: #{unet_innermost_forward.3} parent=5 // pred_check
      %p125 = pneg %p124
    $region22: #{unet_innermost_forward.3} parent=5 // pred_check_branch
      %127 = sbr.rel (%p125) target = $region24
    $region23: #{unet_innermost_forward.3} parent=5 // pred_region
      // Predicated region
      $region25: #{unet_innermost_forward.3} parent=23 // pred_check
        %p128 = pneg %p29
      $region26: #{unet_innermost_forward.3} parent=23 // pred_check_branch
        %130 = sbr.rel (%p128) target = $region28
      $region27: #{unet_innermost_forward.3} parent=23 // pred_region
        %p131 = scmp.lt.s32.totalorder %s9, 1
        %s132 = scalar_select %p131, %s9, 1
        %s133 = smul.addr %s132, 32
        %s134 = smul.addr %s133, 8
        %s135 = scalar_lea.vmem %s0, %s134
      $region28: #{unet_innermost_forward.3} parent=23 // pred_fallthru
        _
    $region24: #{unet_innermost_forward.3} parent=5 // pred_fallthru
      _
    %p136 = scmp.le.s32.totalorder 1, %s9
    %p137 = scmp.lt.s32.totalorder %s9, 3
    %p138 = pnand %p136, %p137
    %p139 = pneg %p138
    // Predicated region
    $region29: #{unet_innermost_forward.3} parent=5 // pred_check
      _
    $region30: #{unet_innermost_forward.3} parent=5 // pred_check_branch
      %141 = sbr.rel (%p138) target = $region32
    $region31: #{unet_innermost_forward.3} parent=5 // pred_region
      %s142 = ssub.s32 %s9, 1
      %p143 = scmp.lt.s32.totalorder %s14, 1
      %s144 = scalar_select %p143, %s14, 1
      %s145 = smul.addr %s144, 32
      %s146 = smul.addr %s145, 8
      %s147 = scalar_lea.vmem %s0, %s146
      %p148 = pneg %p35
      %p149 = pneg %p32
      %p150 = pneg %p56
      %p151 = pneg %p53
      %p152 = pneg %p77
      %p153 = pneg %p74
      %p154 = pneg %p103
      %p155 = pneg %p100
      %p156 = scmp.lt.s32.totalorder %s14, 1
      %s157 = scalar_select %p156, %s14, 1
      %s158 = smul.addr %s157, 32
      %s159 = smul.addr %s158, 8
      %s160 = scalar_lea.vmem %s3, %s159
      %p161 = scmp.lt.s32.totalorder %s14, 1
      %s162 = scalar_select %p161, %s14, 1
      %s163 = smul.addr %s162, 32
      %s164 = smul.addr %s163, 8
      %s165 = scalar_lea.vmem %s0, %s164
      %p166 = scmp.lt.s32.totalorder %s14, 1
      %s167 = scalar_select %p166, %s14, 1
      %s168 = smul.addr %s167, 32
      %s169 = smul.addr %s168, 8
      %s170 = scalar_lea.vmem %s3, %s169
      %v171 = vld [vmem:[%s165] sm:$0xff]
      %v172 = vld [vmem:[%s165 + $0x8] sm:$0xff]
      %v173 = vld [vmem:[%s165 + $0x10] sm:$0xff]
      %v174 = vld [vmem:[%s165 + $0x18] sm:$0xff]
      %v175 = vld [vmem:[%s165 + $0x20] sm:$0xff]
      %v176 = vld [vmem:[%s165 + $0x28] sm:$0xff]
      %v177 = vld [vmem:[%s165 + $0x30] sm:$0xff]
      %v178 = vld [vmem:[%s165 + $0x38] sm:$0xff]
      %v179 = vld [vmem:[%s165 + $0x40] sm:$0xff]
      %v180 = vld [vmem:[%s165 + $0x48] sm:$0xff]
      %v181 = vld [vmem:[%s165 + $0x50] sm:$0xff]
      %v182 = vld [vmem:[%s165 + $0x58] sm:$0xff]
      %v183 = vld [vmem:[%s165 + $0x60] sm:$0xff]
      %v184 = vld [vmem:[%s165 + $0x68] sm:$0xff]
      %v185 = vld [vmem:[%s165 + $0x70] sm:$0xff]
      %v186 = vld [vmem:[%s165 + $0x78] sm:$0xff]
      %v187 = vld [vmem:[%s165 + $0x80] sm:$0xff]
      %v188 = vld [vmem:[%s165 + $0x88] sm:$0xff]
      %v189 = vld [vmem:[%s165 + $0x90] sm:$0xff]
      %v190 = vld [vmem:[%s165 + $0x98] sm:$0xff]
      %v191 = vld [vmem:[%s165 + $0xa0] sm:$0xff]
      %v192 = vld [vmem:[%s165 + $0xa8] sm:$0xff]
      %v193 = vld [vmem:[%s165 + $0xb0] sm:$0xff]
      %v194 = vld [vmem:[%s165 + $0xb8] sm:$0xff]
      %v195 = vld [vmem:[%s165 + $0xc0] sm:$0xff]
      %v196 = vld [vmem:[%s165 + $0xc8] sm:$0xff]
      %v197 = vld [vmem:[%s165 + $0xd0] sm:$0xff]
      %v198 = vld [vmem:[%s165 + $0xd8] sm:$0xff]
      %v199 = vld [vmem:[%s165 + $0xe0] sm:$0xff]
      %v200 = vld [vmem:[%s165 + $0xe8] sm:$0xff]
      %v201 = vld [vmem:[%s165 + $0xf0] sm:$0xff]
      %v202 = vld [vmem:[%s165 + $0xf8] sm:$0xff]
      %v203 = vld [vmem:[%s1] sm:$0x1]
      %v205 = vlaneseq
      %v206 = vshrl.u32 %v205, 7
      %v207 = vsub.s32 0, %v206
      %v208 = vrot.slane %v203, %v207
      %v210 = vmul.f32 %v171, %v208
      %v211 = vmul.f32 %v172, %v208
      %v212 = vmul.f32 %v173, %v208
      %v213 = vmul.f32 %v174, %v208
      %v214 = vmul.f32 %v175, %v208
      %v215 = vmul.f32 %v176, %v208
      %v216 = vmul.f32 %v177, %v208
      %v217 = vmul.f32 %v178, %v208
      %v218 = vmul.f32 %v179, %v208
      %v219 = vmul.f32 %v180, %v208
      %v220 = vmul.f32 %v181, %v208
      %v221 = vmul.f32 %v182, %v208
      %v222 = vmul.f32 %v183, %v208
      %v223 = vmul.f32 %v184, %v208
      %v224 = vmul.f32 %v185, %v208
      %v225 = vmul.f32 %v186, %v208
      %v226 = vmul.f32 %v187, %v208
      %v227 = vmul.f32 %v188, %v208
      %v228 = vmul.f32 %v189, %v208
      %v229 = vmul.f32 %v190, %v208
      %v230 = vmul.f32 %v191, %v208
      %v231 = vmul.f32 %v192, %v208
      %v232 = vmul.f32 %v193, %v208
      %v233 = vmul.f32 %v194, %v208
      %v234 = vmul.f32 %v195, %v208
      %v235 = vmul.f32 %v196, %v208
      %v236 = vmul.f32 %v197, %v208
      %v237 = vmul.f32 %v198, %v208
      %v238 = vmul.f32 %v199, %v208
      %v239 = vmul.f32 %v200, %v208
      %v240 = vmul.f32 %v201, %v208
      %v241 = vmul.f32 %v202, %v208
      %v242 = vld [vmem:[%s2] sm:$0x1]
      %v244 = vlaneseq
      %v245 = vshrl.u32 %v244, 7
      %v246 = vsub.s32 0, %v245
      %v247 = vrot.slane %v242, %v246
      %v249 = vadd.f32 %v210, %v247
      %v250 = vadd.f32 %v211, %v247
      %v251 = vadd.f32 %v212, %v247
      %v252 = vadd.f32 %v213, %v247
      %v253 = vadd.f32 %v214, %v247
      %v254 = vadd.f32 %v215, %v247
      %v255 = vadd.f32 %v216, %v247
      %v256 = vadd.f32 %v217, %v247
      %v257 = vadd.f32 %v218, %v247
      %v258 = vadd.f32 %v219, %v247
      %v259 = vadd.f32 %v220, %v247
      %v260 = vadd.f32 %v221, %v247
      %v261 = vadd.f32 %v222, %v247
      %v262 = vadd.f32 %v223, %v247
      %v263 = vadd.f32 %v224, %v247
      %v264 = vadd.f32 %v225, %v247
      %v265 = vadd.f32 %v226, %v247
      %v266 = vadd.f32 %v227, %v247
      %v267 = vadd.f32 %v228, %v247
      %v268 = vadd.f32 %v229, %v247
      %v269 = vadd.f32 %v230, %v247
      %v270 = vadd.f32 %v231, %v247
      %v271 = vadd.f32 %v232, %v247
      %v272 = vadd.f32 %v233, %v247
      %v273 = vadd.f32 %v234, %v247
      %v274 = vadd.f32 %v235, %v247
      %v275 = vadd.f32 %v236, %v247
      %v276 = vadd.f32 %v237, %v247
      %v277 = vadd.f32 %v238, %v247
      %v278 = vadd.f32 %v239, %v247
      %v279 = vadd.f32 %v240, %v247
      %v280 = vadd.f32 %v241, %v247
      %vm281 = vcmask 31744
      %282 = vst.msk [vmem:[%s170] sm:$0xff] %vm281, %v249
      %283 = vst.msk [vmem:[%s170 + $0x8] sm:$0xff] %vm281, %v250
      %284 = vst.msk [vmem:[%s170 + $0x10] sm:$0xff] %vm281, %v251
      %285 = vst.msk [vmem:[%s170 + $0x18] sm:$0xff] %vm281, %v252
      %286 = vst.msk [vmem:[%s170 + $0x20] sm:$0xff] %vm281, %v253
      %287 = vst.msk [vmem:[%s170 + $0x28] sm:$0xff] %vm281, %v254
      %288 = vst.msk [vmem:[%s170 + $0x30] sm:$0xff] %vm281, %v255
      %289 = vst.msk [vmem:[%s170 + $0x38] sm:$0xff] %vm281, %v256
      %290 = vst.msk [vmem:[%s170 + $0x40] sm:$0xff] %vm281, %v257
      %291 = vst.msk [vmem:[%s170 + $0x48] sm:$0xff] %vm281, %v258
      %292 = vst.msk [vmem:[%s170 + $0x50] sm:$0xff] %vm281, %v259
      %293 = vst.msk [vmem:[%s170 + $0x58] sm:$0xff] %vm281, %v260
      %294 = vst.msk [vmem:[%s170 + $0x60] sm:$0xff] %vm281, %v261
      %295 = vst.msk [vmem:[%s170 + $0x68] sm:$0xff] %vm281, %v262
      %296 = vst.msk [vmem:[%s170 + $0x70] sm:$0xff] %vm281, %v263
      %297 = vst.msk [vmem:[%s170 + $0x78] sm:$0xff] %vm281, %v264
      %298 = vst.msk [vmem:[%s170 + $0x80] sm:$0xff] %vm281, %v265
      %299 = vst.msk [vmem:[%s170 + $0x88] sm:$0xff] %vm281, %v266
      %300 = vst.msk [vmem:[%s170 + $0x90] sm:$0xff] %vm281, %v267
      %301 = vst.msk [vmem:[%s170 + $0x98] sm:$0xff] %vm281, %v268
      %302 = vst.msk [vmem:[%s170 + $0xa0] sm:$0xff] %vm281, %v269
      %303 = vst.msk [vmem:[%s170 + $0xa8] sm:$0xff] %vm281, %v270
      %304 = vst.msk [vmem:[%s170 + $0xb0] sm:$0xff] %vm281, %v271
      %305 = vst.msk [vmem:[%s170 + $0xb8] sm:$0xff] %vm281, %v272
      %306 = vst.msk [vmem:[%s170 + $0xc0] sm:$0xff] %vm281, %v273
      %307 = vst.msk [vmem:[%s170 + $0xc8] sm:$0xff] %vm281, %v274
      %308 = vst.msk [vmem:[%s170 + $0xd0] sm:$0xff] %vm281, %v275
      %309 = vst.msk [vmem:[%s170 + $0xd8] sm:$0xff] %vm281, %v276
      %310 = vst.msk [vmem:[%s170 + $0xe0] sm:$0xff] %vm281, %v277
      %311 = vst.msk [vmem:[%s170 + $0xe8] sm:$0xff] %vm281, %v278
      %312 = vst.msk [vmem:[%s170 + $0xf0] sm:$0xff] %vm281, %v279
      %313 = vst.msk [vmem:[%s170 + $0xf8] sm:$0xff] %vm281, %v280
      %p314 = scmp.lt.s32.totalorder %s14, 1
      %s315 = scalar_select %p314, %s14, 1
      %s316 = smul.addr %s315, 32
      %s317 = smul.addr %s316, 8
      %s318 = scalar_lea.vmem %s3, %s317
      // Predicated region
      $region33: #{unet_innermost_forward.3} parent=31 // pred_check
        %p319 = pneg %p100
      $region34: #{unet_innermost_forward.3} parent=31 // pred_check_branch
        %321 = sbr.rel (%p319) target = $region36
      $region35: #{unet_innermost_forward.3} parent=31 // pred_region
        _
      $region36: #{unet_innermost_forward.3} parent=31 // pred_fallthru
        _
    $region32: #{unet_innermost_forward.3} parent=5 // pred_fallthru
      _
    %p322 = scmp.le.s32.totalorder 2, %s9
    // Predicated region
    $region37: #{unet_innermost_forward.3} parent=5 // pred_check
      %p323 = pneg %p322
    $region38: #{unet_innermost_forward.3} parent=5 // pred_check_branch
      %325 = sbr.rel (%p323) target = $region40
    $region39: #{unet_innermost_forward.3} parent=5 // pred_region
      %s326 = ssub.s32 %s9, 2
      // Predicated region
      $region41: #{unet_innermost_forward.3} parent=39 // pred_check
        %p327 = pneg %p106
      $region42: #{unet_innermost_forward.3} parent=39 // pred_check_branch
        %329 = sbr.rel (%p327) target = $region44
      $region43: #{unet_innermost_forward.3} parent=39 // pred_region
        %p330 = scmp.lt.s32.totalorder %s15, 1
        %s331 = scalar_select %p330, %s15, 1
        %s332 = smul.addr %s331, 32
        %s333 = smul.addr %s332, 8
        %s334 = scalar_lea.vmem %s3, %s333
      $region44: #{unet_innermost_forward.3} parent=39 // pred_fallthru
        _
    $region40: #{unet_innermost_forward.3} parent=5 // pred_fallthru
      _
  $region6: #{unet_innermost_forward.3} parent=0 // loop_footer
    %s13 = sadd.s32 1, %s9
  $region7: #{unet_innermost_forward.3} parent=0 // loop_footer_branch
    %8 = sbr.rel target = $region3
  $region8: #{unet_innermost_forward.3} parent=0 // loop_exit
    _

// kernel: unet_innermost_forward.2
$region0: #{unet_innermost_forward.2}
  #allocation0 [shape = 'u32[]', space=smem, size = 0x4, offset = 0x4, fixed_abs, tag = 'smem constant byte address 0x4 - core index']
  #allocation1 [shape = 'u32[144,128]{1,0:T(1,128)}', space=vmem, size = 0x12000, scoped, tag = 'internal scratch']
  #allocation2 [shape = 'f32[10,10,128]{2,1,0:T(8,128)}', space=vmem, size = 0x14000, scoped, tag = 'scratch operand']
  %s0 = inlined_call_operand.vmem [shape: bf16[2,9,9,16], index: 0, kind: input, shape index: {}]
  %s1 = inlined_call_operand.vmem [shape: bf16[4,16,128], index: 1, kind: input, shape index: {}]
  %s2 = inlined_call_operand.vmem [shape: f32[1,128], index: 2, kind: input, shape index: {}]
  %s3 = inlined_call_operand.vmem [shape: bf16[16,128,128], index: 3, kind: input, shape index: {}]
  %s4 = inlined_call_operand.vmem [shape: f32[1,128], index: 4, kind: input, shape index: {}]
  %s5 = inlined_call_operand.vmem [shape: f32[2,4,64,128], index: 5, kind: output, shape index: {0}]
  %s6 = inlined_call_operand.vmem [shape: f32[2,2,128], index: 6, kind: output, shape index: {1}]
  %7 = xla_tuple %s5, %s6
  %s8 = sld [smem:[#allocation0]]
  $region61: #{unet_innermost_forward.2} parent=0
    _
  %s10 = ssub.s32 1, %s8
  %s11 = scalar_select 0, %s10, %s8
  loop: start=0, step=1, limit=4
  $region2: #{unet_innermost_forward.2} parent=0 // loop_pre_header
    _
  $region3: #{unet_innermost_forward.2} parent=0 // loop_header
    %s13 = sphi 0, %s17
    %p14 = scmp.ge.s32.totalorder %s13, 4
    %s23 = sphi 0, %s25
    %s26 = sphi 0, %s23
    %s27 = sphi 0, %s26
    %s43 = sphi 0, %s27
    %s47 = sphi 0, %s47
    %s49 = sphi 0, %s47
    %s50 = sphi 0, %s49
    %s64 = sphi 0, %s50
    %s68 = sphi 0, %s68
    %s70 = sphi 0, %s68
    %s71 = sphi 0, %s70
    %s85 = sphi 0, %s71
    %s89 = sphi 0, %s89
    %s91 = sphi 0, %s89
    %s92 = sphi 0, %s91
    %s106 = sphi 0, %s92
    %s110 = sphi 0, %s110
    %s112 = sphi 0, %s110
    %s113 = sphi 0, %s112
    %s127 = sphi 0, %s113
    %s133 = sphi 0, %s135
    %s136 = sphi 0, %s133
    %s137 = sphi 0, %s136
    %s153 = sphi 0, %s137
    %s159 = sphi 0, %s161
    %s162 = sphi 0, %s159
    %s163 = sphi 0, %s162
    %s179 = sphi 0, %s163
  $region4: #{unet_innermost_forward.2} parent=0 // loop_header_branch
    %16 = sbr.rel (%p14) target = $region8
  $region5: #{unet_innermost_forward.2} parent=0 // loop_body
    %s18 = ssub.s32 %s13, 1
    %s19 = ssub.s32 %s13, 2
    %s20 = sadd.s32 %s13, 1
    %s21 = ssub.s32 %s13, %s20
    %p22 = scmp.eq.s32.totalorder %s21, 0
    %s24 = sadd.s32 %s23, 1
    %s25 = scalar_select %p22, %s23, %s24
    %p28 = pneg %p22
    %p29 = scmp.eq.s32.totalorder %s13, 1
    %p30 = por %p28, %p29
    %p31 = scmp.ne.s32.totalorder %s23, %s26
    %p32 = scmp.eq.s32.totalorder %s13, 0
    %p33 = por %p31, %p32
    %p34 = scmp.ne.s32.totalorder %s23, %s26
    %p35 = scmp.eq.s32.totalorder %s18, 1
    %p36 = por %p34, %p35
    %p37 = scmp.ne.s32.totalorder %s26, %s27
    %p38 = scmp.eq.s32.totalorder %s18, 0
    %p39 = por %p37, %p38
    %p40 = scmp.ne.s32.totalorder %s26, %s27
    %p41 = scmp.eq.s32.totalorder %s19, 1
    %p42 = por %p40, %p41
    %p44 = scmp.ne.s32.totalorder %s27, %s43
    %p45 = scmp.eq.s32.totalorder %s19, 0
    %p46 = por %p44, %p45
    %s48 = sadd.s32 %s47, 1
    %p51 = scmp.eq.s32.totalorder %s13, 1
    %p52 = scmp.ne.s32.totalorder %s47, %s49
    %p53 = scmp.eq.s32.totalorder %s13, 0
    %p54 = por %p52, %p53
    %p55 = scmp.ne.s32.totalorder %s47, %s49
    %p56 = scmp.eq.s32.totalorder %s18, 1
    %p57 = por %p55, %p56
    %p58 = scmp.ne.s32.totalorder %s49, %s50
    %p59 = scmp.eq.s32.totalorder %s18, 0
    %p60 = por %p58, %p59
    %p61 = scmp.ne.s32.totalorder %s49, %s50
    %p62 = scmp.eq.s32.totalorder %s19, 1
    %p63 = por %p61, %p62
    %p65 = scmp.ne.s32.totalorder %s50, %s64
    %p66 = scmp.eq.s32.totalorder %s19, 0
    %p67 = por %p65, %p66
    %s69 = sadd.s32 %s68, 1
    %p72 = scmp.eq.s32.totalorder %s13, 1
    %p73 = scmp.ne.s32.totalorder %s68, %s70
    %p74 = scmp.eq.s32.totalorder %s13, 0
    %p75 = por %p73, %p74
    %p76 = scmp.ne.s32.totalorder %s68, %s70
    %p77 = scmp.eq.s32.totalorder %s18, 1
    %p78 = por %p76, %p77
    %p79 = scmp.ne.s32.totalorder %s70, %s71
    %p80 = scmp.eq.s32.totalorder %s18, 0
    %p81 = por %p79, %p80
    %p82 = scmp.ne.s32.totalorder %s70, %s71
    %p83 = scmp.eq.s32.totalorder %s19, 1
    %p84 = por %p82, %p83
    %p86 = scmp.ne.s32.totalorder %s71, %s85
    %p87 = scmp.eq.s32.totalorder %s19, 0
    %p88 = por %p86, %p87
    %s90 = sadd.s32 %s89, 1
    %p93 = scmp.eq.s32.totalorder %s13, 1
    %p94 = scmp.ne.s32.totalorder %s89, %s91
    %p95 = scmp.eq.s32.totalorder %s13, 0
    %p96 = por %p94, %p95
    %p97 = scmp.ne.s32.totalorder %s89, %s91
    %p98 = scmp.eq.s32.totalorder %s18, 1
    %p99 = por %p97, %p98
    %p100 = scmp.ne.s32.totalorder %s91, %s92
    %p101 = scmp.eq.s32.totalorder %s18, 0
    %p102 = por %p100, %p101
    %p103 = scmp.ne.s32.totalorder %s91, %s92
    %p104 = scmp.eq.s32.totalorder %s19, 1
    %p105 = por %p103, %p104
    %p107 = scmp.ne.s32.totalorder %s92, %s106
    %p108 = scmp.eq.s32.totalorder %s19, 0
    %p109 = por %p107, %p108
    %s111 = sadd.s32 %s110, 1
    %p114 = scmp.eq.s32.totalorder %s13, 1
    %p115 = scmp.ne.s32.totalorder %s110, %s112
    %p116 = scmp.eq.s32.totalorder %s13, 0
    %p117 = por %p115, %p116
    %p118 = scmp.ne.s32.totalorder %s110, %s112
    %p119 = scmp.eq.s32.totalorder %s18, 1
    %p120 = por %p118, %p119
    %p121 = scmp.ne.s32.totalorder %s112, %s113
    %p122 = scmp.eq.s32.totalorder %s18, 0
    %p123 = por %p121, %p122
    %p124 = scmp.ne.s32.totalorder %s112, %s113
    %p125 = scmp.eq.s32.totalorder %s19, 1
    %p126 = por %p124, %p125
    %p128 = scmp.ne.s32.totalorder %s113, %s127
    %p129 = scmp.eq.s32.totalorder %s19, 0
    %p130 = por %p128, %p129
    %s131 = ssub.s32 %s13, %s20
    %p132 = scmp.eq.s32.totalorder %s131, 0
    %s134 = sadd.s32 %s133, 1
    %s135 = scalar_select %p132, %s133, %s134
    %p138 = pneg %p132
    %p139 = scmp.eq.s32.totalorder %s13, 1
    %p140 = por %p138, %p139
    %p141 = scmp.ne.s32.totalorder %s133, %s136
    %p142 = scmp.eq.s32.totalorder %s13, 0
    %p143 = por %p141, %p142
    %p144 = scmp.ne.s32.totalorder %s133, %s136
    %p145 = scmp.eq.s32.totalorder %s18, 1
    %p146 = por %p144, %p145
    %p147 = scmp.ne.s32.totalorder %s136, %s137
    %p148 = scmp.eq.s32.totalorder %s18, 0
    %p149 = por %p147, %p148
    %p150 = scmp.ne.s32.totalorder %s136, %s137
    %p151 = scmp.eq.s32.totalorder %s19, 1
    %p152 = por %p150, %p151
    %p154 = scmp.ne.s32.totalorder %s137, %s153
    %p155 = scmp.eq.s32.totalorder %s19, 0
    %p156 = por %p154, %p155
    %s157 = ssub.s32 %s13, %s20
    %p158 = scmp.eq.s32.totalorder %s157, 0
    %s160 = sadd.s32 %s159, 1
    %s161 = scalar_select %p158, %s159, %s160
    %p164 = pneg %p158
    %p165 = scmp.eq.s32.totalorder %s13, 1
    %p166 = por %p164, %p165
    %p167 = scmp.ne.s32.totalorder %s159, %s162
    %p168 = scmp.eq.s32.totalorder %s13, 0
    %p169 = por %p167, %p168
    %p170 = scmp.ne.s32.totalorder %s159, %s162
    %p171 = scmp.eq.s32.totalorder %s18, 1
    %p172 = por %p170, %p171
    %p173 = scmp.ne.s32.totalorder %s162, %s163
    %p174 = scmp.eq.s32.totalorder %s18, 0
    %p175 = por %p173, %p174
    %p176 = scmp.ne.s32.totalorder %s162, %s163
    %p177 = scmp.eq.s32.totalorder %s19, 1
    %p178 = por %p176, %p177
    %p180 = scmp.ne.s32.totalorder %s163, %s179
    %p181 = scmp.eq.s32.totalorder %s19, 0
    %p182 = por %p180, %p181
    %p183 = scmp.le.s32.totalorder 1, %s13
    %p184 = scmp.lt.s32.totalorder %s13, 3
    %p185 = pnand %p183, %p184
    %p186 = pneg %p185
    // Predicated region
    $region9: #{unet_innermost_forward.2} parent=5 // pred_check
      _
    $region10: #{unet_innermost_forward.2} parent=5 // pred_check_branch
      %188 = sbr.rel (%p185) target = $region12
    $region11: #{unet_innermost_forward.2} parent=5 // pred_region
      %s189 = ssub.s32 %s13, 1
      // Predicated region
      $region13: #{unet_innermost_forward.2} parent=11 // pred_check
        %p190 = pneg %p60
      $region14: #{unet_innermost_forward.2} parent=11 // pred_check_branch
        %192 = sbr.rel (%p190) target = $region16
      $region15: #{unet_innermost_forward.2} parent=11 // pred_region
        _
      $region16: #{unet_innermost_forward.2} parent=11 // pred_fallthru
        _
      // Predicated region
      $region17: #{unet_innermost_forward.2} parent=11 // pred_check
        %p193 = pneg %p81
      $region18: #{unet_innermost_forward.2} parent=11 // pred_check_branch
        %195 = sbr.rel (%p193) target = $region20
      $region19: #{unet_innermost_forward.2} parent=11 // pred_region
        _
      $region20: #{unet_innermost_forward.2} parent=11 // pred_fallthru
        _
      // Predicated region
      $region21: #{unet_innermost_forward.2} parent=11 // pred_check
        %p196 = pneg %p102
      $region22: #{unet_innermost_forward.2} parent=11 // pred_check_branch
        %198 = sbr.rel (%p196) target = $region24
      $region23: #{unet_innermost_forward.2} parent=11 // pred_region
        _
      $region24: #{unet_innermost_forward.2} parent=11 // pred_fallthru
        _
      // Predicated region
      $region25: #{unet_innermost_forward.2} parent=11 // pred_check
        %p199 = pneg %p123
      $region26: #{unet_innermost_forward.2} parent=11 // pred_check_branch
        %201 = sbr.rel (%p199) target = $region28
      $region27: #{unet_innermost_forward.2} parent=11 // pred_region
        _
      $region28: #{unet_innermost_forward.2} parent=11 // pred_fallthru
        _
    $region12: #{unet_innermost_forward.2} parent=5 // pred_fallthru
      _
    %p202 = scmp.lt.s32.totalorder %s13, 2
    // Predicated region
    $region29: #{unet_innermost_forward.2} parent=5 // pred_check
      %p203 = pneg %p202
    $region30: #{unet_innermost_forward.2} parent=5 // pred_check_branch
      %205 = sbr.rel (%p203) target = $region32
    $region31: #{unet_innermost_forward.2} parent=5 // pred_region
      // Predicated region
      $region33: #{unet_innermost_forward.2} parent=31 // pred_check
        %p206 = pneg %p33
      $region34: #{unet_innermost_forward.2} parent=31 // pred_check_branch
        %208 = sbr.rel (%p206) target = $region36
      $region35: #{unet_innermost_forward.2} parent=31 // pred_region
        %p209 = scmp.lt.s32.totalorder %s13, 1
        %s210 = scalar_select %p209, %s13, 1
        %s211 = smul.addr %s210, 18
        %s212 = smul.addr %s211, 4
        %s213 = scalar_lea.vmem %s0, %s212
      $region36: #{unet_innermost_forward.2} parent=31 // pred_fallthru
        _
    $region32: #{unet_innermost_forward.2} parent=5 // pred_fallthru
      _
    %p214 = scmp.le.s32.totalorder 1, %s13
    %p215 = scmp.lt.s32.totalorder %s13, 3
    %p216 = pnand %p214, %p215
    %p217 = pneg %p216
    // Predicated region
    $region37: #{unet_innermost_forward.2} parent=5 // pred_check
      _
    $region38: #{unet_innermost_forward.2} parent=5 // pred_check_branch
      %219 = sbr.rel (%p216) target = $region40
    $region39: #{unet_innermost_forward.2} parent=5 // pred_region
      %s220 = ssub.s32 %s13, 1
      %p221 = scmp.lt.s32.totalorder %s18, 1
      %s222 = scalar_select %p221, %s18, 1
      %s223 = smul.addr %s222, 18
      %s224 = smul.addr %s223, 4
      %s225 = scalar_lea.vmem %s0, %s224
      %p226 = pneg %p39
      %p227 = pneg %p36
      %p228 = pneg %p60
      %p229 = pneg %p57
      %p230 = pneg %p81
      %p231 = pneg %p78
      %p232 = pneg %p102
      %p233 = pneg %p99
      %p234 = pneg %p123
      %p235 = pneg %p120
      %p236 = pneg %p149
      %p237 = pneg %p146
      %p238 = scmp.lt.s32.totalorder %s18, 1
      %s239 = scalar_select %p238, %s18, 1
      %s240 = smul.addr %s239, 32
      %s241 = smul.addr %s240, 8
      %s242 = scalar_lea.vmem %s5, %s241
      %p243 = pneg %p175
      %p244 = pneg %p172
      %p245 = scmp.lt.s32.totalorder %s18, 1
      %s246 = scalar_select %p245, %s18, 1
      %s247 = smul.addr %s246, 2
      %s248 = scalar_lea.vmem %s6, %s247
      %p249 = scmp.lt.s32.totalorder %s18, 1
      %s250 = scalar_select %p249, %s18, 1
      %s251 = smul.addr %s250, 18
      %s252 = smul.addr %s251, 4
      %s253 = scalar_lea.vmem %s0, %s252
      %p254 = scmp.lt.s32.totalorder %s18, 1
      %s255 = scalar_select %p254, %s18, 1
      %s256 = smul.addr %s255, 32
      %s257 = smul.addr %s256, 8
      %s258 = scalar_lea.vmem %s5, %s257
      %p259 = scmp.lt.s32.totalorder %s18, 1
      %s260 = scalar_select %p259, %s18, 1
      %s261 = smul.addr %s260, 2
      %s262 = scalar_lea.vmem %s6, %s261
      %v264 = vld [vmem:[%s253] sm:$0xf]
      %v265 = vld [vmem:[%s253 + $0x4] sm:$0x1]
      %v266 = vld [vmem:[%s253 + $0x8] sm:$0xf]
      %v267 = vld [vmem:[%s253 + $0xc] sm:$0x1]
      %v268 = vld [vmem:[%s253 + $0x10] sm:$0xf]
      %v269 = vld [vmem:[%s253 + $0x14] sm:$0x1]
      %v270 = vld [vmem:[%s253 + $0x18] sm:$0xf]
      %v271 = vld [vmem:[%s253 + $0x1c] sm:$0x1]
      %v272 = vld [vmem:[%s253 + $0x20] sm:$0xf]
      %v273 = vld [vmem:[%s253 + $0x24] sm:$0x1]
      %v274 = vld [vmem:[%s253 + $0x28] sm:$0xf]
      %v275 = vld [vmem:[%s253 + $0x2c] sm:$0x1]
      %v276 = vld [vmem:[%s253 + $0x30] sm:$0xf]
      %v277 = vld [vmem:[%s253 + $0x34] sm:$0x1]
      %v278 = vld [vmem:[%s253 + $0x38] sm:$0xf]
      %v279 = vld [vmem:[%s253 + $0x3c] sm:$0x1]
      %v280 = vld [vmem:[%s253 + $0x40] sm:$0xf]
      %v281 = vld [vmem:[%s253 + $0x44] sm:$0x1]
      %v282 = vunpack.c.l.bf16 %v264
      %v283 = vunpack.c.l.bf16 %v265
      %v284 = vunpack.c.l.bf16 %v266
      %v285 = vunpack.c.l.bf16 %v267
      %v286 = vunpack.c.l.bf16 %v268
      %v287 = vunpack.c.l.bf16 %v269
      %v288 = vunpack.c.l.bf16 %v270
      %v289 = vunpack.c.l.bf16 %v271
      %v290 = vunpack.c.l.bf16 %v272
      %v291 = vunpack.c.l.bf16 %v273
      %v292 = vunpack.c.l.bf16 %v274
      %v293 = vunpack.c.l.bf16 %v275
      %v294 = vunpack.c.l.bf16 %v276
      %v295 = vunpack.c.l.bf16 %v277
      %v296 = vunpack.c.l.bf16 %v278
      %v297 = vunpack.c.l.bf16 %v279
      %v298 = vunpack.c.l.bf16 %v280
      %v299 = vunpack.c.l.bf16 %v281
      %vm300 = vcmp.ge.f32.partialorder %v282, 0.0
      %vm301 = vcmp.ge.f32.partialorder %v283, 0.0
      %vm302 = vcmp.ge.f32.partialorder %v284, 0.0
      %vm303 = vcmp.ge.f32.partialorder %v285, 0.0
      %vm304 = vcmp.ge.f32.partialorder %v286, 0.0
      %vm305 = vcmp.ge.f32.partialorder %v287, 0.0
      %vm306 = vcmp.ge.f32.partialorder %v288, 0.0
      %vm307 = vcmp.ge.f32.partialorder %v289, 0.0
      %vm308 = vcmp.ge.f32.partialorder %v290, 0.0
      %vm309 = vcmp.ge.f32.partialorder %v291, 0.0
      %vm310 = vcmp.ge.f32.partialorder %v292, 0.0
      %vm311 = vcmp.ge.f32.partialorder %v293, 0.0
      %vm312 = vcmp.ge.f32.partialorder %v294, 0.0
      %vm313 = vcmp.ge.f32.partialorder %v295, 0.0
      %vm314 = vcmp.ge.f32.partialorder %v296, 0.0
      %vm315 = vcmp.ge.f32.partialorder %v297, 0.0
      %vm316 = vcmp.ge.f32.partialorder %v298, 0.0
      %vm317 = vcmp.ge.f32.partialorder %v299, 0.0
      %v318 = vmul.f32 %v282, 0.2
      %v319 = vmul.f32 %v283, 0.2
      %v320 = vmul.f32 %v284, 0.2
      %v321 = vmul.f32 %v285, 0.2
      %v322 = vmul.f32 %v286, 0.2
      %v323 = vmul.f32 %v287, 0.2
      %v324 = vmul.f32 %v288, 0.2
      %v325 = vmul.f32 %v289, 0.2
      %v326 = vmul.f32 %v290, 0.2
      %v327 = vmul.f32 %v291, 0.2
      %v328 = vmul.f32 %v292, 0.2
      %v329 = vmul.f32 %v293, 0.2
      %v330 = vmul.f32 %v294, 0.2
      %v331 = vmul.f32 %v295, 0.2
      %v332 = vmul.f32 %v296, 0.2
      %v333 = vmul.f32 %v297, 0.2
      %v334 = vmul.f32 %v298, 0.2
      %v335 = vmul.f32 %v299, 0.2
      %v336 = vsel %vm300, %v282, %v318
      %v337 = vsel %vm301, %v283, %v319
      %v338 = vsel %vm302, %v284, %v320
      %v339 = vsel %vm303, %v285, %v321
      %v340 = vsel %vm304, %v286, %v322
      %v341 = vsel %vm305, %v287, %v323
      %v342 = vsel %vm306, %v288, %v324
      %v343 = vsel %vm307, %v289, %v325
      %v344 = vsel %vm308, %v290, %v326
      %v345 = vsel %vm309, %v291, %v327
      %v346 = vsel %vm310, %v292, %v328
      %v347 = vsel %vm311, %v293, %v329
      %v348 = vsel %vm312, %v294, %v330
      %v349 = vsel %vm313, %v295, %v331
      %v350 = vsel %vm314, %v296, %v332
      %v351 = vsel %vm315, %v297, %v333
      %v352 = vsel %vm316, %v298, %v334
      %v353 = vsel %vm317, %v299, %v335
      %v354 = vld [vmem:[%s2] sm:$0x1]
      %v356 = vlaneseq
      %v357 = vshrl.u32 %v356, 7
      %v358 = vsub.s32 0, %v357
      %v359 = vrot.slane %v354, %v358
      %v361 = vpack.c.bf16 %v338, %v336
      %v362 = vpack.c.bf16 %v342, %v340
      %v363 = vpack.c.bf16 %v346, %v344
      %v364 = vpack.c.bf16 %v350, %v348
      %v365 = vld [vmem:[%s1] sm:$0xf]
      %v366 = vld [vmem:[%s1 + $0x4] sm:$0xf]
      %v369 = vunpack.c.l.b16 %v365
      %v370 = vunpack.c.l.b16 %v366
      %v371 = vpack.c.b16 %v370, %v369
      %vm373 = vcmask 130048
      %v375 = vsel %vm373, %v361, 0
      %v378 = vsel %vm373, %v362, 0
      %v381 = vsel %vm373, %v363, 0
      %v384 = vsel %vm373, %v364, 0
      %386 = vmatprep.subr.bf16.mxu0 0
      %387 = vmatpush1.bf16.msra.mxu0 %v371
      %388 = vmatprep.subr.bf16.mxu0 0
      %389 = vmatpush1.bf16.msra.mxu0 0
      %390 = vmatprep.subr.bf16.mxu0 0
      %391 = vmatpush1.bf16.msra.mxu0 0
      %392 = vmatprep.subr.bf16.mxu0 0
      %393 = vmatpush1.bf16.msra.mxu0 0
      %394 = vmatprep.subr.bf16.mxu0 0
      %395 = vmatpush1.bf16.msra.mxu0 0
      %396 = vmatprep.subr.bf16.mxu0 0
      %397 = vmatpush1.bf16.msra.mxu0 0
      %398 = vmatprep.subr.bf16.mxu0 0
      %399 = vmatpush1.bf16.msra.mxu0 0
      %400 = vmatprep.subr.bf16.mxu0 0
      %401 = vmatpush1.bf16.msra.mxu0 0
      %402 = vmatprep.subr.bf16.mxu0 0
      %403 = vmatpush1.bf16.msra.mxu0 0
      %404 = vmatprep.subr.bf16.mxu0 0
      %405 = vmatpush1.bf16.msra.mxu0 0
      %406 = vmatprep.subr.bf16.mxu0 0
      %407 = vmatpush1.bf16.msra.mxu0 0
      %408 = vmatprep.subr.bf16.mxu0 0
      %409 = vmatpush1.bf16.msra.mxu0 0
      %410 = vmatprep.subr.bf16.mxu0 0
      %411 = vmatpush1.bf16.msra.mxu0 0
      %412 = vmatprep.subr.bf16.mxu0 0
      %413 = vmatpush1.bf16.msra.mxu0 0
      %414 = vmatprep.subr.bf16.mxu0 0
      %415 = vmatpush1.bf16.msra.mxu0 0
      %416 = vmatprep.subr.bf16.mxu0 0
      %417 = vmatpush1.bf16.msra.mxu0 0
      %418 = vmatprep.mubr.bf16.mxu0 0
      %419 = vmatmul.mubr.bf16.gmra.mrb[0].mxu0 %v375
      %v420 = vpop.f32.mrb[0].mxu0
      %v421 = vadd.f32 0.0, %v420
      %v422 = vpop.f32.mrb[0].mxu0
      %v423 = vpop.f32.mrb[0].mxu0
      %v424 = vadd.f32 0.0, %v423
      %v425 = vpop.f32.mrb[0].mxu0
      %426 = vmatprep.mubr.bf16.mxu0 0
      %427 = vmatmul.mubr.bf16.gmra.mrb[0].mxu0 %v378
      %v428 = vpop.f32.mrb[0].mxu0
      %v429 = vadd.f32 0.0, %v428
      %v430 = vpop.f32.mrb[0].mxu0
      %v431 = vpop.f32.mrb[0].mxu0
      %v432 = vadd.f32 0.0, %v431
      %v433 = vpop.f32.mrb[0].mxu0
      %434 = vmatprep.mubr.bf16.mxu0 0
      %435 = vmatmul.mubr.bf16.gmra.mrb[0].mxu0 %v381
      %v436 = vpop.f32.mrb[0].mxu0
      %v437 = vadd.f32 0.0, %v436
      %v438 = vpop.f32.mrb[0].mxu0
      %v439 = vpop.f32.mrb[0].mxu0
      %v440 = vadd.f32 0.0, %v439
      %v441 = vpop.f32.mrb[0].mxu0
      %442 = vmatprep.mubr.bf16.mxu0 0
      %443 = vmatmul.mubr.bf16.gmra.mrb[0].mxu0 %v384
      %v444 = vpop.f32.mrb[0].mxu0
      %v445 = vadd.f32 0.0, %v444
      %v446 = vpop.f32.mrb[0].mxu0
      %v447 = vpop.f32.mrb[0].mxu0
      %v448 = vadd.f32 0.0, %v447
      %v449 = vpop.f32.mrb[0].mxu0
      %450 = vdwg.mxu0
      %v451 = vadd.f32 %v359, %v421
      %v452 = vadd.f32 %v359, %v424
      %v453 = vadd.f32 %v359, %v429
      %v454 = vadd.f32 %v359, %v432
      %v455 = vadd.f32 %v359, %v437
      %v456 = vadd.f32 %v359, %v440
      %v457 = vadd.f32 %v359, %v445
      %v458 = vadd.f32 %v359, %v448
      %vm475 = vcmask 1046528
      %v476 = vrot.slane %v336, 1
      %v477 = vrot.slane %v337, 1
      %v478 = vsel %vm475, %v476, %v477
      %v479 = vrot.slane %v338, 1
      %v480 = vrot.slane %v339, 1
      %v481 = vsel %vm475, %v479, %v480
      %v482 = vrot.slane %v340, 1
      %v483 = vrot.slane %v341, 1
      %v484 = vsel %vm475, %v482, %v483
      %v485 = vrot.slane %v342, 1
      %v486 = vrot.slane %v343, 1
      %v487 = vsel %vm475, %v485, %v486
      %v488 = vrot.slane %v344, 1
      %v489 = vrot.slane %v345, 1
      %v490 = vsel %vm475, %v488, %v489
      %v491 = vrot.slane %v346, 1
      %v492 = vrot.slane %v347, 1
      %v493 = vsel %vm475, %v491, %v492
      %v494 = vrot.slane %v348, 1
      %v495 = vrot.slane %v349, 1
      %v496 = vsel %vm475, %v494, %v495
      %v497 = vrot.slane %v350, 1
      %v498 = vrot.slane %v351, 1
      %v499 = vsel %vm475, %v497, %v498
      %v508 = vpack.c.bf16 %v481, %v478
      %v509 = vpack.c.bf16 %v487, %v484
      %v510 = vpack.c.bf16 %v493, %v490
      %v511 = vpack.c.bf16 %v499, %v496
      %s512 = scalar_lea.vmem %s1, 8
      %v513 = vld [vmem:[%s512] sm:$0xf]
      %v514 = vld [vmem:[%s512 + $0x4] sm:$0xf]
      %v517 = vunpack.c.l.b16 %v513
      %v518 = vunpack.c.l.b16 %v514
      %v519 = vpack.c.b16 %v518, %v517
      %v522 = vsel %vm373, %v508, 0
      %v525 = vsel %vm373, %v509, 0
      %v528 = vsel %vm373, %v510, 0
      %v531 = vsel %vm373, %v511, 0
      %533 = vmatprep.subr.bf16.mxu0 0
      %534 = vmatpush1.bf16.msra.mxu0 %v519
      %535 = vmatprep.subr.bf16.mxu0 0
      %536 = vmatpush1.bf16.msra.mxu0 0
      %537 = vmatprep.subr.bf16.mxu0 0
      %538 = vmatpush1.bf16.msra.mxu0 0
      %539 = vmatprep.subr.bf16.mxu0 0
      %540 = vmatpush1.bf16.msra.mxu0 0
      %541 = vmatprep.subr.bf16.mxu0 0
      %542 = vmatpush1.bf16.msra.mxu0 0
      %543 = vmatprep.subr.bf16.mxu0 0
      %544 = vmatpush1.bf16.msra.mxu0 0
      %545 = vmatprep.subr.bf16.mxu0 0
      %546 = vmatpush1.bf16.msra.mxu0 0
      %547 = vmatprep.subr.bf16.mxu0 0
      %548 = vmatpush1.bf16.msra.mxu0 0
      %549 = vmatprep.subr.bf16.mxu0 0
      %550 = vmatpush1.bf16.msra.mxu0 0
      %551 = vmatprep.subr.bf16.mxu0 0
      %552 = vmatpush1.bf16.msra.mxu0 0
      %553 = vmatprep.subr.bf16.mxu0 0
      %554 = vmatpush1.bf16.msra.mxu0 0
      %555 = vmatprep.subr.bf16.mxu0 0
      %556 = vmatpush1.bf16.msra.mxu0 0
      %557 = vmatprep.subr.bf16.mxu0 0
      %558 = vmatpush1.bf16.msra.mxu0 0
      %559 = vmatprep.subr.bf16.mxu0 0
      %560 = vmatpush1.bf16.msra.mxu0 0
      %561 = vmatprep.subr.bf16.mxu0 0
      %562 = vmatpush1.bf16.msra.mxu0 0
      %563 = vmatprep.subr.bf16.mxu0 0
      %564 = vmatpush1.bf16.msra.mxu0 0
      %565 = vmatprep.mubr.bf16.mxu0 0
      %566 = vmatmul.mubr.bf16.gmra.mrb[0].mxu0 %v522
      %v567 = vpop.f32.mrb[0].mxu0
      %v568 = vadd.f32 0.0, %v567
      %v569 = vpop.f32.mrb[0].mxu0
      %v570 = vpop.f32.mrb[0].mxu0
      %v571 = vadd.f32 0.0, %v570
      %v572 = vpop.f32.mrb[0].mxu0
      %573 = vmatprep.mubr.bf16.mxu0 0
      %574 = vmatmul.mubr.bf16.gmra.mrb[0].mxu0 %v525
      %v575 = vpop.f32.mrb[0].mxu0
      %v576 = vadd.f32 0.0, %v575
      %v577 = vpop.f32.mrb[0].mxu0
      %v578 = vpop.f32.mrb[0].mxu0
      %v579 = vadd.f32 0.0, %v578
      %v580 = vpop.f32.mrb[0].mxu0
      %581 = vmatprep.mubr.bf16.mxu0 0
      %582 = vmatmul.mubr.bf16.gmra.mrb[0].mxu0 %v528
      %v583 = vpop.f32.mrb[0].mxu0
      %v584 = vadd.f32 0.0, %v583
      %v585 = vpop.f32.mrb[0].mxu0
      %v586 = vpop.f32.mrb[0].mxu0
      %v587 = vadd.f32 0.0, %v586
      %v588 = vpop.f32.mrb[0].mxu0
      %589 = vmatprep.mubr.bf16.mxu0 0
      %590 = vmatmul.mubr.bf16.gmra.mrb[0].mxu0 %v531
      %v591 = vpop.f32.mrb[0].mxu0
      %v592 = vadd.f32 0.0, %v591
      %v593 = vpop.f32.mrb[0].mxu0
      %v594 = vpop.f32.mrb[0].mxu0
      %v595 = vadd.f32 0.0, %v594
      %v596 = vpop.f32.mrb[0].mxu0
      %597 = vdwg.mxu0
      %v598 = vadd.f32 %v451, %v568
      %v599 = vadd.f32 %v452, %v571
      %v600 = vadd.f32 %v453, %v576
      %v601 = vadd.f32 %v454, %v579
      %v602 = vadd.f32 %v455, %v584
      %v603 = vadd.f32 %v456, %v587
      %v604 = vadd.f32 %v457, %v592
      %v605 = vadd.f32 %v458, %v595
      %v606 = vpack.c.bf16 %v340, %v338
      %v607 = vpack.c.bf16 %v344, %v342
      %v608 = vpack.c.bf16 %v348, %v346
      %v609 = vpack.c.bf16 %v352, %v350
      %s610 = scalar_lea.vmem %s1, 16
      %v611 = vld [vmem:[%s610] sm:$0xf]
      %v612 = vld [vmem:[%s610 + $0x4] sm:$0xf]
      %v615 = vunpack.c.l.b16 %v611
      %v616 = vunpack.c.l.b16 %v612
      %v617 = vpack.c.b16 %v616, %v615
      %v620 = vsel %vm373, %v606, 0
      %v623 = vsel %vm373, %v607, 0
      %v626 = vsel %vm373, %v608, 0
      %v629 = vsel %vm373, %v609, 0
      %631 = vmatprep.subr.bf16.mxu0 0
      %632 = vmatpush1.bf16.msra.mxu0 %v617
      %633 = vmatprep.subr.bf16.mxu0 0
      %634 = vmatpush1.bf16.msra.mxu0 0
      %635 = vmatprep.subr.bf16.mxu0 0
      %636 = vmatpush1.bf16.msra.mxu0 0
      %637 = vmatprep.subr.bf16.mxu0 0
      %638 = vmatpush1.bf16.msra.mxu0 0
      %639 = vmatprep.subr.bf16.mxu0 0
      %640 = vmatpush1.bf16.msra.mxu0 0
      %641 = vmatprep.subr.bf16.mxu0 0
      %642 = vmatpush1.bf16.msra.mxu0 0
      %643 = vmatprep.subr.bf16.mxu0 0
      %644 = vmatpush1.bf16.msra.mxu0 0
      %645 = vmatprep.subr.bf16.mxu0 0
      %646 = vmatpush1.bf16.msra.mxu0 0
      %647 = vmatprep.subr.bf16.mxu0 0
      %648 = vmatpush1.bf16.msra.mxu0 0
      %649 = vmatprep.subr.bf16.mxu0 0
      %650 = vmatpush1.bf16.msra.mxu0 0
      %651 = vmatprep.subr.bf16.mxu0 0
      %652 = vmatpush1.bf16.msra.mxu0 0
      %653 = vmatprep.subr.bf16.mxu0 0
      %654 = vmatpush1.bf16.msra.mxu0 0
      %655 = vmatprep.subr.bf16.mxu0 0
      %656 = vmatpush1.bf16.msra.mxu0 0
      %657 = vmatprep.subr.bf16.mxu0 0
      %658 = vmatpush1.bf16.msra.mxu0 0
      %659 = vmatprep.subr.bf16.mxu0 0
      %660 = vmatpush1.bf16.msra.mxu0 0
      %661 = vmatprep.subr.bf16.mxu0 0
      %662 = vmatpush1.bf16.msra.mxu0 0
      %663 = vmatprep.mubr.bf16.mxu0 0
      %664 = vmatmul.mubr.bf16.gmra.mrb[0].mxu0 %v620
      %v665 = vpop.f32.mrb[0].mxu0
      %v666 = vadd.f32 0.0, %v665
      %v667 = vpop.f32.mrb[0].mxu0
      %v668 = vpop.f32.mrb[0].mxu0
      %v669 = vadd.f32 0.0, %v668
      %v670 = vpop.f32.mrb[0].mxu0
      %671 = vmatprep.mubr.bf16.mxu0 0
      %672 = vmatmul.mubr.bf16.gmra.mrb[0].mxu0 %v623
      %v673 = vpop.f32.mrb[0].mxu0
      %v674 = vadd.f32 0.0, %v673
      %v675 = vpop.f32.mrb[0].mxu0
      %v676 = vpop.f32.mrb[0].mxu0
      %v677 = vadd.f32 0.0, %v676
      %v678 = vpop.f32.mrb[0].mxu0
      %679 = vmatprep.mubr.bf16.mxu0 0
      %680 = vmatmul.mubr.bf16.gmra.mrb[0].mxu0 %v626
      %v681 = vpop.f32.mrb[0].mxu0
      %v682 = vadd.f32 0.0, %v681
      %v683 = vpop.f32.mrb[0].mxu0
      %v684 = vpop.f32.mrb[0].mxu0
      %v685 = vadd.f32 0.0, %v684
      %v686 = vpop.f32.mrb[0].mxu0
      %687 = vmatprep.mubr.bf16.mxu0 0
      %688 = vmatmul.mubr.bf16.gmra.mrb[0].mxu0 %v629
      %v689 = vpop.f32.mrb[0].mxu0
      %v690 = vadd.f32 0.0, %v689
      %v691 = vpop.f32.mrb[0].mxu0
      %v692 = vpop.f32.mrb[0].mxu0
      %v693 = vadd.f32 0.0, %v692
      %v694 = vpop.f32.mrb[0].mxu0
      %695 = vdwg.mxu0
      %v696 = vadd.f32 %v598, %v666
      %v697 = vadd.f32 %v599, %v669
      %v698 = vadd.f32 %v600, %v674
      %v699 = vadd.f32 %v601, %v677
      %v700 = vadd.f32 %v602, %v682
      %v701 = vadd.f32 %v603, %v685
      %v702 = vadd.f32 %v604, %v690
      %v703 = vadd.f32 %v605, %v693
      %v706 = vrot.slane %v352, 1
      %v707 = vrot.slane %v353, 1
      %v708 = vsel %vm475, %v706, %v707
      %v710 = vpack.c.bf16 %v484, %v481
      %v711 = vpack.c.bf16 %v490, %v487
      %v712 = vpack.c.bf16 %v496, %v493
      %v713 = vpack.c.bf16 %v708, %v499
      %s714 = scalar_lea.vmem %s1, 24
      %v715 = vld [vmem:[%s714] sm:$0xf]
      %v716 = vld [vmem:[%s714 + $0x4] sm:$0xf]
      %v719 = vunpack.c.l.b16 %v715
      %v720 = vunpack.c.l.b16 %v716
      %v721 = vpack.c.b16 %v720, %v719
      %v724 = vsel %vm373, %v710, 0
      %v727 = vsel %vm373, %v711, 0
      %v730 = vsel %vm373, %v712, 0
      %v733 = vsel %vm373, %v713, 0
      %735 = vmatprep.subr.bf16.mxu0 0
      %736 = vmatpush1.bf16.msra.mxu0 %v721
      %737 = vmatprep.subr.bf16.mxu0 0
      %738 = vmatpush1.bf16.msra.mxu0 0
      %739 = vmatprep.subr.bf16.mxu0 0
      %740 = vmatpush1.bf16.msra.mxu0 0
      %741 = vmatprep.subr.bf16.mxu0 0
      %742 = vmatpush1.bf16.msra.mxu0 0
      %743 = vmatprep.subr.bf16.mxu0 0
      %744 = vmatpush1.bf16.msra.mxu0 0
      %745 = vmatprep.subr.bf16.mxu0 0
      %746 = vmatpush1.bf16.msra.mxu0 0
      %747 = vmatprep.subr.bf16.mxu0 0
      %748 = vmatpush1.bf16.msra.mxu0 0
      %749 = vmatprep.subr.bf16.mxu0 0
      %750 = vmatpush1.bf16.msra.mxu0 0
      %751 = vmatprep.subr.bf16.mxu0 0
      %752 = vmatpush1.bf16.msra.mxu0 0
      %753 = vmatprep.subr.bf16.mxu0 0
      %754 = vmatpush1.bf16.msra.mxu0 0
      %755 = vmatprep.subr.bf16.mxu0 0
      %756 = vmatpush1.bf16.msra.mxu0 0
      %757 = vmatprep.subr.bf16.mxu0 0
      %758 = vmatpush1.bf16.msra.mxu0 0
      %759 = vmatprep.subr.bf16.mxu0 0
      %760 = vmatpush1.bf16.msra.mxu0 0
      %761 = vmatprep.subr.bf16.mxu0 0
      %762 = vmatpush1.bf16.msra.mxu0 0
      %763 = vmatprep.subr.bf16.mxu0 0
      %764 = vmatpush1.bf16.msra.mxu0 0
      %765 = vmatprep.subr.bf16.mxu0 0
      %766 = vmatpush1.bf16.msra.mxu0 0
      %767 = vmatprep.mubr.bf16.mxu0 0
      %768 = vmatmul.mubr.bf16.gmra.mrb[0].mxu0 %v724
      %v769 = vpop.f32.mrb[0].mxu0
      %v770 = vadd.f32 0.0, %v769
      %v771 = vpop.f32.mrb[0].mxu0
      %v772 = vpop.f32.mrb[0].mxu0
      %v773 = vadd.f32 0.0, %v772
      %v774 = vpop.f32.mrb[0].mxu0
      %775 = vmatprep.mubr.bf16.mxu0 0
      %776 = vmatmul.mubr.bf16.gmra.mrb[0].mxu0 %v727
      %v777 = vpop.f32.mrb[0].mxu0
      %v778 = vadd.f32 0.0, %v777
      %v779 = vpop.f32.mrb[0].mxu0
      %v780 = vpop.f32.mrb[0].mxu0
      %v781 = vadd.f32 0.0, %v780
      %v782 = vpop.f32.mrb[0].mxu0
      %783 = vmatprep.mubr.bf16.mxu0 0
      %784 = vmatmul.mubr.bf16.gmra.mrb[0].mxu0 %v730
      %v785 = vpop.f32.mrb[0].mxu0
      %v786 = vadd.f32 0.0, %v785
      %v787 = vpop.f32.mrb[0].mxu0
      %v788 = vpop.f32.mrb[0].mxu0
      %v789 = vadd.f32 0.0, %v788
      %v790 = vpop.f32.mrb[0].mxu0
      %791 = vmatprep.mubr.bf16.mxu0 0
      %792 = vmatmul.mubr.bf16.gmra.mrb[0].mxu0 %v733
      %v793 = vpop.f32.mrb[0].mxu0
      %v794 = vadd.f32 0.0, %v793
      %v795 = vpop.f32.mrb[0].mxu0
      %v796 = vpop.f32.mrb[0].mxu0
      %v797 = vadd.f32 0.0, %v796
      %v798 = vpop.f32.mrb[0].mxu0
      %799 = vdwg.mxu0
      %v800 = vadd.f32 %v696, %v770
      %v801 = vadd.f32 %v697, %v773
      %v802 = vadd.f32 %v698, %v778
      %v803 = vadd.f32 %v699, %v781
      %v804 = vadd.f32 %v700, %v786
      %v805 = vadd.f32 %v701, %v789
      %v806 = vadd.f32 %v702, %v794
      %v807 = vadd.f32 %v703, %v797
      %v808 = vmax.f32 %v800, 0.0
      %v809 = vmax.f32 %v801, 0.0
      %v810 = vmax.f32 %v802, 0.0
      %v811 = vmax.f32 %v803, 0.0
      %v812 = vmax.f32 %v804, 0.0
      %v813 = vmax.f32 %v805, 0.0
      %v814 = vmax.f32 %v806, 0.0
      %v815 = vmax.f32 %v807, 0.0
      %816 = vst [vmem:[#allocation2] sm:$0xff] 0.0
      %817 = vst [vmem:[#allocation2 + $0x8] sm:$0x3] 0.0
      %818 = vst [vmem:[#allocation2 + $0x10] sm:$0xff] 0.0
      %819 = vst [vmem:[#allocation2 + $0x18] sm:$0x3] 0.0
      %820 = vst [vmem:[#allocation2 + $0x20] sm:$0xff] 0.0
      %821 = vst [vmem:[#allocation2 + $0x28] sm:$0x3] 0.0
      %822 = vst [vmem:[#allocation2 + $0x30] sm:$0xff] 0.0
      %823 = vst [vmem:[#allocation2 + $0x38] sm:$0x3] 0.0
      %824 = vst [vmem:[#allocation2 + $0x40] sm:$0xff] 0.0
      %825 = vst [vmem:[#allocation2 + $0x48] sm:$0x3] 0.0
      %826 = vst [vmem:[#allocation2 + $0x50] sm:$0xff] 0.0
      %827 = vst [vmem:[#allocation2 + $0x58] sm:$0x3] 0.0
      %828 = vst [vmem:[#allocation2 + $0x60] sm:$0xff] 0.0
      %829 = vst [vmem:[#allocation2 + $0x68] sm:$0x3] 0.0
      %830 = vst [vmem:[#allocation2 + $0x70] sm:$0xff] 0.0
      %831 = vst [vmem:[#allocation2 + $0x78] sm:$0x3] 0.0
      %832 = vst [vmem:[#allocation2 + $0x80] sm:$0xff] 0.0
      %833 = vst [vmem:[#allocation2 + $0x88] sm:$0x3] 0.0
      %834 = vst [vmem:[#allocation2 + $0x90] sm:$0xff] 0.0
      %835 = vst [vmem:[#allocation2 + $0x98] sm:$0x3] 0.0
      %s836 = scalar_lea.vmem [#allocation2], 16
      %837 = vst [vmem:[%s836 + $0x1] sm:$0xff] %v808
      %838 = vst [vmem:[%s836 + $0x11] sm:$0xff] %v809
      %839 = vst [vmem:[%s836 + $0x21] sm:$0xff] %v810
      %840 = vst [vmem:[%s836 + $0x31] sm:$0xff] %v811
      %841 = vst [vmem:[%s836 + $0x41] sm:$0xff] %v812
      %842 = vst [vmem:[%s836 + $0x51] sm:$0xff] %v813
      %843 = vst [vmem:[%s836 + $0x61] sm:$0xff] %v814
      %844 = vst [vmem:[%s836 + $0x71] sm:$0xff] %v815
      %v845 = vld [vmem:[%s4] sm:$0x1]
      %v847 = vlaneseq
      %v848 = vshrl.u32 %v847, 7
      %v849 = vsub.s32 0, %v848
      %v850 = vrot.slane %v845, %v849
      %v852 = vld [vmem:[%s836 + $0x1] sm:$0xff]
      %v853 = vld [vmem:[%s836 + $0x11] sm:$0xff]
      %v854 = vld [vmem:[%s836 + $0x21] sm:$0xff]
      %v855 = vld [vmem:[%s836 + $0x31] sm:$0xff]
      %v856 = vld [vmem:[%s836 + $0x41] sm:$0xff]
      %v857 = vld [vmem:[%s836 + $0x51] sm:$0xff]
      %v858 = vld [vmem:[%s836 + $0x61] sm:$0xff]
      %v859 = vld [vmem:[%s836 + $0x71] sm:$0xff]
      %v860 = vpack.c.bf16 %v853, %v852
      %v861 = vpack.c.bf16 %v855, %v854
      %v862 = vpack.c.bf16 %v857, %v856
      %v863 = vpack.c.bf16 %v859, %v858
      %s864 = scalar_lea.vmem %s3, 320
      %v865 = vld [vmem:[%s864] sm:$0xf]
      %v866 = vld [vmem:[%s864 + $0x4] sm:$0xf]
      %v867 = vld [vmem:[%s864 + $0x8] sm:$0xf]
      %v868 = vld [vmem:[%s864 + $0xc] sm:$0xf]
      %v869 = vld [vmem:[%s864 + $0x10] sm:$0xf]
      %v870 = vld [vmem:[%s864 + $0x14] sm:$0xf]
      %v871 = vld [vmem:[%s864 + $0x18] sm:$0xf]
      %v872 = vld [vmem:[%s864 + $0x1c] sm:$0xf]
      %v873 = vld [vmem:[%s864 + $0x20] sm:$0xf]
      %v874 = vld [vmem:[%s864 + $0x24] sm:$0xf]
      %v875 = vld [vmem:[%s864 + $0x28] sm:$0xf]
      %v876 = vld [vmem:[%s864 + $0x2c] sm:$0xf]
      %v877 = vld [vmem:[%s864 + $0x30] sm:$0xf]
      %v878 = vld [vmem:[%s864 + $0x34] sm:$0xf]
      %v879 = vld [vmem:[%s864 + $0x38] sm:$0xf]
      %v880 = vld [vmem:[%s864 + $0x3c] sm:$0xf]
      %v897 = vunpack.c.l.b16 %v865
      %v898 = vunpack.c.l.b16 %v866
      %v899 = vunpack.c.l.b16 %v867
      %v900 = vunpack.c.l.b16 %v868
      %v901 = vunpack.c.l.b16 %v869
      %v902 = vunpack.c.l.b16 %v870
      %v903 = vunpack.c.l.b16 %v871
      %v904 = vunpack.c.l.b16 %v872
      %v905 = vunpack.c.l.b16 %v873
      %v906 = vunpack.c.l.b16 %v874
      %v907 = vunpack.c.l.b16 %v875
      %v908 = vunpack.c.l.b16 %v876
      %v909 = vunpack.c.l.b16 %v877
      %v910 = vunpack.c.l.b16 %v878
      %v911 = vunpack.c.l.b16 %v879
      %v912 = vunpack.c.l.b16 %v880
      %v913 = vpack.c.b16 %v898, %v897
      %v914 = vpack.c.b16 %v900, %v899
      %v915 = vpack.c.b16 %v902, %v901
      %v916 = vpack.c.b16 %v904, %v903
      %v917 = vpack.c.b16 %v906, %v905
      %v918 = vpack.c.b16 %v908, %v907
      %v919 = vpack.c.b16 %v910, %v909
      %v920 = vpack.c.b16 %v912, %v911
      %929 = vmatprep.subr.bf16.mxu0 0
      %930 = vmatpush1.bf16.msra.mxu0 %v913
      %931 = vmatprep.subr.bf16.mxu0 0
      %932 = vmatpush1.bf16.msra.mxu0 %v914
      %933 = vmatprep.subr.bf16.mxu0 0
      %934 = vmatpush1.bf16.msra.mxu0 %v915
      %935 = vmatprep.subr.bf16.mxu0 0
      %936 = vmatpush1.bf16.msra.mxu0 %v916
      %937 = vmatprep.subr.bf16.mxu0 0
      %938 = vmatpush1.bf16.msra.mxu0 %v917
      %939 = vmatprep.subr.bf16.mxu0 0
      %940 = vmatpush1.bf16.msra.mxu0 %v918
      %941 = vmatprep.subr.bf16.mxu0 0
      %942 = vmatpush1.bf16.msra.mxu0 %v919
      %943 = vmatprep.subr.bf16.mxu0 0
      %944 = vmatpush1.bf16.msra.mxu0 %v920
      %945 = vmatprep.subr.bf16.mxu0 0
      %946 = vmatpush1.bf16.msra.mxu0 0
      %947 = vmatprep.subr.bf16.mxu0 0
      %948 = vmatpush1.bf16.msra.mxu0 0
      %949 = vmatprep.subr.bf16.mxu0 0
      %950 = vmatpush1.bf16.msra.mxu0 0
      %951 = vmatprep.subr.bf16.mxu0 0
      %952 = vmatpush1.bf16.msra.mxu0 0
      %953 = vmatprep.subr.bf16.mxu0 0
      %954 = vmatpush1.bf16.msra.mxu0 0
      %955 = vmatprep.subr.bf16.mxu0 0
      %956 = vmatpush1.bf16.msra.mxu0 0
      %957 = vmatprep.subr.bf16.mxu0 0
      %958 = vmatpush1.bf16.msra.mxu0 0
      %959 = vmatprep.subr.bf16.mxu0 0
      %960 = vmatpush1.bf16.msra.mxu0 0
      %961 = vmatprep.mubr.bf16.mxu0 0
      %962 = vmatmul.mubr.bf16.gmra.mrb[0].mxu0 %v860
      %v963 = vpop.f32.mrb[0].mxu0
      %v964 = vadd.f32 0.0, %v963
      %v965 = vpop.f32.mrb[0].mxu0
      %v966 = vpop.f32.mrb[0].mxu0
      %v967 = vadd.f32 0.0, %v966
      %v968 = vpop.f32.mrb[0].mxu0
      %969 = vmatprep.mubr.bf16.mxu0 0
      %970 = vmatmul.mubr.bf16.gmra.mrb[0].mxu0 %v861
      %v971 = vpop.f32.mrb[0].mxu0
      %v972 = vadd.f32 0.0, %v971
      %v973 = vpop.f32.mrb[0].mxu0
      %v974 = vpop.f32.mrb[0].mxu0
      %v975 = vadd.f32 0.0, %v974
      %v976 = vpop.f32.mrb[0].mxu0
      %977 = vmatprep.mubr.bf16.mxu0 0
      %978 = vmatmul.mubr.bf16.gmra.mrb[0].mxu0 %v862
      %v979 = vpop.f32.mrb[0].mxu0
      %v980 = vadd.f32 0.0, %v979
      %v981 = vpop.f32.mrb[0].mxu0
      %v982 = vpop.f32.mrb[0].mxu0
      %v983 = vadd.f32 0.0, %v982
      %v984 = vpop.f32.mrb[0].mxu0
      %985 = vmatprep.mubr.bf16.mxu0 0
      %986 = vmatmul.mubr.bf16.gmra.mrb[0].mxu0 %v863
      %v987 = vpop.f32.mrb[0].mxu0
      %v988 = vadd.f32 0.0, %v987
      %v989 = vpop.f32.mrb[0].mxu0
      %v990 = vpop.f32.mrb[0].mxu0
      %v991 = vadd.f32 0.0, %v990
      %v992 = vpop.f32.mrb[0].mxu0
      %993 = vdwg.mxu0
      %v994 = vadd.f32 %v850, %v964
      %v995 = vadd.f32 %v850, %v967
      %v996 = vadd.f32 %v850, %v972
      %v997 = vadd.f32 %v850, %v975
      %v998 = vadd.f32 %v850, %v980
      %v999 = vadd.f32 %v850, %v983
      %v1000 = vadd.f32 %v850, %v988
      %v1001 = vadd.f32 %v850, %v991
      %v1002 = vld [vmem:[%s836] sm:$0xff]
      %v1003 = vld [vmem:[%s836 + $0x10] sm:$0xff]
      %v1004 = vld [vmem:[%s836 + $0x20] sm:$0xff]
      %v1005 = vld [vmem:[%s836 + $0x30] sm:$0xff]
      %v1006 = vld [vmem:[%s836 + $0x40] sm:$0xff]
      %v1007 = vld [vmem:[%s836 + $0x50] sm:$0xff]
      %v1008 = vld [vmem:[%s836 + $0x60] sm:$0xff]
      %v1009 = vld [vmem:[%s836 + $0x70] sm:$0xff]
      %v1010 = vpack.c.bf16 %v1003, %v1002
      %v1011 = vpack.c.bf16 %v1005, %v1004
      %v1012 = vpack.c.bf16 %v1007, %v1006
      %v1013 = vpack.c.bf16 %v1009, %v1008
      %s1014 = scalar_lea.vmem %s3, 448
      %v1015 = vld [vmem:[%s1014] sm:$0xf]
      %v1016 = vld [vmem:[%s1014 + $0x4] sm:$0xf]
      %v1017 = vld [vmem:[%s1014 + $0x8] sm:$0xf]
      %v1018 = vld [vmem:[%s1014 + $0xc] sm:$0xf]
      %v1019 = vld [vmem:[%s1014 + $0x10] sm:$0xf]
      %v1020 = vld [vmem:[%s1014 + $0x14] sm:$0xf]
      %v1021 = vld [vmem:[%s1014 + $0x18] sm:$0xf]
      %v1022 = vld [vmem:[%s1014 + $0x1c] sm:$0xf]
      %v1023 = vld [vmem:[%s1014 + $0x20] sm:$0xf]
      %v1024 = vld [vmem:[%s1014 + $0x24] sm:$0xf]
      %v1025 = vld [vmem:[%s1014 + $0x28] sm:$0xf]
      %v1026 = vld [vmem:[%s1014 + $0x2c] sm:$0xf]
      %v1027 = vld [vmem:[%s1014 + $0x30] sm:$0xf]
      %v1028 = vld [vmem:[%s1014 + $0x34] sm:$0xf]
      %v1029 = vld [vmem:[%s1014 + $0x38] sm:$0xf]
      %v1030 = vld [vmem:[%s1014 + $0x3c] sm:$0xf]
      %v1047 = vunpack.c.l.b16 %v1015
      %v1048 = vunpack.c.l.b16 %v1016
      %v1049 = vunpack.c.l.b16 %v1017
      %v1050 = vunpack.c.l.b16 %v1018
      %v1051 = vunpack.c.l.b16 %v1019
      %v1052 = vunpack.c.l.b16 %v1020
      %v1053 = vunpack.c.l.b16 %v1021
      %v1054 = vunpack.c.l.b16 %v1022
      %v1055 = vunpack.c.l.b16 %v1023
      %v1056 = vunpack.c.l.b16 %v1024
      %v1057 = vunpack.c.l.b16 %v1025
      %v1058 = vunpack.c.l.b16 %v1026
      %v1059 = vunpack.c.l.b16 %v1027
      %v1060 = vunpack.c.l.b16 %v1028
      %v1061 = vunpack.c.l.b16 %v1029
      %v1062 = vunpack.c.l.b16 %v1030
      %v1063 = vpack.c.b16 %v1048, %v1047
      %v1064 = vpack.c.b16 %v1050, %v1049
      %v1065 = vpack.c.b16 %v1052, %v1051
      %v1066 = vpack.c.b16 %v1054, %v1053
      %v1067 = vpack.c.b16 %v1056, %v1055
      %v1068 = vpack.c.b16 %v1058, %v1057
      %v1069 = vpack.c.b16 %v1060, %v1059
      %v1070 = vpack.c.b16 %v1062, %v1061
      %1079 = vmatprep.subr.bf16.mxu0 0
      %1080 = vmatpush1.bf16.msra.mxu0 %v1063
      %1081 = vmatprep.subr.bf16.mxu0 0
      %1082 = vmatpush1.bf16.msra.mxu0 %v1064
      %1083 = vmatprep.subr.bf16.mxu0 0
      %1084 = vmatpush1.bf16.msra.mxu0 %v1065
      %1085 = vmatprep.subr.bf16.mxu0 0
      %1086 = vmatpush1.bf16.msra.mxu0 %v1066
      %1087 = vmatprep.subr.bf16.mxu0 0
      %1088 = vmatpush1.bf16.msra.mxu0 %v1067
      %1089 = vmatprep.subr.bf16.mxu0 0
      %1090 = vmatpush1.bf16.msra.mxu0 %v1068
      %1091 = vmatprep.subr.bf16.mxu0 0
      %1092 = vmatpush1.bf16.msra.mxu0 %v1069
      %1093 = vmatprep.subr.bf16.mxu0 0
      %1094 = vmatpush1.bf16.msra.mxu0 %v1070
      %1095 = vmatprep.subr.bf16.mxu0 0
      %1096 = vmatpush1.bf16.msra.mxu0 0
      %1097 = vmatprep.subr.bf16.mxu0 0
      %1098 = vmatpush1.bf16.msra.mxu0 0
      %1099 = vmatprep.subr.bf16.mxu0 0
      %1100 = vmatpush1.bf16.msra.mxu0 0
      %1101 = vmatprep.subr.bf16.mxu0 0
      %1102 = vmatpush1.bf16.msra.mxu0 0
      %1103 = vmatprep.subr.bf16.mxu0 0
      %1104 = vmatpush1.bf16.msra.mxu0 0
      %1105 = vmatprep.subr.bf16.mxu0 0
      %1106 = vmatpush1.bf16.msra.mxu0 0
      %1107 = vmatprep.subr.bf16.mxu0 0
      %1108 = vmatpush1.bf16.msra.mxu0 0
      %1109 = vmatprep.subr.bf16.mxu0 0
      %1110 = vmatpush1.bf16.msra.mxu0 0
      %1111 = vmatprep.mubr.bf16.mxu0 0
      %1112 = vmatmul.mubr.bf16.gmra.mrb[0].mxu0 %v1010
      %v1113 = vpop.f32.mrb[0].mxu0
      %v1114 = vadd.f32 0.0, %v1113
      %v1115 = vpop.f32.mrb[0].mxu0
      %v1116 = vpop.f32.mrb[0].mxu0
      %v1117 = vadd.f32 0.0, %v1116
      %v1118 = vpop.f32.mrb[0].mxu0
      %1119 = vmatprep.mubr.bf16.mxu0 0
      %1120 = vmatmul.mubr.bf16.gmra.mrb[0].mxu0 %v1011
      %v1121 = vpop.f32.mrb[0].mxu0
      %v1122 = vadd.f32 0.0, %v1121
      %v1123 = vpop.f32.mrb[0].mxu0
      %v1124 = vpop.f32.mrb[0].mxu0
      %v1125 = vadd.f32 0.0, %v1124
      %v1126 = vpop.f32.mrb[0].mxu0
      %1127 = vmatprep.mubr.bf16.mxu0 0
      %1128 = vmatmul.mubr.bf16.gmra.mrb[0].mxu0 %v1012
      %v1129 = vpop.f32.mrb[0].mxu0
      %v1130 = vadd.f32 0.0, %v1129
      %v1131 = vpop.f32.mrb[0].mxu0
      %v1132 = vpop.f32.mrb[0].mxu0
      %v1133 = vadd.f32 0.0, %v1132
      %v1134 = vpop.f32.mrb[0].mxu0
      %1135 = vmatprep.mubr.bf16.mxu0 0
      %1136 = vmatmul.mubr.bf16.gmra.mrb[0].mxu0 %v1013
      %v1137 = vpop.f32.mrb[0].mxu0
      %v1138 = vadd.f32 0.0, %v1137
      %v1139 = vpop.f32.mrb[0].mxu0
      %v1140 = vpop.f32.mrb[0].mxu0
      %v1141 = vadd.f32 0.0, %v1140
      %v1142 = vpop.f32.mrb[0].mxu0
      %1143 = vdwg.mxu0
      %v1144 = vadd.f32 %v994, %v1114
      %v1145 = vadd.f32 %v995, %v1117
      %v1146 = vadd.f32 %v996, %v1122
      %v1147 = vadd.f32 %v997, %v1125
      %v1148 = vadd.f32 %v998, %v1130
      %v1149 = vadd.f32 %v999, %v1133
      %v1150 = vadd.f32 %v1000, %v1138
      %v1151 = vadd.f32 %v1001, %v1141
      %v1152 = vld [vmem:[#allocation2 + $0x1] sm:$0xff]
      %v1153 = vld [vmem:[#allocation2 + $0x11] sm:$0xff]
      %v1154 = vld [vmem:[#allocation2 + $0x21] sm:$0xff]
      %v1155 = vld [vmem:[#allocation2 + $0x31] sm:$0xff]
      %v1156 = vld [vmem:[#allocation2 + $0x41] sm:$0xff]
      %v1157 = vld [vmem:[#allocation2 + $0x51] sm:$0xff]
      %v1158 = vld [vmem:[#allocation2 + $0x61] sm:$0xff]
      %v1159 = vld [vmem:[#allocation2 + $0x71] sm:$0xff]
      %v1160 = vpack.c.bf16 %v1153, %v1152
      %v1161 = vpack.c.bf16 %v1155, %v1154
      %v1162 = vpack.c.bf16 %v1157, %v1156
      %v1163 = vpack.c.bf16 %v1159, %v1158
      %s1164 = scalar_lea.vmem %s3, 832
      %v1165 = vld [vmem:[%s1164] sm:$0xf]
      %v1166 = vld [vmem:[%s1164 + $0x4] sm:$0xf]
      %v1167 = vld [vmem:[%s1164 + $0x8] sm:$0xf]
      %v1168 = vld [vmem:[%s1164 + $0xc] sm:$0xf]
      %v1169 = vld [vmem:[%s1164 + $0x10] sm:$0xf]
      %v1170 = vld [vmem:[%s1164 + $0x14] sm:$0xf]
      %v1171 = vld [vmem:[%s1164 + $0x18] sm:$0xf]
      %v1172 = vld [vmem:[%s1164 + $0x1c] sm:$0xf]
      %v1173 = vld [vmem:[%s1164 + $0x20] sm:$0xf]
      %v1174 = vld [vmem:[%s1164 + $0x24] sm:$0xf]
      %v1175 = vld [vmem:[%s1164 + $0x28] sm:$0xf]
      %v1176 = vld [vmem:[%s1164 + $0x2c] sm:$0xf]
      %v1177 = vld [vmem:[%s1164 + $0x30] sm:$0xf]
      %v1178 = vld [vmem:[%s1164 + $0x34] sm:$0xf]
      %v1179 = vld [vmem:[%s1164 + $0x38] sm:$0xf]
      %v1180 = vld [vmem:[%s1164 + $0x3c] sm:$0xf]
      %v1197 = vunpack.c.l.b16 %v1165
      %v1198 = vunpack.c.l.b16 %v1166
      %v1199 = vunpack.c.l.b16 %v1167
      %v1200 = vunpack.c.l.b16 %v1168
      %v1201 = vunpack.c.l.b16 %v1169
      %v1202 = vunpack.c.l.b16 %v1170
      %v1203 = vunpack.c.l.b16 %v1171
      %v1204 = vunpack.c.l.b16 %v1172
      %v1205 = vunpack.c.l.b16 %v1173
      %v1206 = vunpack.c.l.b16 %v1174
      %v1207 = vunpack.c.l.b16 %v1175
      %v1208 = vunpack.c.l.b16 %v1176
      %v1209 = vunpack.c.l.b16 %v1177
      %v1210 = vunpack.c.l.b16 %v1178
      %v1211 = vunpack.c.l.b16 %v1179
      %v1212 = vunpack.c.l.b16 %v1180
      %v1213 = vpack.c.b16 %v1198, %v1197
      %v1214 = vpack.c.b16 %v1200, %v1199
      %v1215 = vpack.c.b16 %v1202, %v1201
      %v1216 = vpack.c.b16 %v1204, %v1203
      %v1217 = vpack.c.b16 %v1206, %v1205
      %v1218 = vpack.c.b16 %v1208, %v1207
      %v1219 = vpack.c.b16 %v1210, %v1209
      %v1220 = vpack.c.b16 %v1212, %v1211
      %1229 = vmatprep.subr.bf16.mxu0 0
      %1230 = vmatpush1.bf16.msra.mxu0 %v1213
      %1231 = vmatprep.subr.bf16.mxu0 0
      %1232 = vmatpush1.bf16.msra.mxu0 %v1214
      %1233 = vmatprep.subr.bf16.mxu0 0
      %1234 = vmatpush1.bf16.msra.mxu0 %v1215
      %1235 = vmatprep.subr.bf16.mxu0 0
      %1236 = vmatpush1.bf16.msra.mxu0 %v1216
      %1237 = vmatprep.subr.bf16.mxu0 0
      %1238 = vmatpush1.bf16.msra.mxu0 %v1217
      %1239 = vmatprep.subr.bf16.mxu0 0
      %1240 = vmatpush1.bf16.msra.mxu0 %v1218
      %1241 = vmatprep.subr.bf16.mxu0 0
      %1242 = vmatpush1.bf16.msra.mxu0 %v1219
      %1243 = vmatprep.subr.bf16.mxu0 0
      %1244 = vmatpush1.bf16.msra.mxu0 %v1220
      %1245 = vmatprep.subr.bf16.mxu0 0
      %1246 = vmatpush1.bf16.msra.mxu0 0
      %1247 = vmatprep.subr.bf16.mxu0 0
      %1248 = vmatpush1.bf16.msra.mxu0 0
      %1249 = vmatprep.subr.bf16.mxu0 0
      %1250 = vmatpush1.bf16.msra.mxu0 0
      %1251 = vmatprep.subr.bf16.mxu0 0
      %1252 = vmatpush1.bf16.msra.mxu0 0
      %1253 = vmatprep.subr.bf16.mxu0 0
      %1254 = vmatpush1.bf16.msra.mxu0 0
      %1255 = vmatprep.subr.bf16.mxu0 0
      %1256 = vmatpush1.bf16.msra.mxu0 0
      %1257 = vmatprep.subr.bf16.mxu0 0
      %1258 = vmatpush1.bf16.msra.mxu0 0
      %1259 = vmatprep.subr.bf16.mxu0 0
      %1260 = vmatpush1.bf16.msra.mxu0 0
      %1261 = vmatprep.mubr.bf16.mxu0 0
      %1262 = vmatmul.mubr.bf16.gmra.mrb[0].mxu0 %v1160
      %v1263 = vpop.f32.mrb[0].mxu0
      %v1264 = vadd.f32 0.0, %v1263
      %v1265 = vpop.f32.mrb[0].mxu0
      %v1266 = vpop.f32.mrb[0].mxu0
      %v1267 = vadd.f32 0.0, %v1266
      %v1268 = vpop.f32.mrb[0].mxu0
      %1269 = vmatprep.mubr.bf16.mxu0 0
      %1270 = vmatmul.mubr.bf16.gmra.mrb[0].mxu0 %v1161
      %v1271 = vpop.f32.mrb[0].mxu0
      %v1272 = vadd.f32 0.0, %v1271
      %v1273 = vpop.f32.mrb[0].mxu0
      %v1274 = vpop.f32.mrb[0].mxu0
      %v1275 = vadd.f32 0.0, %v1274
      %v1276 = vpop.f32.mrb[0].mxu0
      %1277 = vmatprep.mubr.bf16.mxu0 0
      %1278 = vmatmul.mubr.bf16.gmra.mrb[0].mxu0 %v1162
      %v1279 = vpop.f32.mrb[0].mxu0
      %v1280 = vadd.f32 0.0, %v1279
      %v1281 = vpop.f32.mrb[0].mxu0
      %v1282 = vpop.f32.mrb[0].mxu0
      %v1283 = vadd.f32 0.0, %v1282
      %v1284 = vpop.f32.mrb[0].mxu0
      %1285 = vmatprep.mubr.bf16.mxu0 0
      %1286 = vmatmul.mubr.bf16.gmra.mrb[0].mxu0 %v1163
      %v1287 = vpop.f32.mrb[0].mxu0
      %v1288 = vadd.f32 0.0, %v1287
      %v1289 = vpop.f32.mrb[0].mxu0
      %v1290 = vpop.f32.mrb[0].mxu0
      %v1291 = vadd.f32 0.0, %v1290
      %v1292 = vpop.f32.mrb[0].mxu0
      %1293 = vdwg.mxu0
      %v1294 = vadd.f32 %v1144, %v1264
      %v1295 = vadd.f32 %v1145, %v1267
      %v1296 = vadd.f32 %v1146, %v1272
      %v1297 = vadd.f32 %v1147, %v1275
      %v1298 = vadd.f32 %v1148, %v1280
      %v1299 = vadd.f32 %v1149, %v1283
      %v1300 = vadd.f32 %v1150, %v1288
      %v1301 = vadd.f32 %v1151, %v1291
      %v1302 = vld [vmem:[#allocation2] sm:$0xff]
      %v1303 = vld [vmem:[#allocation2 + $0x10] sm:$0xff]
      %v1304 = vld [vmem:[#allocation2 + $0x20] sm:$0xff]
      %v1305 = vld [vmem:[#allocation2 + $0x30] sm:$0xff]
      %v1306 = vld [vmem:[#allocation2 + $0x40] sm:$0xff]
      %v1307 = vld [vmem:[#allocation2 + $0x50] sm:$0xff]
      %v1308 = vld [vmem:[#allocation2 + $0x60] sm:$0xff]
      %v1309 = vld [vmem:[#allocation2 + $0x70] sm:$0xff]
      %v1310 = vpack.c.bf16 %v1303, %v1302
      %v1311 = vpack.c.bf16 %v1305, %v1304
      %v1312 = vpack.c.bf16 %v1307, %v1306
      %v1313 = vpack.c.bf16 %v1309, %v1308
      %s1314 = scalar_lea.vmem %s3, 960
      %v1315 = vld [vmem:[%s1314] sm:$0xf]
      %v1316 = vld [vmem:[%s1314 + $0x4] sm:$0xf]
      %v1317 = vld [vmem:[%s1314 + $0x8] sm:$0xf]
      %v1318 = vld [vmem:[%s1314 + $0xc] sm:$0xf]
      %v1319 = vld [vmem:[%s1314 + $0x10] sm:$0xf]
      %v1320 = vld [vmem:[%s1314 + $0x14] sm:$0xf]
      %v1321 = vld [vmem:[%s1314 + $0x18] sm:$0xf]
      %v1322 = vld [vmem:[%s1314 + $0x1c] sm:$0xf]
      %v1323 = vld [vmem:[%s1314 + $0x20] sm:$0xf]
      %v1324 = vld [vmem:[%s1314 + $0x24] sm:$0xf]
      %v1325 = vld [vmem:[%s1314 + $0x28] sm:$0xf]
      %v1326 = vld [vmem:[%s1314 + $0x2c] sm:$0xf]
      %v1327 = vld [vmem:[%s1314 + $0x30] sm:$0xf]
      %v1328 = vld [vmem:[%s1314 + $0x34] sm:$0xf]
      %v1329 = vld [vmem:[%s1314 + $0x38] sm:$0xf]
      %v1330 = vld [vmem:[%s1314 + $0x3c] sm:$0xf]
      %v1347 = vunpack.c.l.b16 %v1315
      %v1348 = vunpack.c.l.b16 %v1316
      %v1349 = vunpack.c.l.b16 %v1317
      %v1350 = vunpack.c.l.b16 %v1318
      %v1351 = vunpack.c.l.b16 %v1319
      %v1352 = vunpack.c.l.b16 %v1320
      %v1353 = vunpack.c.l.b16 %v1321
      %v1354 = vunpack.c.l.b16 %v1322
      %v1355 = vunpack.c.l.b16 %v1323
      %v1356 = vunpack.c.l.b16 %v1324
      %v1357 = vunpack.c.l.b16 %v1325
      %v1358 = vunpack.c.l.b16 %v1326
      %v1359 = vunpack.c.l.b16 %v1327
      %v1360 = vunpack.c.l.b16 %v1328
      %v1361 = vunpack.c.l.b16 %v1329
      %v1362 = vunpack.c.l.b16 %v1330
      %v1363 = vpack.c.b16 %v1348, %v1347
      %v1364 = vpack.c.b16 %v1350, %v1349
      %v1365 = vpack.c.b16 %v1352, %v1351
      %v1366 = vpack.c.b16 %v1354, %v1353
      %v1367 = vpack.c.b16 %v1356, %v1355
      %v1368 = vpack.c.b16 %v1358, %v1357
      %v1369 = vpack.c.b16 %v1360, %v1359
      %v1370 = vpack.c.b16 %v1362, %v1361
      %1379 = vmatprep.subr.bf16.mxu0 0
      %1380 = vmatpush1.bf16.msra.mxu0 %v1363
      %1381 = vmatprep.subr.bf16.mxu0 0
      %1382 = vmatpush1.bf16.msra.mxu0 %v1364
      %1383 = vmatprep.subr.bf16.mxu0 0
      %1384 = vmatpush1.bf16.msra.mxu0 %v1365
      %1385 = vmatprep.subr.bf16.mxu0 0
      %1386 = vmatpush1.bf16.msra.mxu0 %v1366
      %1387 = vmatprep.subr.bf16.mxu0 0
      %1388 = vmatpush1.bf16.msra.mxu0 %v1367
      %1389 = vmatprep.subr.bf16.mxu0 0
      %1390 = vmatpush1.bf16.msra.mxu0 %v1368
      %1391 = vmatprep.subr.bf16.mxu0 0
      %1392 = vmatpush1.bf16.msra.mxu0 %v1369
      %1393 = vmatprep.subr.bf16.mxu0 0
      %1394 = vmatpush1.bf16.msra.mxu0 %v1370
      %1395 = vmatprep.subr.bf16.mxu0 0
      %1396 = vmatpush1.bf16.msra.mxu0 0
      %1397 = vmatprep.subr.bf16.mxu0 0
      %1398 = vmatpush1.bf16.msra.mxu0 0
      %1399 = vmatprep.subr.bf16.mxu0 0
      %1400 = vmatpush1.bf16.msra.mxu0 0
      %1401 = vmatprep.subr.bf16.mxu0 0
      %1402 = vmatpush1.bf16.msra.mxu0 0
      %1403 = vmatprep.subr.bf16.mxu0 0
      %1404 = vmatpush1.bf16.msra.mxu0 0
      %1405 = vmatprep.subr.bf16.mxu0 0
      %1406 = vmatpush1.bf16.msra.mxu0 0
      %1407 = vmatprep.subr.bf16.mxu0 0
      %1408 = vmatpush1.bf16.msra.mxu0 0
      %1409 = vmatprep.subr.bf16.mxu0 0
      %1410 = vmatpush1.bf16.msra.mxu0 0
      %1411 = vmatprep.mubr.bf16.mxu0 0
      %1412 = vmatmul.mubr.bf16.gmra.mrb[0].mxu0 %v1310
      %v1413 = vpop.f32.mrb[0].mxu0
      %v1414 = vadd.f32 0.0, %v1413
      %v1415 = vpop.f32.mrb[0].mxu0
      %v1416 = vpop.f32.mrb[0].mxu0
      %v1417 = vadd.f32 0.0, %v1416
      %v1418 = vpop.f32.mrb[0].mxu0
      %1419 = vmatprep.mubr.bf16.mxu0 0
      %1420 = vmatmul.mubr.bf16.gmra.mrb[0].mxu0 %v1311
      %v1421 = vpop.f32.mrb[0].mxu0
      %v1422 = vadd.f32 0.0, %v1421
      %v1423 = vpop.f32.mrb[0].mxu0
      %v1424 = vpop.f32.mrb[0].mxu0
      %v1425 = vadd.f32 0.0, %v1424
      %v1426 = vpop.f32.mrb[0].mxu0
      %1427 = vmatprep.mubr.bf16.mxu0 0
      %1428 = vmatmul.mubr.bf16.gmra.mrb[0].mxu0 %v1312
      %v1429 = vpop.f32.mrb[0].mxu0
      %v1430 = vadd.f32 0.0, %v1429
      %v1431 = vpop.f32.mrb[0].mxu0
      %v1432 = vpop.f32.mrb[0].mxu0
      %v1433 = vadd.f32 0.0, %v1432
      %v1434 = vpop.f32.mrb[0].mxu0
      %1435 = vmatprep.mubr.bf16.mxu0 0
      %1436 = vmatmul.mubr.bf16.gmra.mrb[0].mxu0 %v1313
      %v1437 = vpop.f32.mrb[0].mxu0
      %v1438 = vadd.f32 0.0, %v1437
      %v1439 = vpop.f32.mrb[0].mxu0
      %v1440 = vpop.f32.mrb[0].mxu0
      %v1441 = vadd.f32 0.0, %v1440
      %v1442 = vpop.f32.mrb[0].mxu0
      %1443 = vdwg.mxu0
      %v1444 = vadd.f32 %v1294, %v1414
      %v1445 = vadd.f32 %v1295, %v1417
      %v1446 = vadd.f32 %v1296, %v1422
      %v1447 = vadd.f32 %v1297, %v1425
      %v1448 = vadd.f32 %v1298, %v1430
      %v1449 = vadd.f32 %v1299, %v1433
      %v1450 = vadd.f32 %v1300, %v1438
      %v1451 = vadd.f32 %v1301, %v1441
      %1452 = vst [vmem:[%s258] sm:$0xff] %v1444
      %1453 = vst [vmem:[%s258 + $0x8] sm:$0xff] %v1445
      %1454 = vst [vmem:[%s258 + $0x10] sm:$0xff] %v1446
      %1455 = vst [vmem:[%s258 + $0x18] sm:$0xff] %v1447
      %1456 = vst [vmem:[%s258 + $0x20] sm:$0xff] %v1448
      %1457 = vst [vmem:[%s258 + $0x28] sm:$0xff] %v1449
      %1458 = vst [vmem:[%s258 + $0x30] sm:$0xff] %v1450
      %1459 = vst [vmem:[%s258 + $0x38] sm:$0xff] %v1451
      %v1460 = vadd.f32 %v1444, %v1445
      %v1461 = vadd.f32 %v1460, %v1446
      %v1462 = vadd.f32 %v1461, %v1447
      %v1463 = vadd.f32 %v1462, %v1448
      %v1464 = vadd.f32 %v1463, %v1449
      %v1465 = vadd.f32 %v1464, %v1450
      %v1466 = vadd.f32 %v1465, %v1451
      %v1467 = vrot.slane %v1466, 4
      %v1468 = vadd.f32 %v1466, %v1467
      %v1469 = vrot.slane %v1468, 2
      %v1470 = vadd.f32 %v1468, %v1469
      %v1471 = vrot.slane %v1470, 1
      %v1472 = vadd.f32 %v1470, %v1471
      %v1473 = vadd.f32 %v1472, 0.0
      %v1474 = vmul.f32 %v1444, %v1444
      %v1475 = vmul.f32 %v1445, %v1445
      %v1476 = vmul.f32 %v1446, %v1446
      %v1477 = vmul.f32 %v1447, %v1447
      %v1478 = vmul.f32 %v1448, %v1448
      %v1479 = vmul.f32 %v1449, %v1449
      %v1480 = vmul.f32 %v1450, %v1450
      %v1481 = vmul.f32 %v1451, %v1451
      %v1482 = vadd.f32 %v1474, %v1475
      %v1483 = vadd.f32 %v1482, %v1476
      %v1484 = vadd.f32 %v1483, %v1477
      %v1485 = vadd.f32 %v1484, %v1478
      %v1486 = vadd.f32 %v1485, %v1479
      %v1487 = vadd.f32 %v1486, %v1480
      %v1488 = vadd.f32 %v1487, %v1481
      %v1489 = vrot.slane %v1488, 4
      %v1490 = vadd.f32 %v1488, %v1489
      %v1491 = vrot.slane %v1490, 2
      %v1492 = vadd.f32 %v1490, %v1491
      %v1493 = vrot.slane %v1492, 1
      %v1494 = vadd.f32 %v1492, %v1493
      %v1495 = vadd.f32 %v1494, 0.0
      %v1496 = vld [vmem:[%s836 + $0x1] sm:$0xff]
      %v1497 = vld [vmem:[%s836 + $0x11] sm:$0xff]
      %v1498 = vld [vmem:[%s836 + $0x21] sm:$0xff]
      %v1499 = vld [vmem:[%s836 + $0x31] sm:$0xff]
      %v1500 = vld [vmem:[%s836 + $0x41] sm:$0xff]
      %v1501 = vld [vmem:[%s836 + $0x51] sm:$0xff]
      %v1502 = vld [vmem:[%s836 + $0x61] sm:$0xff]
      %v1503 = vld [vmem:[%s836 + $0x71] sm:$0xff]
      %v1504 = vpack.c.bf16 %v1497, %v1496
      %v1505 = vpack.c.bf16 %v1499, %v1498
      %v1506 = vpack.c.bf16 %v1501, %v1500
      %v1507 = vpack.c.bf16 %v1503, %v1502
      %s1508 = scalar_lea.vmem %s3, 384
      %v1509 = vld [vmem:[%s1508] sm:$0xf]
      %v1510 = vld [vmem:[%s1508 + $0x4] sm:$0xf]
      %v1511 = vld [vmem:[%s1508 + $0x8] sm:$0xf]
      %v1512 = vld [vmem:[%s1508 + $0xc] sm:$0xf]
      %v1513 = vld [vmem:[%s1508 + $0x10] sm:$0xf]
      %v1514 = vld [vmem:[%s1508 + $0x14] sm:$0xf]
      %v1515 = vld [vmem:[%s1508 + $0x18] sm:$0xf]
      %v1516 = vld [vmem:[%s1508 + $0x1c] sm:$0xf]
      %v1517 = vld [vmem:[%s1508 + $0x20] sm:$0xf]
      %v1518 = vld [vmem:[%s1508 + $0x24] sm:$0xf]
      %v1519 = vld [vmem:[%s1508 + $0x28] sm:$0xf]
      %v1520 = vld [vmem:[%s1508 + $0x2c] sm:$0xf]
      %v1521 = vld [vmem:[%s1508 + $0x30] sm:$0xf]
      %v1522 = vld [vmem:[%s1508 + $0x34] sm:$0xf]
      %v1523 = vld [vmem:[%s1508 + $0x38] sm:$0xf]
      %v1524 = vld [vmem:[%s1508 + $0x3c] sm:$0xf]
      %v1541 = vunpack.c.l.b16 %v1509
      %v1542 = vunpack.c.l.b16 %v1510
      %v1543 = vunpack.c.l.b16 %v1511
      %v1544 = vunpack.c.l.b16 %v1512
      %v1545 = vunpack.c.l.b16 %v1513
      %v1546 = vunpack.c.l.b16 %v1514
      %v1547 = vunpack.c.l.b16 %v1515
      %v1548 = vunpack.c.l.b16 %v1516
      %v1549 = vunpack.c.l.b16 %v1517
      %v1550 = vunpack.c.l.b16 %v1518
      %v1551 = vunpack.c.l.b16 %v1519
      %v1552 = vunpack.c.l.b16 %v1520
      %v1553 = vunpack.c.l.b16 %v1521
      %v1554 = vunpack.c.l.b16 %v1522
      %v1555 = vunpack.c.l.b16 %v1523
      %v1556 = vunpack.c.l.b16 %v1524
      %v1557 = vpack.c.b16 %v1542, %v1541
      %v1558 = vpack.c.b16 %v1544, %v1543
      %v1559 = vpack.c.b16 %v1546, %v1545
      %v1560 = vpack.c.b16 %v1548, %v1547
      %v1561 = vpack.c.b16 %v1550, %v1549
      %v1562 = vpack.c.b16 %v1552, %v1551
      %v1563 = vpack.c.b16 %v1554, %v1553
      %v1564 = vpack.c.b16 %v1556, %v1555
      %1573 = vmatprep.subr.bf16.mxu0 0
      %1574 = vmatpush1.bf16.msra.mxu0 %v1557
      %1575 = vmatprep.subr.bf16.mxu0 0
      %1576 = vmatpush1.bf16.msra.mxu0 %v1558
      %1577 = vmatprep.subr.bf16.mxu0 0
      %1578 = vmatpush1.bf16.msra.mxu0 %v1559
      %1579 = vmatprep.subr.bf16.mxu0 0
      %1580 = vmatpush1.bf16.msra.mxu0 %v1560
      %1581 = vmatprep.subr.bf16.mxu0 0
      %1582 = vmatpush1.bf16.msra.mxu0 %v1561
      %1583 = vmatprep.subr.bf16.mxu0 0
      %1584 = vmatpush1.bf16.msra.mxu0 %v1562
      %1585 = vmatprep.subr.bf16.mxu0 0
      %1586 = vmatpush1.bf16.msra.mxu0 %v1563
      %1587 = vmatprep.subr.bf16.mxu0 0
      %1588 = vmatpush1.bf16.msra.mxu0 %v1564
      %1589 = vmatprep.subr.bf16.mxu0 0
      %1590 = vmatpush1.bf16.msra.mxu0 0
      %1591 = vmatprep.subr.bf16.mxu0 0
      %1592 = vmatpush1.bf16.msra.mxu0 0
      %1593 = vmatprep.subr.bf16.mxu0 0
      %1594 = vmatpush1.bf16.msra.mxu0 0
      %1595 = vmatprep.subr.bf16.mxu0 0
      %1596 = vmatpush1.bf16.msra.mxu0 0
      %1597 = vmatprep.subr.bf16.mxu0 0
      %1598 = vmatpush1.bf16.msra.mxu0 0
      %1599 = vmatprep.subr.bf16.mxu0 0
      %1600 = vmatpush1.bf16.msra.mxu0 0
      %1601 = vmatprep.subr.bf16.mxu0 0
      %1602 = vmatpush1.bf16.msra.mxu0 0
      %1603 = vmatprep.subr.bf16.mxu0 0
      %1604 = vmatpush1.bf16.msra.mxu0 0
      %1605 = vmatprep.mubr.bf16.mxu0 0
      %1606 = vmatmul.mubr.bf16.gmra.mrb[0].mxu0 %v1504
      %v1607 = vpop.f32.mrb[0].mxu0
      %v1608 = vadd.f32 0.0, %v1607
      %v1609 = vpop.f32.mrb[0].mxu0
      %v1610 = vpop.f32.mrb[0].mxu0
      %v1611 = vadd.f32 0.0, %v1610
      %v1612 = vpop.f32.mrb[0].mxu0
      %1613 = vmatprep.mubr.bf16.mxu0 0
      %1614 = vmatmul.mubr.bf16.gmra.mrb[0].mxu0 %v1505
      %v1615 = vpop.f32.mrb[0].mxu0
      %v1616 = vadd.f32 0.0, %v1615
      %v1617 = vpop.f32.mrb[0].mxu0
      %v1618 = vpop.f32.mrb[0].mxu0
      %v1619 = vadd.f32 0.0, %v1618
      %v1620 = vpop.f32.mrb[0].mxu0
      %1621 = vmatprep.mubr.bf16.mxu0 0
      %1622 = vmatmul.mubr.bf16.gmra.mrb[0].mxu0 %v1506
      %v1623 = vpop.f32.mrb[0].mxu0
      %v1624 = vadd.f32 0.0, %v1623
      %v1625 = vpop.f32.mrb[0].mxu0
      %v1626 = vpop.f32.mrb[0].mxu0
      %v1627 = vadd.f32 0.0, %v1626
      %v1628 = vpop.f32.mrb[0].mxu0
      %1629 = vmatprep.mubr.bf16.mxu0 0
      %1630 = vmatmul.mubr.bf16.gmra.mrb[0].mxu0 %v1507
      %v1631 = vpop.f32.mrb[0].mxu0
      %v1632 = vadd.f32 0.0, %v1631
      %v1633 = vpop.f32.mrb[0].mxu0
      %v1634 = vpop.f32.mrb[0].mxu0
      %v1635 = vadd.f32 0.0, %v1634
      %v1636 = vpop.f32.mrb[0].mxu0
      %1637 = vdwg.mxu0
      %v1638 = vadd.f32 %v850, %v1608
      %v1639 = vadd.f32 %v850, %v1611
      %v1640 = vadd.f32 %v850, %v1616
      %v1641 = vadd.f32 %v850, %v1619
      %v1642 = vadd.f32 %v850, %v1624
      %v1643 = vadd.f32 %v850, %v1627
      %v1644 = vadd.f32 %v850, %v1632
      %v1645 = vadd.f32 %v850, %v1635
      %v1646 = vld [vmem:[%s836 + $0x2] sm:$0xff]
      %v1647 = vld [vmem:[%s836 + $0x12] sm:$0xff]
      %v1648 = vld [vmem:[%s836 + $0x22] sm:$0xff]
      %v1649 = vld [vmem:[%s836 + $0x32] sm:$0xff]
      %v1650 = vld [vmem:[%s836 + $0x42] sm:$0xff]
      %v1651 = vld [vmem:[%s836 + $0x52] sm:$0xff]
      %v1652 = vld [vmem:[%s836 + $0x62] sm:$0xff]
      %v1653 = vld [vmem:[%s836 + $0x72] sm:$0xff]
      %v1654 = vpack.c.bf16 %v1647, %v1646
      %v1655 = vpack.c.bf16 %v1649, %v1648
      %v1656 = vpack.c.bf16 %v1651, %v1650
      %v1657 = vpack.c.bf16 %v1653, %v1652
      %s1658 = scalar_lea.vmem %s3, 256
      %v1659 = vld [vmem:[%s1658] sm:$0xf]
      %v1660 = vld [vmem:[%s1658 + $0x4] sm:$0xf]
      %v1661 = vld [vmem:[%s1658 + $0x8] sm:$0xf]
      %v1662 = vld [vmem:[%s1658 + $0xc] sm:$0xf]
      %v1663 = vld [vmem:[%s1658 + $0x10] sm:$0xf]
      %v1664 = vld [vmem:[%s1658 + $0x14] sm:$0xf]
      %v1665 = vld [vmem:[%s1658 + $0x18] sm:$0xf]
      %v1666 = vld [vmem:[%s1658 + $0x1c] sm:$0xf]
      %v1667 = vld [vmem:[%s1658 + $0x20] sm:$0xf]
      %v1668 = vld [vmem:[%s1658 + $0x24] sm:$0xf]
      %v1669 = vld [vmem:[%s1658 + $0x28] sm:$0xf]
      %v1670 = vld [vmem:[%s1658 + $0x2c] sm:$0xf]
      %v1671 = vld [vmem:[%s1658 + $0x30] sm:$0xf]
      %v1672 = vld [vmem:[%s1658 + $0x34] sm:$0xf]
      %v1673 = vld [vmem:[%s1658 + $0x38] sm:$0xf]
      %v1674 = vld [vmem:[%s1658 + $0x3c] sm:$0xf]
      %v1691 = vunpack.c.l.b16 %v1659
      %v1692 = vunpack.c.l.b16 %v1660
      %v1693 = vunpack.c.l.b16 %v1661
      %v1694 = vunpack.c.l.b16 %v1662
      %v1695 = vunpack.c.l.b16 %v1663
      %v1696 = vunpack.c.l.b16 %v1664
      %v1697 = vunpack.c.l.b16 %v1665
      %v1698 = vunpack.c.l.b16 %v1666
      %v1699 = vunpack.c.l.b16 %v1667
      %v1700 = vunpack.c.l.b16 %v1668
      %v1701 = vunpack.c.l.b16 %v1669
      %v1702 = vunpack.c.l.b16 %v1670
      %v1703 = vunpack.c.l.b16 %v1671
      %v1704 = vunpack.c.l.b16 %v1672
      %v1705 = vunpack.c.l.b16 %v1673
      %v1706 = vunpack.c.l.b16 %v1674
      %v1707 = vpack.c.b16 %v1692, %v1691
      %v1708 = vpack.c.b16 %v1694, %v1693
      %v1709 = vpack.c.b16 %v1696, %v1695
      %v1710 = vpack.c.b16 %v1698, %v1697
      %v1711 = vpack.c.b16 %v1700, %v1699
      %v1712 = vpack.c.b16 %v1702, %v1701
      %v1713 = vpack.c.b16 %v1704, %v1703
      %v1714 = vpack.c.b16 %v1706, %v1705
      %1723 = vmatprep.subr.bf16.mxu0 0
      %1724 = vmatpush1.bf16.msra.mxu0 %v1707
      %1725 = vmatprep.subr.bf16.mxu0 0
      %1726 = vmatpush1.bf16.msra.mxu0 %v1708
      %1727 = vmatprep.subr.bf16.mxu0 0
      %1728 = vmatpush1.bf16.msra.mxu0 %v1709
      %1729 = vmatprep.subr.bf16.mxu0 0
      %1730 = vmatpush1.bf16.msra.mxu0 %v1710
      %1731 = vmatprep.subr.bf16.mxu0 0
      %1732 = vmatpush1.bf16.msra.mxu0 %v1711
      %1733 = vmatprep.subr.bf16.mxu0 0
      %1734 = vmatpush1.bf16.msra.mxu0 %v1712
      %1735 = vmatprep.subr.bf16.mxu0 0
      %1736 = vmatpush1.bf16.msra.mxu0 %v1713
      %1737 = vmatprep.subr.bf16.mxu0 0
      %1738 = vmatpush1.bf16.msra.mxu0 %v1714
      %1739 = vmatprep.subr.bf16.mxu0 0
      %1740 = vmatpush1.bf16.msra.mxu0 0
      %1741 = vmatprep.subr.bf16.mxu0 0
      %1742 = vmatpush1.bf16.msra.mxu0 0
      %1743 = vmatprep.subr.bf16.mxu0 0
      %1744 = vmatpush1.bf16.msra.mxu0 0
      %1745 = vmatprep.subr.bf16.mxu0 0
      %1746 = vmatpush1.bf16.msra.mxu0 0
      %1747 = vmatprep.subr.bf16.mxu0 0
      %1748 = vmatpush1.bf16.msra.mxu0 0
      %1749 = vmatprep.subr.bf16.mxu0 0
      %1750 = vmatpush1.bf16.msra.mxu0 0
      %1751 = vmatprep.subr.bf16.mxu0 0
      %1752 = vmatpush1.bf16.msra.mxu0 0
      %1753 = vmatprep.subr.bf16.mxu0 0
      %1754 = vmatpush1.bf16.msra.mxu0 0
      %1755 = vmatprep.mubr.bf16.mxu0 0
      %1756 = vmatmul.mubr.bf16.gmra.mrb[0].mxu0 %v1654
      %v1757 = vpop.f32.mrb[0].mxu0
      %v1758 = vadd.f32 0.0, %v1757
      %v1759 = vpop.f32.mrb[0].mxu0
      %v1760 = vpop.f32.mrb[0].mxu0
      %v1761 = vadd.f32 0.0, %v1760
      %v1762 = vpop.f32.mrb[0].mxu0
      %1763 = vmatprep.mubr.bf16.mxu0 0
      %1764 = vmatmul.mubr.bf16.gmra.mrb[0].mxu0 %v1655
      %v1765 = vpop.f32.mrb[0].mxu0
      %v1766 = vadd.f32 0.0, %v1765
      %v1767 = vpop.f32.mrb[0].mxu0
      %v1768 = vpop.f32.mrb[0].mxu0
      %v1769 = vadd.f32 0.0, %v1768
      %v1770 = vpop.f32.mrb[0].mxu0
      %1771 = vmatprep.mubr.bf16.mxu0 0
      %1772 = vmatmul.mubr.bf16.gmra.mrb[0].mxu0 %v1656
      %v1773 = vpop.f32.mrb[0].mxu0
      %v1774 = vadd.f32 0.0, %v1773
      %v1775 = vpop.f32.mrb[0].mxu0
      %v1776 = vpop.f32.mrb[0].mxu0
      %v1777 = vadd.f32 0.0, %v1776
      %v1778 = vpop.f32.mrb[0].mxu0
      %1779 = vmatprep.mubr.bf16.mxu0 0
      %1780 = vmatmul.mubr.bf16.gmra.mrb[0].mxu0 %v1657
      %v1781 = vpop.f32.mrb[0].mxu0
      %v1782 = vadd.f32 0.0, %v1781
      %v1783 = vpop.f32.mrb[0].mxu0
      %v1784 = vpop.f32.mrb[0].mxu0
      %v1785 = vadd.f32 0.0, %v1784
      %v1786 = vpop.f32.mrb[0].mxu0
      %1787 = vdwg.mxu0
      %v1788 = vadd.f32 %v1638, %v1758
      %v1789 = vadd.f32 %v1639, %v1761
      %v1790 = vadd.f32 %v1640, %v1766
      %v1791 = vadd.f32 %v1641, %v1769
      %v1792 = vadd.f32 %v1642, %v1774
      %v1793 = vadd.f32 %v1643, %v1777
      %v1794 = vadd.f32 %v1644, %v1782
      %v1795 = vadd.f32 %v1645, %v1785
      %v1796 = vld [vmem:[#allocation2 + $0x1] sm:$0xff]
      %v1797 = vld [vmem:[#allocation2 + $0x11] sm:$0xff]
      %v1798 = vld [vmem:[#allocation2 + $0x21] sm:$0xff]
      %v1799 = vld [vmem:[#allocation2 + $0x31] sm:$0xff]
      %v1800 = vld [vmem:[#allocation2 + $0x41] sm:$0xff]
      %v1801 = vld [vmem:[#allocation2 + $0x51] sm:$0xff]
      %v1802 = vld [vmem:[#allocation2 + $0x61] sm:$0xff]
      %v1803 = vld [vmem:[#allocation2 + $0x71] sm:$0xff]
      %v1804 = vpack.c.bf16 %v1797, %v1796
      %v1805 = vpack.c.bf16 %v1799, %v1798
      %v1806 = vpack.c.bf16 %v1801, %v1800
      %v1807 = vpack.c.bf16 %v1803, %v1802
      %s1808 = scalar_lea.vmem %s3, 896
      %v1809 = vld [vmem:[%s1808] sm:$0xf]
      %v1810 = vld [vmem:[%s1808 + $0x4] sm:$0xf]
      %v1811 = vld [vmem:[%s1808 + $0x8] sm:$0xf]
      %v1812 = vld [vmem:[%s1808 + $0xc] sm:$0xf]
      %v1813 = vld [vmem:[%s1808 + $0x10] sm:$0xf]
      %v1814 = vld [vmem:[%s1808 + $0x14] sm:$0xf]
      %v1815 = vld [vmem:[%s1808 + $0x18] sm:$0xf]
      %v1816 = vld [vmem:[%s1808 + $0x1c] sm:$0xf]
      %v1817 = vld [vmem:[%s1808 + $0x20] sm:$0xf]
      %v1818 = vld [vmem:[%s1808 + $0x24] sm:$0xf]
      %v1819 = vld [vmem:[%s1808 + $0x28] sm:$0xf]
      %v1820 = vld [vmem:[%s1808 + $0x2c] sm:$0xf]
      %v1821 = vld [vmem:[%s1808 + $0x30] sm:$0xf]
      %v1822 = vld [vmem:[%s1808 + $0x34] sm:$0xf]
      %v1823 = vld [vmem:[%s1808 + $0x38] sm:$0xf]
      %v1824 = vld [vmem:[%s1808 + $0x3c] sm:$0xf]
      %v1841 = vunpack.c.l.b16 %v1809
      %v1842 = vunpack.c.l.b16 %v1810
      %v1843 = vunpack.c.l.b16 %v1811
      %v1844 = vunpack.c.l.b16 %v1812
      %v1845 = vunpack.c.l.b16 %v1813
      %v1846 = vunpack.c.l.b16 %v1814
      %v1847 = vunpack.c.l.b16 %v1815
      %v1848 = vunpack.c.l.b16 %v1816
      %v1849 = vunpack.c.l.b16 %v1817
      %v1850 = vunpack.c.l.b16 %v1818
      %v1851 = vunpack.c.l.b16 %v1819
      %v1852 = vunpack.c.l.b16 %v1820
      %v1853 = vunpack.c.l.b16 %v1821
      %v1854 = vunpack.c.l.b16 %v1822
      %v1855 = vunpack.c.l.b16 %v1823
      %v1856 = vunpack.c.l.b16 %v1824
      %v1857 = vpack.c.b16 %v1842, %v1841
      %v1858 = vpack.c.b16 %v1844, %v1843
      %v1859 = vpack.c.b16 %v1846, %v1845
      %v1860 = vpack.c.b16 %v1848, %v1847
      %v1861 = vpack.c.b16 %v1850, %v1849
      %v1862 = vpack.c.b16 %v1852, %v1851
      %v1863 = vpack.c.b16 %v1854, %v1853
      %v1864 = vpack.c.b16 %v1856, %v1855
      %1873 = vmatprep.subr.bf16.mxu0 0
      %1874 = vmatpush1.bf16.msra.mxu0 %v1857
      %1875 = vmatprep.subr.bf16.mxu0 0
      %1876 = vmatpush1.bf16.msra.mxu0 %v1858
      %1877 = vmatprep.subr.bf16.mxu0 0
      %1878 = vmatpush1.bf16.msra.mxu0 %v1859
      %1879 = vmatprep.subr.bf16.mxu0 0
      %1880 = vmatpush1.bf16.msra.mxu0 %v1860
      %1881 = vmatprep.subr.bf16.mxu0 0
      %1882 = vmatpush1.bf16.msra.mxu0 %v1861
      %1883 = vmatprep.subr.bf16.mxu0 0
      %1884 = vmatpush1.bf16.msra.mxu0 %v1862
      %1885 = vmatprep.subr.bf16.mxu0 0
      %1886 = vmatpush1.bf16.msra.mxu0 %v1863
      %1887 = vmatprep.subr.bf16.mxu0 0
      %1888 = vmatpush1.bf16.msra.mxu0 %v1864
      %1889 = vmatprep.subr.bf16.mxu0 0
      %1890 = vmatpush1.bf16.msra.mxu0 0
      %1891 = vmatprep.subr.bf16.mxu0 0
      %1892 = vmatpush1.bf16.msra.mxu0 0
      %1893 = vmatprep.subr.bf16.mxu0 0
      %1894 = vmatpush1.bf16.msra.mxu0 0
      %1895 = vmatprep.subr.bf16.mxu0 0
      %1896 = vmatpush1.bf16.msra.mxu0 0
      %1897 = vmatprep.subr.bf16.mxu0 0
      %1898 = vmatpush1.bf16.msra.mxu0 0
      %1899 = vmatprep.subr.bf16.mxu0 0
      %1900 = vmatpush1.bf16.msra.mxu0 0
      %1901 = vmatprep.subr.bf16.mxu0 0
      %1902 = vmatpush1.bf16.msra.mxu0 0
      %1903 = vmatprep.subr.bf16.mxu0 0
      %1904 = vmatpush1.bf16.msra.mxu0 0
      %1905 = vmatprep.mubr.bf16.mxu0 0
      %1906 = vmatmul.mubr.bf16.gmra.mrb[0].mxu0 %v1804
      %v1907 = vpop.f32.mrb[0].mxu0
      %v1908 = vadd.f32 0.0, %v1907
      %v1909 = vpop.f32.mrb[0].mxu0
      %v1910 = vpop.f32.mrb[0].mxu0
      %v1911 = vadd.f32 0.0, %v1910
      %v1912 = vpop.f32.mrb[0].mxu0
      %1913 = vmatprep.mubr.bf16.mxu0 0
      %1914 = vmatmul.mubr.bf16.gmra.mrb[0].mxu0 %v1805
      %v1915 = vpop.f32.mrb[0].mxu0
      %v1916 = vadd.f32 0.0, %v1915
      %v1917 = vpop.f32.mrb[0].mxu0
      %v1918 = vpop.f32.mrb[0].mxu0
      %v1919 = vadd.f32 0.0, %v1918
      %v1920 = vpop.f32.mrb[0].mxu0
      %1921 = vmatprep.mubr.bf16.mxu0 0
      %1922 = vmatmul.mubr.bf16.gmra.mrb[0].mxu0 %v1806
      %v1923 = vpop.f32.mrb[0].mxu0
      %v1924 = vadd.f32 0.0, %v1923
      %v1925 = vpop.f32.mrb[0].mxu0
      %v1926 = vpop.f32.mrb[0].mxu0
      %v1927 = vadd.f32 0.0, %v1926
      %v1928 = vpop.f32.mrb[0].mxu0
      %1929 = vmatprep.mubr.bf16.mxu0 0
      %1930 = vmatmul.mubr.bf16.gmra.mrb[0].mxu0 %v1807
      %v1931 = vpop.f32.mrb[0].mxu0
      %v1932 = vadd.f32 0.0, %v1931
      %v1933 = vpop.f32.mrb[0].mxu0
      %v1934 = vpop.f32.mrb[0].mxu0
      %v1935 = vadd.f32 0.0, %v1934
      %v1936 = vpop.f32.mrb[0].mxu0
      %1937 = vdwg.mxu0
      %v1938 = vadd.f32 %v1788, %v1908
      %v1939 = vadd.f32 %v1789, %v1911
      %v1940 = vadd.f32 %v1790, %v1916
      %v1941 = vadd.f32 %v1791, %v1919
      %v1942 = vadd.f32 %v1792, %v1924
      %v1943 = vadd.f32 %v1793, %v1927
      %v1944 = vadd.f32 %v1794, %v1932
      %v1945 = vadd.f32 %v1795, %v1935
      %v1946 = vld [vmem:[#allocation2 + $0x2] sm:$0xff]
      %v1947 = vld [vmem:[#allocation2 + $0x12] sm:$0xff]
      %v1948 = vld [vmem:[#allocation2 + $0x22] sm:$0xff]
      %v1949 = vld [vmem:[#allocation2 + $0x32] sm:$0xff]
      %v1950 = vld [vmem:[#allocation2 + $0x42] sm:$0xff]
      %v1951 = vld [vmem:[#allocation2 + $0x52] sm:$0xff]
      %v1952 = vld [vmem:[#allocation2 + $0x62] sm:$0xff]
      %v1953 = vld [vmem:[#allocation2 + $0x72] sm:$0xff]
      %v1954 = vpack.c.bf16 %v1947, %v1946
      %v1955 = vpack.c.bf16 %v1949, %v1948
      %v1956 = vpack.c.bf16 %v1951, %v1950
      %v1957 = vpack.c.bf16 %v1953, %v1952
      %s1958 = scalar_lea.vmem %s3, 768
      %v1959 = vld [vmem:[%s1958] sm:$0xf]
      %v1960 = vld [vmem:[%s1958 + $0x4] sm:$0xf]
      %v1961 = vld [vmem:[%s1958 + $0x8] sm:$0xf]
      %v1962 = vld [vmem:[%s1958 + $0xc] sm:$0xf]
      %v1963 = vld [vmem:[%s1958 + $0x10] sm:$0xf]
      %v1964 = vld [vmem:[%s1958 + $0x14] sm:$0xf]
      %v1965 = vld [vmem:[%s1958 + $0x18] sm:$0xf]
      %v1966 = vld [vmem:[%s1958 + $0x1c] sm:$0xf]
      %v1967 = vld [vmem:[%s1958 + $0x20] sm:$0xf]
      %v1968 = vld [vmem:[%s1958 + $0x24] sm:$0xf]
      %v1969 = vld [vmem:[%s1958 + $0x28] sm:$0xf]
      %v1970 = vld [vmem:[%s1958 + $0x2c] sm:$0xf]
      %v1971 = vld [vmem:[%s1958 + $0x30] sm:$0xf]
      %v1972 = vld [vmem:[%s1958 + $0x34] sm:$0xf]
      %v1973 = vld [vmem:[%s1958 + $0x38] sm:$0xf]
      %v1974 = vld [vmem:[%s1958 + $0x3c] sm:$0xf]
      %v1991 = vunpack.c.l.b16 %v1959
      %v1992 = vunpack.c.l.b16 %v1960
      %v1993 = vunpack.c.l.b16 %v1961
      %v1994 = vunpack.c.l.b16 %v1962
      %v1995 = vunpack.c.l.b16 %v1963
      %v1996 = vunpack.c.l.b16 %v1964
      %v1997 = vunpack.c.l.b16 %v1965
      %v1998 = vunpack.c.l.b16 %v1966
      %v1999 = vunpack.c.l.b16 %v1967
      %v2000 = vunpack.c.l.b16 %v1968
      %v2001 = vunpack.c.l.b16 %v1969
      %v2002 = vunpack.c.l.b16 %v1970
      %v2003 = vunpack.c.l.b16 %v1971
      %v2004 = vunpack.c.l.b16 %v1972
      %v2005 = vunpack.c.l.b16 %v1973
      %v2006 = vunpack.c.l.b16 %v1974
      %v2007 = vpack.c.b16 %v1992, %v1991
      %v2008 = vpack.c.b16 %v1994, %v1993
      %v2009 = vpack.c.b16 %v1996, %v1995
      %v2010 = vpack.c.b16 %v1998, %v1997
      %v2011 = vpack.c.b16 %v2000, %v1999
      %v2012 = vpack.c.b16 %v2002, %v2001
      %v2013 = vpack.c.b16 %v2004, %v2003
      %v2014 = vpack.c.b16 %v2006, %v2005
      %2023 = vmatprep.subr.bf16.mxu0 0
      %2024 = vmatpush1.bf16.msra.mxu0 %v2007
      %2025 = vmatprep.subr.bf16.mxu0 0
      %2026 = vmatpush1.bf16.msra.mxu0 %v2008
      %2027 = vmatprep.subr.bf16.mxu0 0
      %2028 = vmatpush1.bf16.msra.mxu0 %v2009
      %2029 = vmatprep.subr.bf16.mxu0 0
      %2030 = vmatpush1.bf16.msra.mxu0 %v2010
      %2031 = vmatprep.subr.bf16.mxu0 0
      %2032 = vmatpush1.bf16.msra.mxu0 %v2011
      %2033 = vmatprep.subr.bf16.mxu0 0
      %2034 = vmatpush1.bf16.msra.mxu0 %v2012
      %2035 = vmatprep.subr.bf16.mxu0 0
      %2036 = vmatpush1.bf16.msra.mxu0 %v2013
      %2037 = vmatprep.subr.bf16.mxu0 0
      %2038 = vmatpush1.bf16.msra.mxu0 %v2014
      %2039 = vmatprep.subr.bf16.mxu0 0
      %2040 = vmatpush1.bf16.msra.mxu0 0
      %2041 = vmatprep.subr.bf16.mxu0 0
      %2042 = vmatpush1.bf16.msra.mxu0 0
      %2043 = vmatprep.subr.bf16.mxu0 0
      %2044 = vmatpush1.bf16.msra.mxu0 0
      %2045 = vmatprep.subr.bf16.mxu0 0
      %2046 = vmatpush1.bf16.msra.mxu0 0
      %2047 = vmatprep.subr.bf16.mxu0 0
      %2048 = vmatpush1.bf16.msra.mxu0 0
      %2049 = vmatprep.subr.bf16.mxu0 0
      %2050 = vmatpush1.bf16.msra.mxu0 0
      %2051 = vmatprep.subr.bf16.mxu0 0
      %2052 = vmatpush1.bf16.msra.mxu0 0
      %2053 = vmatprep.subr.bf16.mxu0 0
      %2054 = vmatpush1.bf16.msra.mxu0 0
      %2055 = vmatprep.mubr.bf16.mxu0 0
      %2056 = vmatmul.mubr.bf16.gmra.mrb[0].mxu0 %v1954
      %v2057 = vpop.f32.mrb[0].mxu0
      %v2058 = vadd.f32 0.0, %v2057
      %v2059 = vpop.f32.mrb[0].mxu0
      %v2060 = vpop.f32.mrb[0].mxu0
      %v2061 = vadd.f32 0.0, %v2060
      %v2062 = vpop.f32.mrb[0].mxu0
      %2063 = vmatprep.mubr.bf16.mxu0 0
      %2064 = vmatmul.mubr.bf16.gmra.mrb[0].mxu0 %v1955
      %v2065 = vpop.f32.mrb[0].mxu0
      %v2066 = vadd.f32 0.0, %v2065
      %v2067 = vpop.f32.mrb[0].mxu0
      %v2068 = vpop.f32.mrb[0].mxu0
      %v2069 = vadd.f32 0.0, %v2068
      %v2070 = vpop.f32.mrb[0].mxu0
      %2071 = vmatprep.mubr.bf16.mxu0 0
      %2072 = vmatmul.mubr.bf16.gmra.mrb[0].mxu0 %v1956
      %v2073 = vpop.f32.mrb[0].mxu0
      %v2074 = vadd.f32 0.0, %v2073
      %v2075 = vpop.f32.mrb[0].mxu0
      %v2076 = vpop.f32.mrb[0].mxu0
      %v2077 = vadd.f32 0.0, %v2076
      %v2078 = vpop.f32.mrb[0].mxu0
      %2079 = vmatprep.mubr.bf16.mxu0 0
      %2080 = vmatmul.mubr.bf16.gmra.mrb[0].mxu0 %v1957
      %v2081 = vpop.f32.mrb[0].mxu0
      %v2082 = vadd.f32 0.0, %v2081
      %v2083 = vpop.f32.mrb[0].mxu0
      %v2084 = vpop.f32.mrb[0].mxu0
      %v2085 = vadd.f32 0.0, %v2084
      %v2086 = vpop.f32.mrb[0].mxu0
      %2087 = vdwg.mxu0
      %v2088 = vadd.f32 %v1938, %v2058
      %v2089 = vadd.f32 %v1939, %v2061
      %v2090 = vadd.f32 %v1940, %v2066
      %v2091 = vadd.f32 %v1941, %v2069
      %v2092 = vadd.f32 %v1942, %v2074
      %v2093 = vadd.f32 %v1943, %v2077
      %v2094 = vadd.f32 %v1944, %v2082
      %v2095 = vadd.f32 %v1945, %v2085
      %s2096 = scalar_lea.vmem %s258, 64
      %2097 = vst [vmem:[%s2096] sm:$0xff] %v2088
      %2098 = vst [vmem:[%s2096 + $0x8] sm:$0xff] %v2089
      %2099 = vst [vmem:[%s2096 + $0x10] sm:$0xff] %v2090
      %2100 = vst [vmem:[%s2096 + $0x18] sm:$0xff] %v2091
      %2101 = vst [vmem:[%s2096 + $0x20] sm:$0xff] %v2092
      %2102 = vst [vmem:[%s2096 + $0x28] sm:$0xff] %v2093
      %2103 = vst [vmem:[%s2096 + $0x30] sm:$0xff] %v2094
      %2104 = vst [vmem:[%s2096 + $0x38] sm:$0xff] %v2095
      %v2105 = vadd.f32 %v2088, %v2089
      %v2106 = vadd.f32 %v2105, %v2090
      %v2107 = vadd.f32 %v2106, %v2091
      %v2108 = vadd.f32 %v2107, %v2092
      %v2109 = vadd.f32 %v2108, %v2093
      %v2110 = vadd.f32 %v2109, %v2094
      %v2111 = vadd.f32 %v2110, %v2095
      %v2112 = vrot.slane %v2111, 4
      %v2113 = vadd.f32 %v2111, %v2112
      %v2114 = vrot.slane %v2113, 2
      %v2115 = vadd.f32 %v2113, %v2114
      %v2116 = vrot.slane %v2115, 1
      %v2117 = vadd.f32 %v2115, %v2116
      %v2118 = vadd.f32 %v1473, %v2117
      %v2119 = vmul.f32 %v2088, %v2088
      %v2120 = vmul.f32 %v2089, %v2089
      %v2121 = vmul.f32 %v2090, %v2090
      %v2122 = vmul.f32 %v2091, %v2091
      %v2123 = vmul.f32 %v2092, %v2092
      %v2124 = vmul.f32 %v2093, %v2093
      %v2125 = vmul.f32 %v2094, %v2094
      %v2126 = vmul.f32 %v2095, %v2095
      %v2127 = vadd.f32 %v2119, %v2120
      %v2128 = vadd.f32 %v2127, %v2121
      %v2129 = vadd.f32 %v2128, %v2122
      %v2130 = vadd.f32 %v2129, %v2123
      %v2131 = vadd.f32 %v2130, %v2124
      %v2132 = vadd.f32 %v2131, %v2125
      %v2133 = vadd.f32 %v2132, %v2126
      %v2134 = vrot.slane %v2133, 4
      %v2135 = vadd.f32 %v2133, %v2134
      %v2136 = vrot.slane %v2135, 2
      %v2137 = vadd.f32 %v2135, %v2136
      %v2138 = vrot.slane %v2137, 1
      %v2139 = vadd.f32 %v2137, %v2138
      %v2140 = vadd.f32 %v1495, %v2139
      %v2141 = vld [vmem:[%s836 + $0x1] sm:$0xff]
      %v2142 = vld [vmem:[%s836 + $0x11] sm:$0xff]
      %v2143 = vld [vmem:[%s836 + $0x21] sm:$0xff]
      %v2144 = vld [vmem:[%s836 + $0x31] sm:$0xff]
      %v2145 = vld [vmem:[%s836 + $0x41] sm:$0xff]
      %v2146 = vld [vmem:[%s836 + $0x51] sm:$0xff]
      %v2147 = vld [vmem:[%s836 + $0x61] sm:$0xff]
      %v2148 = vld [vmem:[%s836 + $0x71] sm:$0xff]
      %v2149 = vpack.c.bf16 %v2142, %v2141
      %v2150 = vpack.c.bf16 %v2144, %v2143
      %v2151 = vpack.c.bf16 %v2146, %v2145
      %v2152 = vpack.c.bf16 %v2148, %v2147
      %s2153 = scalar_lea.vmem %s3, 576
      %v2154 = vld [vmem:[%s2153] sm:$0xf]
      %v2155 = vld [vmem:[%s2153 + $0x4] sm:$0xf]
      %v2156 = vld [vmem:[%s2153 + $0x8] sm:$0xf]
      %v2157 = vld [vmem:[%s2153 + $0xc] sm:$0xf]
      %v2158 = vld [vmem:[%s2153 + $0x10] sm:$0xf]
      %v2159 = vld [vmem:[%s2153 + $0x14] sm:$0xf]
      %v2160 = vld [vmem:[%s2153 + $0x18] sm:$0xf]
      %v2161 = vld [vmem:[%s2153 + $0x1c] sm:$0xf]
      %v2162 = vld [vmem:[%s2153 + $0x20] sm:$0xf]
      %v2163 = vld [vmem:[%s2153 + $0x24] sm:$0xf]
      %v2164 = vld [vmem:[%s2153 + $0x28] sm:$0xf]
      %v2165 = vld [vmem:[%s2153 + $0x2c] sm:$0xf]
      %v2166 = vld [vmem:[%s2153 + $0x30] sm:$0xf]
      %v2167 = vld [vmem:[%s2153 + $0x34] sm:$0xf]
      %v2168 = vld [vmem:[%s2153 + $0x38] sm:$0xf]
      %v2169 = vld [vmem:[%s2153 + $0x3c] sm:$0xf]
      %v2186 = vunpack.c.l.b16 %v2154
      %v2187 = vunpack.c.l.b16 %v2155
      %v2188 = vunpack.c.l.b16 %v2156
      %v2189 = vunpack.c.l.b16 %v2157
      %v2190 = vunpack.c.l.b16 %v2158
      %v2191 = vunpack.c.l.b16 %v2159
      %v2192 = vunpack.c.l.b16 %v2160
      %v2193 = vunpack.c.l.b16 %v2161
      %v2194 = vunpack.c.l.b16 %v2162
      %v2195 = vunpack.c.l.b16 %v2163
      %v2196 = vunpack.c.l.b16 %v2164
      %v2197 = vunpack.c.l.b16 %v2165
      %v2198 = vunpack.c.l.b16 %v2166
      %v2199 = vunpack.c.l.b16 %v2167
      %v2200 = vunpack.c.l.b16 %v2168
      %v2201 = vunpack.c.l.b16 %v2169
      %v2202 = vpack.c.b16 %v2187, %v2186
      %v2203 = vpack.c.b16 %v2189, %v2188
      %v2204 = vpack.c.b16 %v2191, %v2190
      %v2205 = vpack.c.b16 %v2193, %v2192
      %v2206 = vpack.c.b16 %v2195, %v2194
      %v2207 = vpack.c.b16 %v2197, %v2196
      %v2208 = vpack.c.b16 %v2199, %v2198
      %v2209 = vpack.c.b16 %v2201, %v2200
      %2218 = vmatprep.subr.bf16.mxu0 0
      %2219 = vmatpush1.bf16.msra.mxu0 %v2202
      %2220 = vmatprep.subr.bf16.mxu0 0
      %2221 = vmatpush1.bf16.msra.mxu0 %v2203
      %2222 = vmatprep.subr.bf16.mxu0 0
      %2223 = vmatpush1.bf16.msra.mxu0 %v2204
      %2224 = vmatprep.subr.bf16.mxu0 0
      %2225 = vmatpush1.bf16.msra.mxu0 %v2205
      %2226 = vmatprep.subr.bf16.mxu0 0
      %2227 = vmatpush1.bf16.msra.mxu0 %v2206
      %2228 = vmatprep.subr.bf16.mxu0 0
      %2229 = vmatpush1.bf16.msra.mxu0 %v2207
      %2230 = vmatprep.subr.bf16.mxu0 0
      %2231 = vmatpush1.bf16.msra.mxu0 %v2208
      %2232 = vmatprep.subr.bf16.mxu0 0
      %2233 = vmatpush1.bf16.msra.mxu0 %v2209
      %2234 = vmatprep.subr.bf16.mxu0 0
      %2235 = vmatpush1.bf16.msra.mxu0 0
      %2236 = vmatprep.subr.bf16.mxu0 0
      %2237 = vmatpush1.bf16.msra.mxu0 0
      %2238 = vmatprep.subr.bf16.mxu0 0
      %2239 = vmatpush1.bf16.msra.mxu0 0
      %2240 = vmatprep.subr.bf16.mxu0 0
      %2241 = vmatpush1.bf16.msra.mxu0 0
      %2242 = vmatprep.subr.bf16.mxu0 0
      %2243 = vmatpush1.bf16.msra.mxu0 0
      %2244 = vmatprep.subr.bf16.mxu0 0
      %2245 = vmatpush1.bf16.msra.mxu0 0
      %2246 = vmatprep.subr.bf16.mxu0 0
      %2247 = vmatpush1.bf16.msra.mxu0 0
      %2248 = vmatprep.subr.bf16.mxu0 0
      %2249 = vmatpush1.bf16.msra.mxu0 0
      %2250 = vmatprep.mubr.bf16.mxu0 0
      %2251 = vmatmul.mubr.bf16.gmra.mrb[0].mxu0 %v2149
      %v2252 = vpop.f32.mrb[0].mxu0
      %v2253 = vadd.f32 0.0, %v2252
      %v2254 = vpop.f32.mrb[0].mxu0
      %v2255 = vpop.f32.mrb[0].mxu0
      %v2256 = vadd.f32 0.0, %v2255
      %v2257 = vpop.f32.mrb[0].mxu0
      %2258 = vmatprep.mubr.bf16.mxu0 0
      %2259 = vmatmul.mubr.bf16.gmra.mrb[0].mxu0 %v2150
      %v2260 = vpop.f32.mrb[0].mxu0
      %v2261 = vadd.f32 0.0, %v2260
      %v2262 = vpop.f32.mrb[0].mxu0
      %v2263 = vpop.f32.mrb[0].mxu0
      %v2264 = vadd.f32 0.0, %v2263
      %v2265 = vpop.f32.mrb[0].mxu0
      %2266 = vmatprep.mubr.bf16.mxu0 0
      %2267 = vmatmul.mubr.bf16.gmra.mrb[0].mxu0 %v2151
      %v2268 = vpop.f32.mrb[0].mxu0
      %v2269 = vadd.f32 0.0, %v2268
      %v2270 = vpop.f32.mrb[0].mxu0
      %v2271 = vpop.f32.mrb[0].mxu0
      %v2272 = vadd.f32 0.0, %v2271
      %v2273 = vpop.f32.mrb[0].mxu0
      %2274 = vmatprep.mubr.bf16.mxu0 0
      %2275 = vmatmul.mubr.bf16.gmra.mrb[0].mxu0 %v2152
      %v2276 = vpop.f32.mrb[0].mxu0
      %v2277 = vadd.f32 0.0, %v2276
      %v2278 = vpop.f32.mrb[0].mxu0
      %v2279 = vpop.f32.mrb[0].mxu0
      %v2280 = vadd.f32 0.0, %v2279
      %v2281 = vpop.f32.mrb[0].mxu0
      %2282 = vdwg.mxu0
      %v2283 = vadd.f32 %v850, %v2253
      %v2284 = vadd.f32 %v850, %v2256
      %v2285 = vadd.f32 %v850, %v2261
      %v2286 = vadd.f32 %v850, %v2264
      %v2287 = vadd.f32 %v850, %v2269
      %v2288 = vadd.f32 %v850, %v2272
      %v2289 = vadd.f32 %v850, %v2277
      %v2290 = vadd.f32 %v850, %v2280
      %v2291 = vld [vmem:[%s836] sm:$0xff]
      %v2292 = vld [vmem:[%s836 + $0x10] sm:$0xff]
      %v2293 = vld [vmem:[%s836 + $0x20] sm:$0xff]
      %v2294 = vld [vmem:[%s836 + $0x30] sm:$0xff]
      %v2295 = vld [vmem:[%s836 + $0x40] sm:$0xff]
      %v2296 = vld [vmem:[%s836 + $0x50] sm:$0xff]
      %v2297 = vld [vmem:[%s836 + $0x60] sm:$0xff]
      %v2298 = vld [vmem:[%s836 + $0x70] sm:$0xff]
      %v2299 = vpack.c.bf16 %v2292, %v2291
      %v2300 = vpack.c.bf16 %v2294, %v2293
      %v2301 = vpack.c.bf16 %v2296, %v2295
      %v2302 = vpack.c.bf16 %v2298, %v2297
      %s2303 = scalar_lea.vmem %s3, 704
      %v2304 = vld [vmem:[%s2303] sm:$0xf]
      %v2305 = vld [vmem:[%s2303 + $0x4] sm:$0xf]
      %v2306 = vld [vmem:[%s2303 + $0x8] sm:$0xf]
      %v2307 = vld [vmem:[%s2303 + $0xc] sm:$0xf]
      %v2308 = vld [vmem:[%s2303 + $0x10] sm:$0xf]
      %v2309 = vld [vmem:[%s2303 + $0x14] sm:$0xf]
      %v2310 = vld [vmem:[%s2303 + $0x18] sm:$0xf]
      %v2311 = vld [vmem:[%s2303 + $0x1c] sm:$0xf]
      %v2312 = vld [vmem:[%s2303 + $0x20] sm:$0xf]
      %v2313 = vld [vmem:[%s2303 + $0x24] sm:$0xf]
      %v2314 = vld [vmem:[%s2303 + $0x28] sm:$0xf]
      %v2315 = vld [vmem:[%s2303 + $0x2c] sm:$0xf]
      %v2316 = vld [vmem:[%s2303 + $0x30] sm:$0xf]
      %v2317 = vld [vmem:[%s2303 + $0x34] sm:$0xf]
      %v2318 = vld [vmem:[%s2303 + $0x38] sm:$0xf]
      %v2319 = vld [vmem:[%s2303 + $0x3c] sm:$0xf]
      %v2336 = vunpack.c.l.b16 %v2304
      %v2337 = vunpack.c.l.b16 %v2305
      %v2338 = vunpack.c.l.b16 %v2306
      %v2339 = vunpack.c.l.b16 %v2307
      %v2340 = vunpack.c.l.b16 %v2308
      %v2341 = vunpack.c.l.b16 %v2309
      %v2342 = vunpack.c.l.b16 %v2310
      %v2343 = vunpack.c.l.b16 %v2311
      %v2344 = vunpack.c.l.b16 %v2312
      %v2345 = vunpack.c.l.b16 %v2313
      %v2346 = vunpack.c.l.b16 %v2314
      %v2347 = vunpack.c.l.b16 %v2315
      %v2348 = vunpack.c.l.b16 %v2316
      %v2349 = vunpack.c.l.b16 %v2317
      %v2350 = vunpack.c.l.b16 %v2318
      %v2351 = vunpack.c.l.b16 %v2319
      %v2352 = vpack.c.b16 %v2337, %v2336
      %v2353 = vpack.c.b16 %v2339, %v2338
      %v2354 = vpack.c.b16 %v2341, %v2340
      %v2355 = vpack.c.b16 %v2343, %v2342
      %v2356 = vpack.c.b16 %v2345, %v2344
      %v2357 = vpack.c.b16 %v2347, %v2346
      %v2358 = vpack.c.b16 %v2349, %v2348
      %v2359 = vpack.c.b16 %v2351, %v2350
      %2368 = vmatprep.subr.bf16.mxu0 0
      %2369 = vmatpush1.bf16.msra.mxu0 %v2352
      %2370 = vmatprep.subr.bf16.mxu0 0
      %2371 = vmatpush1.bf16.msra.mxu0 %v2353
      %2372 = vmatprep.subr.bf16.mxu0 0
      %2373 = vmatpush1.bf16.msra.mxu0 %v2354
      %2374 = vmatprep.subr.bf16.mxu0 0
      %2375 = vmatpush1.bf16.msra.mxu0 %v2355
      %2376 = vmatprep.subr.bf16.mxu0 0
      %2377 = vmatpush1.bf16.msra.mxu0 %v2356
      %2378 = vmatprep.subr.bf16.mxu0 0
      %2379 = vmatpush1.bf16.msra.mxu0 %v2357
      %2380 = vmatprep.subr.bf16.mxu0 0
      %2381 = vmatpush1.bf16.msra.mxu0 %v2358
      %2382 = vmatprep.subr.bf16.mxu0 0
      %2383 = vmatpush1.bf16.msra.mxu0 %v2359
      %2384 = vmatprep.subr.bf16.mxu0 0
      %2385 = vmatpush1.bf16.msra.mxu0 0
      %2386 = vmatprep.subr.bf16.mxu0 0
      %2387 = vmatpush1.bf16.msra.mxu0 0
      %2388 = vmatprep.subr.bf16.mxu0 0
      %2389 = vmatpush1.bf16.msra.mxu0 0
      %2390 = vmatprep.subr.bf16.mxu0 0
      %2391 = vmatpush1.bf16.msra.mxu0 0
      %2392 = vmatprep.subr.bf16.mxu0 0
      %2393 = vmatpush1.bf16.msra.mxu0 0
      %2394 = vmatprep.subr.bf16.mxu0 0
      %2395 = vmatpush1.bf16.msra.mxu0 0
      %2396 = vmatprep.subr.bf16.mxu0 0
      %2397 = vmatpush1.bf16.msra.mxu0 0
      %2398 = vmatprep.subr.bf16.mxu0 0
      %2399 = vmatpush1.bf16.msra.mxu0 0
      %2400 = vmatprep.mubr.bf16.mxu0 0
      %2401 = vmatmul.mubr.bf16.gmra.mrb[0].mxu0 %v2299
      %v2402 = vpop.f32.mrb[0].mxu0
      %v2403 = vadd.f32 0.0, %v2402
      %v2404 = vpop.f32.mrb[0].mxu0
      %v2405 = vpop.f32.mrb[0].mxu0
      %v2406 = vadd.f32 0.0, %v2405
      %v2407 = vpop.f32.mrb[0].mxu0
      %2408 = vmatprep.mubr.bf16.mxu0 0
      %2409 = vmatmul.mubr.bf16.gmra.mrb[0].mxu0 %v2300
      %v2410 = vpop.f32.mrb[0].mxu0
      %v2411 = vadd.f32 0.0, %v2410
      %v2412 = vpop.f32.mrb[0].mxu0
      %v2413 = vpop.f32.mrb[0].mxu0
      %v2414 = vadd.f32 0.0, %v2413
      %v2415 = vpop.f32.mrb[0].mxu0
      %2416 = vmatprep.mubr.bf16.mxu0 0
      %2417 = vmatmul.mubr.bf16.gmra.mrb[0].mxu0 %v2301
      %v2418 = vpop.f32.mrb[0].mxu0
      %v2419 = vadd.f32 0.0, %v2418
      %v2420 = vpop.f32.mrb[0].mxu0
      %v2421 = vpop.f32.mrb[0].mxu0
      %v2422 = vadd.f32 0.0, %v2421
      %v2423 = vpop.f32.mrb[0].mxu0
      %2424 = vmatprep.mubr.bf16.mxu0 0
      %2425 = vmatmul.mubr.bf16.gmra.mrb[0].mxu0 %v2302
      %v2426 = vpop.f32.mrb[0].mxu0
      %v2427 = vadd.f32 0.0, %v2426
      %v2428 = vpop.f32.mrb[0].mxu0
      %v2429 = vpop.f32.mrb[0].mxu0
      %v2430 = vadd.f32 0.0, %v2429
      %v2431 = vpop.f32.mrb[0].mxu0
      %2432 = vdwg.mxu0
      %v2433 = vadd.f32 %v2283, %v2403
      %v2434 = vadd.f32 %v2284, %v2406
      %v2435 = vadd.f32 %v2285, %v2411
      %v2436 = vadd.f32 %v2286, %v2414
      %v2437 = vadd.f32 %v2287, %v2419
      %v2438 = vadd.f32 %v2288, %v2422
      %v2439 = vadd.f32 %v2289, %v2427
      %v2440 = vadd.f32 %v2290, %v2430
      %s2441 = scalar_lea.vmem [#allocation2], 32
      %v2442 = vld [vmem:[%s2441 + $0x1] sm:$0xff]
      %v2443 = vld [vmem:[%s2441 + $0x11] sm:$0xff]
      %v2444 = vld [vmem:[%s2441 + $0x21] sm:$0xff]
      %v2445 = vld [vmem:[%s2441 + $0x31] sm:$0xff]
      %v2446 = vld [vmem:[%s2441 + $0x41] sm:$0xff]
      %v2447 = vld [vmem:[%s2441 + $0x51] sm:$0xff]
      %v2448 = vld [vmem:[%s2441 + $0x61] sm:$0xff]
      %v2449 = vld [vmem:[%s2441 + $0x71] sm:$0xff]
      %v2450 = vpack.c.bf16 %v2443, %v2442
      %v2451 = vpack.c.bf16 %v2445, %v2444
      %v2452 = vpack.c.bf16 %v2447, %v2446
      %v2453 = vpack.c.bf16 %v2449, %v2448
      %s2454 = scalar_lea.vmem %s3, 64
      %v2455 = vld [vmem:[%s2454] sm:$0xf]
      %v2456 = vld [vmem:[%s2454 + $0x4] sm:$0xf]
      %v2457 = vld [vmem:[%s2454 + $0x8] sm:$0xf]
      %v2458 = vld [vmem:[%s2454 + $0xc] sm:$0xf]
      %v2459 = vld [vmem:[%s2454 + $0x10] sm:$0xf]
      %v2460 = vld [vmem:[%s2454 + $0x14] sm:$0xf]
      %v2461 = vld [vmem:[%s2454 + $0x18] sm:$0xf]
      %v2462 = vld [vmem:[%s2454 + $0x1c] sm:$0xf]
      %v2463 = vld [vmem:[%s2454 + $0x20] sm:$0xf]
      %v2464 = vld [vmem:[%s2454 + $0x24] sm:$0xf]
      %v2465 = vld [vmem:[%s2454 + $0x28] sm:$0xf]
      %v2466 = vld [vmem:[%s2454 + $0x2c] sm:$0xf]
      %v2467 = vld [vmem:[%s2454 + $0x30] sm:$0xf]
      %v2468 = vld [vmem:[%s2454 + $0x34] sm:$0xf]
      %v2469 = vld [vmem:[%s2454 + $0x38] sm:$0xf]
      %v2470 = vld [vmem:[%s2454 + $0x3c] sm:$0xf]
      %v2487 = vunpack.c.l.b16 %v2455
      %v2488 = vunpack.c.l.b16 %v2456
      %v2489 = vunpack.c.l.b16 %v2457
      %v2490 = vunpack.c.l.b16 %v2458
      %v2491 = vunpack.c.l.b16 %v2459
      %v2492 = vunpack.c.l.b16 %v2460
      %v2493 = vunpack.c.l.b16 %v2461
      %v2494 = vunpack.c.l.b16 %v2462
      %v2495 = vunpack.c.l.b16 %v2463
      %v2496 = vunpack.c.l.b16 %v2464
      %v2497 = vunpack.c.l.b16 %v2465
      %v2498 = vunpack.c.l.b16 %v2466
      %v2499 = vunpack.c.l.b16 %v2467
      %v2500 = vunpack.c.l.b16 %v2468
      %v2501 = vunpack.c.l.b16 %v2469
      %v2502 = vunpack.c.l.b16 %v2470
      %v2503 = vpack.c.b16 %v2488, %v2487
      %v2504 = vpack.c.b16 %v2490, %v2489
      %v2505 = vpack.c.b16 %v2492, %v2491
      %v2506 = vpack.c.b16 %v2494, %v2493
      %v2507 = vpack.c.b16 %v2496, %v2495
      %v2508 = vpack.c.b16 %v2498, %v2497
      %v2509 = vpack.c.b16 %v2500, %v2499
      %v2510 = vpack.c.b16 %v2502, %v2501
      %2519 = vmatprep.subr.bf16.mxu0 0
      %2520 = vmatpush1.bf16.msra.mxu0 %v2503
      %2521 = vmatprep.subr.bf16.mxu0 0
      %2522 = vmatpush1.bf16.msra.mxu0 %v2504
      %2523 = vmatprep.subr.bf16.mxu0 0
      %2524 = vmatpush1.bf16.msra.mxu0 %v2505
      %2525 = vmatprep.subr.bf16.mxu0 0
      %2526 = vmatpush1.bf16.msra.mxu0 %v2506
      %2527 = vmatprep.subr.bf16.mxu0 0
      %2528 = vmatpush1.bf16.msra.mxu0 %v2507
      %2529 = vmatprep.subr.bf16.mxu0 0
      %2530 = vmatpush1.bf16.msra.mxu0 %v2508
      %2531 = vmatprep.subr.bf16.mxu0 0
      %2532 = vmatpush1.bf16.msra.mxu0 %v2509
      %2533 = vmatprep.subr.bf16.mxu0 0
      %2534 = vmatpush1.bf16.msra.mxu0 %v2510
      %2535 = vmatprep.subr.bf16.mxu0 0
      %2536 = vmatpush1.bf16.msra.mxu0 0
      %2537 = vmatprep.subr.bf16.mxu0 0
      %2538 = vmatpush1.bf16.msra.mxu0 0
      %2539 = vmatprep.subr.bf16.mxu0 0
      %2540 = vmatpush1.bf16.msra.mxu0 0
      %2541 = vmatprep.subr.bf16.mxu0 0
      %2542 = vmatpush1.bf16.msra.mxu0 0
      %2543 = vmatprep.subr.bf16.mxu0 0
      %2544 = vmatpush1.bf16.msra.mxu0 0
      %2545 = vmatprep.subr.bf16.mxu0 0
      %2546 = vmatpush1.bf16.msra.mxu0 0
      %2547 = vmatprep.subr.bf16.mxu0 0
      %2548 = vmatpush1.bf16.msra.mxu0 0
      %2549 = vmatprep.subr.bf16.mxu0 0
      %2550 = vmatpush1.bf16.msra.mxu0 0
      %2551 = vmatprep.mubr.bf16.mxu0 0
      %2552 = vmatmul.mubr.bf16.gmra.mrb[0].mxu0 %v2450
      %v2553 = vpop.f32.mrb[0].mxu0
      %v2554 = vadd.f32 0.0, %v2553
      %v2555 = vpop.f32.mrb[0].mxu0
      %v2556 = vpop.f32.mrb[0].mxu0
      %v2557 = vadd.f32 0.0, %v2556
      %v2558 = vpop.f32.mrb[0].mxu0
      %2559 = vmatprep.mubr.bf16.mxu0 0
      %2560 = vmatmul.mubr.bf16.gmra.mrb[0].mxu0 %v2451
      %v2561 = vpop.f32.mrb[0].mxu0
      %v2562 = vadd.f32 0.0, %v2561
      %v2563 = vpop.f32.mrb[0].mxu0
      %v2564 = vpop.f32.mrb[0].mxu0
      %v2565 = vadd.f32 0.0, %v2564
      %v2566 = vpop.f32.mrb[0].mxu0
      %2567 = vmatprep.mubr.bf16.mxu0 0
      %2568 = vmatmul.mubr.bf16.gmra.mrb[0].mxu0 %v2452
      %v2569 = vpop.f32.mrb[0].mxu0
      %v2570 = vadd.f32 0.0, %v2569
      %v2571 = vpop.f32.mrb[0].mxu0
      %v2572 = vpop.f32.mrb[0].mxu0
      %v2573 = vadd.f32 0.0, %v2572
      %v2574 = vpop.f32.mrb[0].mxu0
      %2575 = vmatprep.mubr.bf16.mxu0 0
      %2576 = vmatmul.mubr.bf16.gmra.mrb[0].mxu0 %v2453
      %v2577 = vpop.f32.mrb[0].mxu0
      %v2578 = vadd.f32 0.0, %v2577
      %v2579 = vpop.f32.mrb[0].mxu0
      %v2580 = vpop.f32.mrb[0].mxu0
      %v2581 = vadd.f32 0.0, %v2580
      %v2582 = vpop.f32.mrb[0].mxu0
      %2583 = vdwg.mxu0
      %v2584 = vadd.f32 %v2433, %v2554
      %v2585 = vadd.f32 %v2434, %v2557
      %v2586 = vadd.f32 %v2435, %v2562
      %v2587 = vadd.f32 %v2436, %v2565
      %v2588 = vadd.f32 %v2437, %v2570
      %v2589 = vadd.f32 %v2438, %v2573
      %v2590 = vadd.f32 %v2439, %v2578
      %v2591 = vadd.f32 %v2440, %v2581
      %v2592 = vld [vmem:[%s2441] sm:$0xff]
      %v2593 = vld [vmem:[%s2441 + $0x10] sm:$0xff]
      %v2594 = vld [vmem:[%s2441 + $0x20] sm:$0xff]
      %v2595 = vld [vmem:[%s2441 + $0x30] sm:$0xff]
      %v2596 = vld [vmem:[%s2441 + $0x40] sm:$0xff]
      %v2597 = vld [vmem:[%s2441 + $0x50] sm:$0xff]
      %v2598 = vld [vmem:[%s2441 + $0x60] sm:$0xff]
      %v2599 = vld [vmem:[%s2441 + $0x70] sm:$0xff]
      %v2600 = vpack.c.bf16 %v2593, %v2592
      %v2601 = vpack.c.bf16 %v2595, %v2594
      %v2602 = vpack.c.bf16 %v2597, %v2596
      %v2603 = vpack.c.bf16 %v2599, %v2598
      %s2604 = scalar_lea.vmem %s3, 192
      %v2605 = vld [vmem:[%s2604] sm:$0xf]
      %v2606 = vld [vmem:[%s2604 + $0x4] sm:$0xf]
      %v2607 = vld [vmem:[%s2604 + $0x8] sm:$0xf]
      %v2608 = vld [vmem:[%s2604 + $0xc] sm:$0xf]
      %v2609 = vld [vmem:[%s2604 + $0x10] sm:$0xf]
      %v2610 = vld [vmem:[%s2604 + $0x14] sm:$0xf]
      %v2611 = vld [vmem:[%s2604 + $0x18] sm:$0xf]
      %v2612 = vld [vmem:[%s2604 + $0x1c] sm:$0xf]
      %v2613 = vld [vmem:[%s2604 + $0x20] sm:$0xf]
      %v2614 = vld [vmem:[%s2604 + $0x24] sm:$0xf]
      %v2615 = vld [vmem:[%s2604 + $0x28] sm:$0xf]
      %v2616 = vld [vmem:[%s2604 + $0x2c] sm:$0xf]
      %v2617 = vld [vmem:[%s2604 + $0x30] sm:$0xf]
      %v2618 = vld [vmem:[%s2604 + $0x34] sm:$0xf]
      %v2619 = vld [vmem:[%s2604 + $0x38] sm:$0xf]
      %v2620 = vld [vmem:[%s2604 + $0x3c] sm:$0xf]
      %v2637 = vunpack.c.l.b16 %v2605
      %v2638 = vunpack.c.l.b16 %v2606
      %v2639 = vunpack.c.l.b16 %v2607
      %v2640 = vunpack.c.l.b16 %v2608
      %v2641 = vunpack.c.l.b16 %v2609
      %v2642 = vunpack.c.l.b16 %v2610
      %v2643 = vunpack.c.l.b16 %v2611
      %v2644 = vunpack.c.l.b16 %v2612
      %v2645 = vunpack.c.l.b16 %v2613
      %v2646 = vunpack.c.l.b16 %v2614
      %v2647 = vunpack.c.l.b16 %v2615
      %v2648 = vunpack.c.l.b16 %v2616
      %v2649 = vunpack.c.l.b16 %v2617
      %v2650 = vunpack.c.l.b16 %v2618
      %v2651 = vunpack.c.l.b16 %v2619
      %v2652 = vunpack.c.l.b16 %v2620
      %v2653 = vpack.c.b16 %v2638, %v2637
      %v2654 = vpack.c.b16 %v2640, %v2639
      %v2655 = vpack.c.b16 %v2642, %v2641
      %v2656 = vpack.c.b16 %v2644, %v2643
      %v2657 = vpack.c.b16 %v2646, %v2645
      %v2658 = vpack.c.b16 %v2648, %v2647
      %v2659 = vpack.c.b16 %v2650, %v2649
      %v2660 = vpack.c.b16 %v2652, %v2651
      %2669 = vmatprep.subr.bf16.mxu0 0
      %2670 = vmatpush1.bf16.msra.mxu0 %v2653
      %2671 = vmatprep.subr.bf16.mxu0 0
      %2672 = vmatpush1.bf16.msra.mxu0 %v2654
      %2673 = vmatprep.subr.bf16.mxu0 0
      %2674 = vmatpush1.bf16.msra.mxu0 %v2655
      %2675 = vmatprep.subr.bf16.mxu0 0
      %2676 = vmatpush1.bf16.msra.mxu0 %v2656
      %2677 = vmatprep.subr.bf16.mxu0 0
      %2678 = vmatpush1.bf16.msra.mxu0 %v2657
      %2679 = vmatprep.subr.bf16.mxu0 0
      %2680 = vmatpush1.bf16.msra.mxu0 %v2658
      %2681 = vmatprep.subr.bf16.mxu0 0
      %2682 = vmatpush1.bf16.msra.mxu0 %v2659
      %2683 = vmatprep.subr.bf16.mxu0 0
      %2684 = vmatpush1.bf16.msra.mxu0 %v2660
      %2685 = vmatprep.subr.bf16.mxu0 0
      %2686 = vmatpush1.bf16.msra.mxu0 0
      %2687 = vmatprep.subr.bf16.mxu0 0
      %2688 = vmatpush1.bf16.msra.mxu0 0
      %2689 = vmatprep.subr.bf16.mxu0 0
      %2690 = vmatpush1.bf16.msra.mxu0 0
      %2691 = vmatprep.subr.bf16.mxu0 0
      %2692 = vmatpush1.bf16.msra.mxu0 0
      %2693 = vmatprep.subr.bf16.mxu0 0
      %2694 = vmatpush1.bf16.msra.mxu0 0
      %2695 = vmatprep.subr.bf16.mxu0 0
      %2696 = vmatpush1.bf16.msra.mxu0 0
      %2697 = vmatprep.subr.bf16.mxu0 0
      %2698 = vmatpush1.bf16.msra.mxu0 0
      %2699 = vmatprep.subr.bf16.mxu0 0
      %2700 = vmatpush1.bf16.msra.mxu0 0
      %2701 = vmatprep.mubr.bf16.mxu0 0
      %2702 = vmatmul.mubr.bf16.gmra.mrb[0].mxu0 %v2600
      %v2703 = vpop.f32.mrb[0].mxu0
      %v2704 = vadd.f32 0.0, %v2703
      %v2705 = vpop.f32.mrb[0].mxu0
      %v2706 = vpop.f32.mrb[0].mxu0
      %v2707 = vadd.f32 0.0, %v2706
      %v2708 = vpop.f32.mrb[0].mxu0
      %2709 = vmatprep.mubr.bf16.mxu0 0
      %2710 = vmatmul.mubr.bf16.gmra.mrb[0].mxu0 %v2601
      %v2711 = vpop.f32.mrb[0].mxu0
      %v2712 = vadd.f32 0.0, %v2711
      %v2713 = vpop.f32.mrb[0].mxu0
      %v2714 = vpop.f32.mrb[0].mxu0
      %v2715 = vadd.f32 0.0, %v2714
      %v2716 = vpop.f32.mrb[0].mxu0
      %2717 = vmatprep.mubr.bf16.mxu0 0
      %2718 = vmatmul.mubr.bf16.gmra.mrb[0].mxu0 %v2602
      %v2719 = vpop.f32.mrb[0].mxu0
      %v2720 = vadd.f32 0.0, %v2719
      %v2721 = vpop.f32.mrb[0].mxu0
      %v2722 = vpop.f32.mrb[0].mxu0
      %v2723 = vadd.f32 0.0, %v2722
      %v2724 = vpop.f32.mrb[0].mxu0
      %2725 = vmatprep.mubr.bf16.mxu0 0
      %2726 = vmatmul.mubr.bf16.gmra.mrb[0].mxu0 %v2603
      %v2727 = vpop.f32.mrb[0].mxu0
      %v2728 = vadd.f32 0.0, %v2727
      %v2729 = vpop.f32.mrb[0].mxu0
      %v2730 = vpop.f32.mrb[0].mxu0
      %v2731 = vadd.f32 0.0, %v2730
      %v2732 = vpop.f32.mrb[0].mxu0
      %2733 = vdwg.mxu0
      %v2734 = vadd.f32 %v2584, %v2704
      %v2735 = vadd.f32 %v2585, %v2707
      %v2736 = vadd.f32 %v2586, %v2712
      %v2737 = vadd.f32 %v2587, %v2715
      %v2738 = vadd.f32 %v2588, %v2720
      %v2739 = vadd.f32 %v2589, %v2723
      %v2740 = vadd.f32 %v2590, %v2728
      %v2741 = vadd.f32 %v2591, %v2731
      %s2742 = scalar_lea.vmem %s258, 128
      %2743 = vst [vmem:[%s2742] sm:$0xff] %v2734
      %2744 = vst [vmem:[%s2742 + $0x8] sm:$0xff] %v2735
      %2745 = vst [vmem:[%s2742 + $0x10] sm:$0xff] %v2736
      %2746 = vst [vmem:[%s2742 + $0x18] sm:$0xff] %v2737
      %2747 = vst [vmem:[%s2742 + $0x20] sm:$0xff] %v2738
      %2748 = vst [vmem:[%s2742 + $0x28] sm:$0xff] %v2739
      %2749 = vst [vmem:[%s2742 + $0x30] sm:$0xff] %v2740
      %2750 = vst [vmem:[%s2742 + $0x38] sm:$0xff] %v2741
      %v2751 = vadd.f32 %v2734, %v2735
      %v2752 = vadd.f32 %v2751, %v2736
      %v2753 = vadd.f32 %v2752, %v2737
      %v2754 = vadd.f32 %v2753, %v2738
      %v2755 = vadd.f32 %v2754, %v2739
      %v2756 = vadd.f32 %v2755, %v2740
      %v2757 = vadd.f32 %v2756, %v2741
      %v2758 = vrot.slane %v2757, 4
      %v2759 = vadd.f32 %v2757, %v2758
      %v2760 = vrot.slane %v2759, 2
      %v2761 = vadd.f32 %v2759, %v2760
      %v2762 = vrot.slane %v2761, 1
      %v2763 = vadd.f32 %v2761, %v2762
      %v2764 = vadd.f32 %v2118, %v2763
      %v2765 = vmul.f32 %v2734, %v2734
      %v2766 = vmul.f32 %v2735, %v2735
      %v2767 = vmul.f32 %v2736, %v2736
      %v2768 = vmul.f32 %v2737, %v2737
      %v2769 = vmul.f32 %v2738, %v2738
      %v2770 = vmul.f32 %v2739, %v2739
      %v2771 = vmul.f32 %v2740, %v2740
      %v2772 = vmul.f32 %v2741, %v2741
      %v2773 = vadd.f32 %v2765, %v2766
      %v2774 = vadd.f32 %v2773, %v2767
      %v2775 = vadd.f32 %v2774, %v2768
      %v2776 = vadd.f32 %v2775, %v2769
      %v2777 = vadd.f32 %v2776, %v2770
      %v2778 = vadd.f32 %v2777, %v2771
      %v2779 = vadd.f32 %v2778, %v2772
      %v2780 = vrot.slane %v2779, 4
      %v2781 = vadd.f32 %v2779, %v2780
      %v2782 = vrot.slane %v2781, 2
      %v2783 = vadd.f32 %v2781, %v2782
      %v2784 = vrot.slane %v2783, 1
      %v2785 = vadd.f32 %v2783, %v2784
      %v2786 = vadd.f32 %v2140, %v2785
      %v2787 = vld [vmem:[%s836 + $0x1] sm:$0xff]
      %v2788 = vld [vmem:[%s836 + $0x11] sm:$0xff]
      %v2789 = vld [vmem:[%s836 + $0x21] sm:$0xff]
      %v2790 = vld [vmem:[%s836 + $0x31] sm:$0xff]
      %v2791 = vld [vmem:[%s836 + $0x41] sm:$0xff]
      %v2792 = vld [vmem:[%s836 + $0x51] sm:$0xff]
      %v2793 = vld [vmem:[%s836 + $0x61] sm:$0xff]
      %v2794 = vld [vmem:[%s836 + $0x71] sm:$0xff]
      %v2795 = vpack.c.bf16 %v2788, %v2787
      %v2796 = vpack.c.bf16 %v2790, %v2789
      %v2797 = vpack.c.bf16 %v2792, %v2791
      %v2798 = vpack.c.bf16 %v2794, %v2793
      %s2799 = scalar_lea.vmem %s3, 640
      %v2800 = vld [vmem:[%s2799] sm:$0xf]
      %v2801 = vld [vmem:[%s2799 + $0x4] sm:$0xf]
      %v2802 = vld [vmem:[%s2799 + $0x8] sm:$0xf]
      %v2803 = vld [vmem:[%s2799 + $0xc] sm:$0xf]
      %v2804 = vld [vmem:[%s2799 + $0x10] sm:$0xf]
      %v2805 = vld [vmem:[%s2799 + $0x14] sm:$0xf]
      %v2806 = vld [vmem:[%s2799 + $0x18] sm:$0xf]
      %v2807 = vld [vmem:[%s2799 + $0x1c] sm:$0xf]
      %v2808 = vld [vmem:[%s2799 + $0x20] sm:$0xf]
      %v2809 = vld [vmem:[%s2799 + $0x24] sm:$0xf]
      %v2810 = vld [vmem:[%s2799 + $0x28] sm:$0xf]
      %v2811 = vld [vmem:[%s2799 + $0x2c] sm:$0xf]
      %v2812 = vld [vmem:[%s2799 + $0x30] sm:$0xf]
      %v2813 = vld [vmem:[%s2799 + $0x34] sm:$0xf]
      %v2814 = vld [vmem:[%s2799 + $0x38] sm:$0xf]
      %v2815 = vld [vmem:[%s2799 + $0x3c] sm:$0xf]
      %v2832 = vunpack.c.l.b16 %v2800
      %v2833 = vunpack.c.l.b16 %v2801
      %v2834 = vunpack.c.l.b16 %v2802
      %v2835 = vunpack.c.l.b16 %v2803
      %v2836 = vunpack.c.l.b16 %v2804
      %v2837 = vunpack.c.l.b16 %v2805
      %v2838 = vunpack.c.l.b16 %v2806
      %v2839 = vunpack.c.l.b16 %v2807
      %v2840 = vunpack.c.l.b16 %v2808
      %v2841 = vunpack.c.l.b16 %v2809
      %v2842 = vunpack.c.l.b16 %v2810
      %v2843 = vunpack.c.l.b16 %v2811
      %v2844 = vunpack.c.l.b16 %v2812
      %v2845 = vunpack.c.l.b16 %v2813
      %v2846 = vunpack.c.l.b16 %v2814
      %v2847 = vunpack.c.l.b16 %v2815
      %v2848 = vpack.c.b16 %v2833, %v2832
      %v2849 = vpack.c.b16 %v2835, %v2834
      %v2850 = vpack.c.b16 %v2837, %v2836
      %v2851 = vpack.c.b16 %v2839, %v2838
      %v2852 = vpack.c.b16 %v2841, %v2840
      %v2853 = vpack.c.b16 %v2843, %v2842
      %v2854 = vpack.c.b16 %v2845, %v2844
      %v2855 = vpack.c.b16 %v2847, %v2846
      %2864 = vmatprep.subr.bf16.mxu0 0
      %2865 = vmatpush1.bf16.msra.mxu0 %v2848
      %2866 = vmatprep.subr.bf16.mxu0 0
      %2867 = vmatpush1.bf16.msra.mxu0 %v2849
      %2868 = vmatprep.subr.bf16.mxu0 0
      %2869 = vmatpush1.bf16.msra.mxu0 %v2850
      %2870 = vmatprep.subr.bf16.mxu0 0
      %2871 = vmatpush1.bf16.msra.mxu0 %v2851
      %2872 = vmatprep.subr.bf16.mxu0 0
      %2873 = vmatpush1.bf16.msra.mxu0 %v2852
      %2874 = vmatprep.subr.bf16.mxu0 0
      %2875 = vmatpush1.bf16.msra.mxu0 %v2853
      %2876 = vmatprep.subr.bf16.mxu0 0
      %2877 = vmatpush1.bf16.msra.mxu0 %v2854
      %2878 = vmatprep.subr.bf16.mxu0 0
      %2879 = vmatpush1.bf16.msra.mxu0 %v2855
      %2880 = vmatprep.subr.bf16.mxu0 0
      %2881 = vmatpush1.bf16.msra.mxu0 0
      %2882 = vmatprep.subr.bf16.mxu0 0
      %2883 = vmatpush1.bf16.msra.mxu0 0
      %2884 = vmatprep.subr.bf16.mxu0 0
      %2885 = vmatpush1.bf16.msra.mxu0 0
      %2886 = vmatprep.subr.bf16.mxu0 0
      %2887 = vmatpush1.bf16.msra.mxu0 0
      %2888 = vmatprep.subr.bf16.mxu0 0
      %2889 = vmatpush1.bf16.msra.mxu0 0
      %2890 = vmatprep.subr.bf16.mxu0 0
      %2891 = vmatpush1.bf16.msra.mxu0 0
      %2892 = vmatprep.subr.bf16.mxu0 0
      %2893 = vmatpush1.bf16.msra.mxu0 0
      %2894 = vmatprep.subr.bf16.mxu0 0
      %2895 = vmatpush1.bf16.msra.mxu0 0
      %2896 = vmatprep.mubr.bf16.mxu0 0
      %2897 = vmatmul.mubr.bf16.gmra.mrb[0].mxu0 %v2795
      %v2898 = vpop.f32.mrb[0].mxu0
      %v2899 = vadd.f32 0.0, %v2898
      %v2900 = vpop.f32.mrb[0].mxu0
      %v2901 = vpop.f32.mrb[0].mxu0
      %v2902 = vadd.f32 0.0, %v2901
      %v2903 = vpop.f32.mrb[0].mxu0
      %2904 = vmatprep.mubr.bf16.mxu0 0
      %2905 = vmatmul.mubr.bf16.gmra.mrb[0].mxu0 %v2796
      %v2906 = vpop.f32.mrb[0].mxu0
      %v2907 = vadd.f32 0.0, %v2906
      %v2908 = vpop.f32.mrb[0].mxu0
      %v2909 = vpop.f32.mrb[0].mxu0
      %v2910 = vadd.f32 0.0, %v2909
      %v2911 = vpop.f32.mrb[0].mxu0
      %2912 = vmatprep.mubr.bf16.mxu0 0
      %2913 = vmatmul.mubr.bf16.gmra.mrb[0].mxu0 %v2797
      %v2914 = vpop.f32.mrb[0].mxu0
      %v2915 = vadd.f32 0.0, %v2914
      %v2916 = vpop.f32.mrb[0].mxu0
      %v2917 = vpop.f32.mrb[0].mxu0
      %v2918 = vadd.f32 0.0, %v2917
      %v2919 = vpop.f32.mrb[0].mxu0
      %2920 = vmatprep.mubr.bf16.mxu0 0
      %2921 = vmatmul.mubr.bf16.gmra.mrb[0].mxu0 %v2798
      %v2922 = vpop.f32.mrb[0].mxu0
      %v2923 = vadd.f32 0.0, %v2922
      %v2924 = vpop.f32.mrb[0].mxu0
      %v2925 = vpop.f32.mrb[0].mxu0
      %v2926 = vadd.f32 0.0, %v2925
      %v2927 = vpop.f32.mrb[0].mxu0
      %2928 = vdwg.mxu0
      %v2929 = vadd.f32 %v850, %v2899
      %v2930 = vadd.f32 %v850, %v2902
      %v2931 = vadd.f32 %v850, %v2907
      %v2932 = vadd.f32 %v850, %v2910
      %v2933 = vadd.f32 %v850, %v2915
      %v2934 = vadd.f32 %v850, %v2918
      %v2935 = vadd.f32 %v850, %v2923
      %v2936 = vadd.f32 %v850, %v2926
      %v2937 = vld [vmem:[%s836 + $0x2] sm:$0xff]
      %v2938 = vld [vmem:[%s836 + $0x12] sm:$0xff]
      %v2939 = vld [vmem:[%s836 + $0x22] sm:$0xff]
      %v2940 = vld [vmem:[%s836 + $0x32] sm:$0xff]
      %v2941 = vld [vmem:[%s836 + $0x42] sm:$0xff]
      %v2942 = vld [vmem:[%s836 + $0x52] sm:$0xff]
      %v2943 = vld [vmem:[%s836 + $0x62] sm:$0xff]
      %v2944 = vld [vmem:[%s836 + $0x72] sm:$0xff]
      %v2945 = vpack.c.bf16 %v2938, %v2937
      %v2946 = vpack.c.bf16 %v2940, %v2939
      %v2947 = vpack.c.bf16 %v2942, %v2941
      %v2948 = vpack.c.bf16 %v2944, %v2943
      %s2949 = scalar_lea.vmem %s3, 512
      %v2950 = vld [vmem:[%s2949] sm:$0xf]
      %v2951 = vld [vmem:[%s2949 + $0x4] sm:$0xf]
      %v2952 = vld [vmem:[%s2949 + $0x8] sm:$0xf]
      %v2953 = vld [vmem:[%s2949 + $0xc] sm:$0xf]
      %v2954 = vld [vmem:[%s2949 + $0x10] sm:$0xf]
      %v2955 = vld [vmem:[%s2949 + $0x14] sm:$0xf]
      %v2956 = vld [vmem:[%s2949 + $0x18] sm:$0xf]
      %v2957 = vld [vmem:[%s2949 + $0x1c] sm:$0xf]
      %v2958 = vld [vmem:[%s2949 + $0x20] sm:$0xf]
      %v2959 = vld [vmem:[%s2949 + $0x24] sm:$0xf]
      %v2960 = vld [vmem:[%s2949 + $0x28] sm:$0xf]
      %v2961 = vld [vmem:[%s2949 + $0x2c] sm:$0xf]
      %v2962 = vld [vmem:[%s2949 + $0x30] sm:$0xf]
      %v2963 = vld [vmem:[%s2949 + $0x34] sm:$0xf]
      %v2964 = vld [vmem:[%s2949 + $0x38] sm:$0xf]
      %v2965 = vld [vmem:[%s2949 + $0x3c] sm:$0xf]
      %v2982 = vunpack.c.l.b16 %v2950
      %v2983 = vunpack.c.l.b16 %v2951
      %v2984 = vunpack.c.l.b16 %v2952
      %v2985 = vunpack.c.l.b16 %v2953
      %v2986 = vunpack.c.l.b16 %v2954
      %v2987 = vunpack.c.l.b16 %v2955
      %v2988 = vunpack.c.l.b16 %v2956
      %v2989 = vunpack.c.l.b16 %v2957
      %v2990 = vunpack.c.l.b16 %v2958
      %v2991 = vunpack.c.l.b16 %v2959
      %v2992 = vunpack.c.l.b16 %v2960
      %v2993 = vunpack.c.l.b16 %v2961
      %v2994 = vunpack.c.l.b16 %v2962
      %v2995 = vunpack.c.l.b16 %v2963
      %v2996 = vunpack.c.l.b16 %v2964
      %v2997 = vunpack.c.l.b16 %v2965
      %v2998 = vpack.c.b16 %v2983, %v2982
      %v2999 = vpack.c.b16 %v2985, %v2984
      %v3000 = vpack.c.b16 %v2987, %v2986
      %v3001 = vpack.c.b16 %v2989, %v2988
      %v3002 = vpack.c.b16 %v2991, %v2990
      %v3003 = vpack.c.b16 %v2993, %v2992
      %v3004 = vpack.c.b16 %v2995, %v2994
      %v3005 = vpack.c.b16 %v2997, %v2996
      %3014 = vmatprep.subr.bf16.mxu0 0
      %3015 = vmatpush1.bf16.msra.mxu0 %v2998
      %3016 = vmatprep.subr.bf16.mxu0 0
      %3017 = vmatpush1.bf16.msra.mxu0 %v2999
      %3018 = vmatprep.subr.bf16.mxu0 0
      %3019 = vmatpush1.bf16.msra.mxu0 %v3000
      %3020 = vmatprep.subr.bf16.mxu0 0
      %3021 = vmatpush1.bf16.msra.mxu0 %v3001
      %3022 = vmatprep.subr.bf16.mxu0 0
      %3023 = vmatpush1.bf16.msra.mxu0 %v3002
      %3024 = vmatprep.subr.bf16.mxu0 0
      %3025 = vmatpush1.bf16.msra.mxu0 %v3003
      %3026 = vmatprep.subr.bf16.mxu0 0
      %3027 = vmatpush1.bf16.msra.mxu0 %v3004
      %3028 = vmatprep.subr.bf16.mxu0 0
      %3029 = vmatpush1.bf16.msra.mxu0 %v3005
      %3030 = vmatprep.subr.bf16.mxu0 0
      %3031 = vmatpush1.bf16.msra.mxu0 0
      %3032 = vmatprep.subr.bf16.mxu0 0
      %3033 = vmatpush1.bf16.msra.mxu0 0
      %3034 = vmatprep.subr.bf16.mxu0 0
      %3035 = vmatpush1.bf16.msra.mxu0 0
      %3036 = vmatprep.subr.bf16.mxu0 0
      %3037 = vmatpush1.bf16.msra.mxu0 0
      %3038 = vmatprep.subr.bf16.mxu0 0
      %3039 = vmatpush1.bf16.msra.mxu0 0
      %3040 = vmatprep.subr.bf16.mxu0 0
      %3041 = vmatpush1.bf16.msra.mxu0 0
      %3042 = vmatprep.subr.bf16.mxu0 0
      %3043 = vmatpush1.bf16.msra.mxu0 0
      %3044 = vmatprep.subr.bf16.mxu0 0
      %3045 = vmatpush1.bf16.msra.mxu0 0
      %3046 = vmatprep.mubr.bf16.mxu0 0
      %3047 = vmatmul.mubr.bf16.gmra.mrb[0].mxu0 %v2945
      %v3048 = vpop.f32.mrb[0].mxu0
      %v3049 = vadd.f32 0.0, %v3048
      %v3050 = vpop.f32.mrb[0].mxu0
      %v3051 = vpop.f32.mrb[0].mxu0
      %v3052 = vadd.f32 0.0, %v3051
      %v3053 = vpop.f32.mrb[0].mxu0
      %3054 = vmatprep.mubr.bf16.mxu0 0
      %3055 = vmatmul.mubr.bf16.gmra.mrb[0].mxu0 %v2946
      %v3056 = vpop.f32.mrb[0].mxu0
      %v3057 = vadd.f32 0.0, %v3056
      %v3058 = vpop.f32.mrb[0].mxu0
      %v3059 = vpop.f32.mrb[0].mxu0
      %v3060 = vadd.f32 0.0, %v3059
      %v3061 = vpop.f32.mrb[0].mxu0
      %3062 = vmatprep.mubr.bf16.mxu0 0
      %3063 = vmatmul.mubr.bf16.gmra.mrb[0].mxu0 %v2947
      %v3064 = vpop.f32.mrb[0].mxu0
      %v3065 = vadd.f32 0.0, %v3064
      %v3066 = vpop.f32.mrb[0].mxu0
      %v3067 = vpop.f32.mrb[0].mxu0
      %v3068 = vadd.f32 0.0, %v3067
      %v3069 = vpop.f32.mrb[0].mxu0
      %3070 = vmatprep.mubr.bf16.mxu0 0
      %3071 = vmatmul.mubr.bf16.gmra.mrb[0].mxu0 %v2948
      %v3072 = vpop.f32.mrb[0].mxu0
      %v3073 = vadd.f32 0.0, %v3072
      %v3074 = vpop.f32.mrb[0].mxu0
      %v3075 = vpop.f32.mrb[0].mxu0
      %v3076 = vadd.f32 0.0, %v3075
      %v3077 = vpop.f32.mrb[0].mxu0
      %3078 = vdwg.mxu0
      %v3079 = vadd.f32 %v2929, %v3049
      %v3080 = vadd.f32 %v2930, %v3052
      %v3081 = vadd.f32 %v2931, %v3057
      %v3082 = vadd.f32 %v2932, %v3060
      %v3083 = vadd.f32 %v2933, %v3065
      %v3084 = vadd.f32 %v2934, %v3068
      %v3085 = vadd.f32 %v2935, %v3073
      %v3086 = vadd.f32 %v2936, %v3076
      %v3087 = vld [vmem:[%s2441 + $0x1] sm:$0xff]
      %v3088 = vld [vmem:[%s2441 + $0x11] sm:$0xff]
      %v3089 = vld [vmem:[%s2441 + $0x21] sm:$0xff]
      %v3090 = vld [vmem:[%s2441 + $0x31] sm:$0xff]
      %v3091 = vld [vmem:[%s2441 + $0x41] sm:$0xff]
      %v3092 = vld [vmem:[%s2441 + $0x51] sm:$0xff]
      %v3093 = vld [vmem:[%s2441 + $0x61] sm:$0xff]
      %v3094 = vld [vmem:[%s2441 + $0x71] sm:$0xff]
      %v3095 = vpack.c.bf16 %v3088, %v3087
      %v3096 = vpack.c.bf16 %v3090, %v3089
      %v3097 = vpack.c.bf16 %v3092, %v3091
      %v3098 = vpack.c.bf16 %v3094, %v3093
      %s3099 = scalar_lea.vmem %s3, 128
      %v3100 = vld [vmem:[%s3099] sm:$0xf]
      %v3101 = vld [vmem:[%s3099 + $0x4] sm:$0xf]
      %v3102 = vld [vmem:[%s3099 + $0x8] sm:$0xf]
      %v3103 = vld [vmem:[%s3099 + $0xc] sm:$0xf]
      %v3104 = vld [vmem:[%s3099 + $0x10] sm:$0xf]
      %v3105 = vld [vmem:[%s3099 + $0x14] sm:$0xf]
      %v3106 = vld [vmem:[%s3099 + $0x18] sm:$0xf]
      %v3107 = vld [vmem:[%s3099 + $0x1c] sm:$0xf]
      %v3108 = vld [vmem:[%s3099 + $0x20] sm:$0xf]
      %v3109 = vld [vmem:[%s3099 + $0x24] sm:$0xf]
      %v3110 = vld [vmem:[%s3099 + $0x28] sm:$0xf]
      %v3111 = vld [vmem:[%s3099 + $0x2c] sm:$0xf]
      %v3112 = vld [vmem:[%s3099 + $0x30] sm:$0xf]
      %v3113 = vld [vmem:[%s3099 + $0x34] sm:$0xf]
      %v3114 = vld [vmem:[%s3099 + $0x38] sm:$0xf]
      %v3115 = vld [vmem:[%s3099 + $0x3c] sm:$0xf]
      %v3132 = vunpack.c.l.b16 %v3100
      %v3133 = vunpack.c.l.b16 %v3101
      %v3134 = vunpack.c.l.b16 %v3102
      %v3135 = vunpack.c.l.b16 %v3103
      %v3136 = vunpack.c.l.b16 %v3104
      %v3137 = vunpack.c.l.b16 %v3105
      %v3138 = vunpack.c.l.b16 %v3106
      %v3139 = vunpack.c.l.b16 %v3107
      %v3140 = vunpack.c.l.b16 %v3108
      %v3141 = vunpack.c.l.b16 %v3109
      %v3142 = vunpack.c.l.b16 %v3110
      %v3143 = vunpack.c.l.b16 %v3111
      %v3144 = vunpack.c.l.b16 %v3112
      %v3145 = vunpack.c.l.b16 %v3113
      %v3146 = vunpack.c.l.b16 %v3114
      %v3147 = vunpack.c.l.b16 %v3115
      %v3148 = vpack.c.b16 %v3133, %v3132
      %v3149 = vpack.c.b16 %v3135, %v3134
      %v3150 = vpack.c.b16 %v3137, %v3136
      %v3151 = vpack.c.b16 %v3139, %v3138
      %v3152 = vpack.c.b16 %v3141, %v3140
      %v3153 = vpack.c.b16 %v3143, %v3142
      %v3154 = vpack.c.b16 %v3145, %v3144
      %v3155 = vpack.c.b16 %v3147, %v3146
      %3164 = vmatprep.subr.bf16.mxu0 0
      %3165 = vmatpush1.bf16.msra.mxu0 %v3148
      %3166 = vmatprep.subr.bf16.mxu0 0
      %3167 = vmatpush1.bf16.msra.mxu0 %v3149
      %3168 = vmatprep.subr.bf16.mxu0 0
      %3169 = vmatpush1.bf16.msra.mxu0 %v3150
      %3170 = vmatprep.subr.bf16.mxu0 0
      %3171 = vmatpush1.bf16.msra.mxu0 %v3151
      %3172 = vmatprep.subr.bf16.mxu0 0
      %3173 = vmatpush1.bf16.msra.mxu0 %v3152
      %3174 = vmatprep.subr.bf16.mxu0 0
      %3175 = vmatpush1.bf16.msra.mxu0 %v3153
      %3176 = vmatprep.subr.bf16.mxu0 0
      %3177 = vmatpush1.bf16.msra.mxu0 %v3154
      %3178 = vmatprep.subr.bf16.mxu0 0
      %3179 = vmatpush1.bf16.msra.mxu0 %v3155
      %3180 = vmatprep.subr.bf16.mxu0 0
      %3181 = vmatpush1.bf16.msra.mxu0 0
      %3182 = vmatprep.subr.bf16.mxu0 0
      %3183 = vmatpush1.bf16.msra.mxu0 0
      %3184 = vmatprep.subr.bf16.mxu0 0
      %3185 = vmatpush1.bf16.msra.mxu0 0
      %3186 = vmatprep.subr.bf16.mxu0 0
      %3187 = vmatpush1.bf16.msra.mxu0 0
      %3188 = vmatprep.subr.bf16.mxu0 0
      %3189 = vmatpush1.bf16.msra.mxu0 0
      %3190 = vmatprep.subr.bf16.mxu0 0
      %3191 = vmatpush1.bf16.msra.mxu0 0
      %3192 = vmatprep.subr.bf16.mxu0 0
      %3193 = vmatpush1.bf16.msra.mxu0 0
      %3194 = vmatprep.subr.bf16.mxu0 0
      %3195 = vmatpush1.bf16.msra.mxu0 0
      %3196 = vmatprep.mubr.bf16.mxu0 0
      %3197 = vmatmul.mubr.bf16.gmra.mrb[0].mxu0 %v3095
      %v3198 = vpop.f32.mrb[0].mxu0
      %v3199 = vadd.f32 0.0, %v3198
      %v3200 = vpop.f32.mrb[0].mxu0
      %v3201 = vpop.f32.mrb[0].mxu0
      %v3202 = vadd.f32 0.0, %v3201
      %v3203 = vpop.f32.mrb[0].mxu0
      %3204 = vmatprep.mubr.bf16.mxu0 0
      %3205 = vmatmul.mubr.bf16.gmra.mrb[0].mxu0 %v3096
      %v3206 = vpop.f32.mrb[0].mxu0
      %v3207 = vadd.f32 0.0, %v3206
      %v3208 = vpop.f32.mrb[0].mxu0
      %v3209 = vpop.f32.mrb[0].mxu0
      %v3210 = vadd.f32 0.0, %v3209
      %v3211 = vpop.f32.mrb[0].mxu0
      %3212 = vmatprep.mubr.bf16.mxu0 0
      %3213 = vmatmul.mubr.bf16.gmra.mrb[0].mxu0 %v3097
      %v3214 = vpop.f32.mrb[0].mxu0
      %v3215 = vadd.f32 0.0, %v3214
      %v3216 = vpop.f32.mrb[0].mxu0
      %v3217 = vpop.f32.mrb[0].mxu0
      %v3218 = vadd.f32 0.0, %v3217
      %v3219 = vpop.f32.mrb[0].mxu0
      %3220 = vmatprep.mubr.bf16.mxu0 0
      %3221 = vmatmul.mubr.bf16.gmra.mrb[0].mxu0 %v3098
      %v3222 = vpop.f32.mrb[0].mxu0
      %v3223 = vadd.f32 0.0, %v3222
      %v3224 = vpop.f32.mrb[0].mxu0
      %v3225 = vpop.f32.mrb[0].mxu0
      %v3226 = vadd.f32 0.0, %v3225
      %v3227 = vpop.f32.mrb[0].mxu0
      %3228 = vdwg.mxu0
      %v3229 = vadd.f32 %v3079, %v3199
      %v3230 = vadd.f32 %v3080, %v3202
      %v3231 = vadd.f32 %v3081, %v3207
      %v3232 = vadd.f32 %v3082, %v3210
      %v3233 = vadd.f32 %v3083, %v3215
      %v3234 = vadd.f32 %v3084, %v3218
      %v3235 = vadd.f32 %v3085, %v3223
      %v3236 = vadd.f32 %v3086, %v3226
      %v3237 = vld [vmem:[%s2441 + $0x2] sm:$0xff]
      %v3238 = vld [vmem:[%s2441 + $0x12] sm:$0xff]
      %v3239 = vld [vmem:[%s2441 + $0x22] sm:$0xff]
      %v3240 = vld [vmem:[%s2441 + $0x32] sm:$0xff]
      %v3241 = vld [vmem:[%s2441 + $0x42] sm:$0xff]
      %v3242 = vld [vmem:[%s2441 + $0x52] sm:$0xff]
      %v3243 = vld [vmem:[%s2441 + $0x62] sm:$0xff]
      %v3244 = vld [vmem:[%s2441 + $0x72] sm:$0xff]
      %v3245 = vpack.c.bf16 %v3238, %v3237
      %v3246 = vpack.c.bf16 %v3240, %v3239
      %v3247 = vpack.c.bf16 %v3242, %v3241
      %v3248 = vpack.c.bf16 %v3244, %v3243
      %v3249 = vld [vmem:[%s3] sm:$0xf]
      %v3250 = vld [vmem:[%s3 + $0x4] sm:$0xf]
      %v3251 = vld [vmem:[%s3 + $0x8] sm:$0xf]
      %v3252 = vld [vmem:[%s3 + $0xc] sm:$0xf]
      %v3253 = vld [vmem:[%s3 + $0x10] sm:$0xf]
      %v3254 = vld [vmem:[%s3 + $0x14] sm:$0xf]
      %v3255 = vld [vmem:[%s3 + $0x18] sm:$0xf]
      %v3256 = vld [vmem:[%s3 + $0x1c] sm:$0xf]
      %v3257 = vld [vmem:[%s3 + $0x20] sm:$0xf]
      %v3258 = vld [vmem:[%s3 + $0x24] sm:$0xf]
      %v3259 = vld [vmem:[%s3 + $0x28] sm:$0xf]
      %v3260 = vld [vmem:[%s3 + $0x2c] sm:$0xf]
      %v3261 = vld [vmem:[%s3 + $0x30] sm:$0xf]
      %v3262 = vld [vmem:[%s3 + $0x34] sm:$0xf]
      %v3263 = vld [vmem:[%s3 + $0x38] sm:$0xf]
      %v3264 = vld [vmem:[%s3 + $0x3c] sm:$0xf]
      %v3281 = vunpack.c.l.b16 %v3249
      %v3282 = vunpack.c.l.b16 %v3250
      %v3283 = vunpack.c.l.b16 %v3251
      %v3284 = vunpack.c.l.b16 %v3252
      %v3285 = vunpack.c.l.b16 %v3253
      %v3286 = vunpack.c.l.b16 %v3254
      %v3287 = vunpack.c.l.b16 %v3255
      %v3288 = vunpack.c.l.b16 %v3256
      %v3289 = vunpack.c.l.b16 %v3257
      %v3290 = vunpack.c.l.b16 %v3258
      %v3291 = vunpack.c.l.b16 %v3259
      %v3292 = vunpack.c.l.b16 %v3260
      %v3293 = vunpack.c.l.b16 %v3261
      %v3294 = vunpack.c.l.b16 %v3262
      %v3295 = vunpack.c.l.b16 %v3263
      %v3296 = vunpack.c.l.b16 %v3264
      %v3297 = vpack.c.b16 %v3282, %v3281
      %v3298 = vpack.c.b16 %v3284, %v3283
      %v3299 = vpack.c.b16 %v3286, %v3285
      %v3300 = vpack.c.b16 %v3288, %v3287
      %v3301 = vpack.c.b16 %v3290, %v3289
      %v3302 = vpack.c.b16 %v3292, %v3291
      %v3303 = vpack.c.b16 %v3294, %v3293
      %v3304 = vpack.c.b16 %v3296, %v3295
      %3313 = vmatprep.subr.bf16.mxu0 0
      %3314 = vmatpush1.bf16.msra.mxu0 %v3297
      %3315 = vmatprep.subr.bf16.mxu0 0
      %3316 = vmatpush1.bf16.msra.mxu0 %v3298
      %3317 = vmatprep.subr.bf16.mxu0 0
      %3318 = vmatpush1.bf16.msra.mxu0 %v3299
      %3319 = vmatprep.subr.bf16.mxu0 0
      %3320 = vmatpush1.bf16.msra.mxu0 %v3300
      %3321 = vmatprep.subr.bf16.mxu0 0
      %3322 = vmatpush1.bf16.msra.mxu0 %v3301
      %3323 = vmatprep.subr.bf16.mxu0 0
      %3324 = vmatpush1.bf16.msra.mxu0 %v3302
      %3325 = vmatprep.subr.bf16.mxu0 0
      %3326 = vmatpush1.bf16.msra.mxu0 %v3303
      %3327 = vmatprep.subr.bf16.mxu0 0
      %3328 = vmatpush1.bf16.msra.mxu0 %v3304
      %3329 = vmatprep.subr.bf16.mxu0 0
      %3330 = vmatpush1.bf16.msra.mxu0 0
      %3331 = vmatprep.subr.bf16.mxu0 0
      %3332 = vmatpush1.bf16.msra.mxu0 0
      %3333 = vmatprep.subr.bf16.mxu0 0
      %3334 = vmatpush1.bf16.msra.mxu0 0
      %3335 = vmatprep.subr.bf16.mxu0 0
      %3336 = vmatpush1.bf16.msra.mxu0 0
      %3337 = vmatprep.subr.bf16.mxu0 0
      %3338 = vmatpush1.bf16.msra.mxu0 0
      %3339 = vmatprep.subr.bf16.mxu0 0
      %3340 = vmatpush1.bf16.msra.mxu0 0
      %3341 = vmatprep.subr.bf16.mxu0 0
      %3342 = vmatpush1.bf16.msra.mxu0 0
      %3343 = vmatprep.subr.bf16.mxu0 0
      %3344 = vmatpush1.bf16.msra.mxu0 0
      %3345 = vmatprep.mubr.bf16.mxu0 0
      %3346 = vmatmul.mubr.bf16.gmra.mrb[0].mxu0 %v3245
      %v3347 = vpop.f32.mrb[0].mxu0
      %v3348 = vadd.f32 0.0, %v3347
      %v3349 = vpop.f32.mrb[0].mxu0
      %v3350 = vpop.f32.mrb[0].mxu0
      %v3351 = vadd.f32 0.0, %v3350
      %v3352 = vpop.f32.mrb[0].mxu0
      %3353 = vmatprep.mubr.bf16.mxu0 0
      %3354 = vmatmul.mubr.bf16.gmra.mrb[0].mxu0 %v3246
      %v3355 = vpop.f32.mrb[0].mxu0
      %v3356 = vadd.f32 0.0, %v3355
      %v3357 = vpop.f32.mrb[0].mxu0
      %v3358 = vpop.f32.mrb[0].mxu0
      %v3359 = vadd.f32 0.0, %v3358
      %v3360 = vpop.f32.mrb[0].mxu0
      %3361 = vmatprep.mubr.bf16.mxu0 0
      %3362 = vmatmul.mubr.bf16.gmra.mrb[0].mxu0 %v3247
      %v3363 = vpop.f32.mrb[0].mxu0
      %v3364 = vadd.f32 0.0, %v3363
      %v3365 = vpop.f32.mrb[0].mxu0
      %v3366 = vpop.f32.mrb[0].mxu0
      %v3367 = vadd.f32 0.0, %v3366
      %v3368 = vpop.f32.mrb[0].mxu0
      %3369 = vmatprep.mubr.bf16.mxu0 0
      %3370 = vmatmul.mubr.bf16.gmra.mrb[0].mxu0 %v3248
      %v3371 = vpop.f32.mrb[0].mxu0
      %v3372 = vadd.f32 0.0, %v3371
      %v3373 = vpop.f32.mrb[0].mxu0
      %v3374 = vpop.f32.mrb[0].mxu0
      %v3375 = vadd.f32 0.0, %v3374
      %v3376 = vpop.f32.mrb[0].mxu0
      %3377 = vdwg.mxu0
      %v3378 = vadd.f32 %v3229, %v3348
      %v3379 = vadd.f32 %v3230, %v3351
      %v3380 = vadd.f32 %v3231, %v3356
      %v3381 = vadd.f32 %v3232, %v3359
      %v3382 = vadd.f32 %v3233, %v3364
      %v3383 = vadd.f32 %v3234, %v3367
      %v3384 = vadd.f32 %v3235, %v3372
      %v3385 = vadd.f32 %v3236, %v3375
      %s3386 = scalar_lea.vmem %s258, 192
      %3387 = vst [vmem:[%s3386] sm:$0xff] %v3378
      %3388 = vst [vmem:[%s3386 + $0x8] sm:$0xff] %v3379
      %3389 = vst [vmem:[%s3386 + $0x10] sm:$0xff] %v3380
      %3390 = vst [vmem:[%s3386 + $0x18] sm:$0xff] %v3381
      %3391 = vst [vmem:[%s3386 + $0x20] sm:$0xff] %v3382
      %3392 = vst [vmem:[%s3386 + $0x28] sm:$0xff] %v3383
      %3393 = vst [vmem:[%s3386 + $0x30] sm:$0xff] %v3384
      %3394 = vst [vmem:[%s3386 + $0x38] sm:$0xff] %v3385
      %v3395 = vadd.f32 %v3378, %v3379
      %v3396 = vadd.f32 %v3395, %v3380
      %v3397 = vadd.f32 %v3396, %v3381
      %v3398 = vadd.f32 %v3397, %v3382
      %v3399 = vadd.f32 %v3398, %v3383
      %v3400 = vadd.f32 %v3399, %v3384
      %v3401 = vadd.f32 %v3400, %v3385
      %v3402 = vrot.slane %v3401, 4
      %v3403 = vadd.f32 %v3401, %v3402
      %v3404 = vrot.slane %v3403, 2
      %v3405 = vadd.f32 %v3403, %v3404
      %v3406 = vrot.slane %v3405, 1
      %v3407 = vadd.f32 %v3405, %v3406
      %v3408 = vadd.f32 %v2764, %v3407
      %v3409 = vmul.f32 %v3378, %v3378
      %v3410 = vmul.f32 %v3379, %v3379
      %v3411 = vmul.f32 %v3380, %v3380
      %v3412 = vmul.f32 %v3381, %v3381
      %v3413 = vmul.f32 %v3382, %v3382
      %v3414 = vmul.f32 %v3383, %v3383
      %v3415 = vmul.f32 %v3384, %v3384
      %v3416 = vmul.f32 %v3385, %v3385
      %v3417 = vadd.f32 %v3409, %v3410
      %v3418 = vadd.f32 %v3417, %v3411
      %v3419 = vadd.f32 %v3418, %v3412
      %v3420 = vadd.f32 %v3419, %v3413
      %v3421 = vadd.f32 %v3420, %v3414
      %v3422 = vadd.f32 %v3421, %v3415
      %v3423 = vadd.f32 %v3422, %v3416
      %v3424 = vrot.slane %v3423, 4
      %v3425 = vadd.f32 %v3423, %v3424
      %v3426 = vrot.slane %v3425, 2
      %v3427 = vadd.f32 %v3425, %v3426
      %v3428 = vrot.slane %v3427, 1
      %v3429 = vadd.f32 %v3427, %v3428
      %v3430 = vadd.f32 %v2786, %v3429
      %3431 = vst [vmem:[%s262] sm:$0x1] %v3408
      %3432 = vst [vmem:[%s262 + $0x1] sm:$0x1] %v3430
      %p3433 = scmp.lt.s32.totalorder %s18, 1
      %s3434 = scalar_select %p3433, %s18, 1
      %s3435 = smul.addr %s3434, 32
      %s3436 = smul.addr %s3435, 8
      %s3437 = scalar_lea.vmem %s5, %s3436
      %p3438 = scmp.lt.s32.totalorder %s18, 1
      %s3439 = scalar_select %p3438, %s18, 1
      %s3440 = smul.addr %s3439, 2
      %s3441 = scalar_lea.vmem %s6, %s3440
      // Predicated region
      $region41: #{unet_innermost_forward.2} parent=39 // pred_check
        %p3442 = pneg %p146
      $region42: #{unet_innermost_forward.2} parent=39 // pred_check_branch
        %3444 = sbr.rel (%p3442) target = $region44
      $region43: #{unet_innermost_forward.2} parent=39 // pred_region
        _
      $region44: #{unet_innermost_forward.2} parent=39 // pred_fallthru
        _
      // Predicated region
      $region45: #{unet_innermost_forward.2} parent=39 // pred_check
        %p3445 = pneg %p172
      $region46: #{unet_innermost_forward.2} parent=39 // pred_check_branch
        %3447 = sbr.rel (%p3445) target = $region48
      $region47: #{unet_innermost_forward.2} parent=39 // pred_region
        _
      $region48: #{unet_innermost_forward.2} parent=39 // pred_fallthru
        _
    $region40: #{unet_innermost_forward.2} parent=5 // pred_fallthru
      _
    %p3448 = scmp.le.s32.totalorder 2, %s13
    // Predicated region
    $region49: #{unet_innermost_forward.2} parent=5 // pred_check
      %p3449 = pneg %p3448
    $region50: #{unet_innermost_forward.2} parent=5 // pred_check_branch
      %3451 = sbr.rel (%p3449) target = $region52
    $region51: #{unet_innermost_forward.2} parent=5 // pred_region
      %s3452 = ssub.s32 %s13, 2
      // Predicated region
      $region53: #{unet_innermost_forward.2} parent=51 // pred_check
        %p3453 = pneg %p152
      $region54: #{unet_innermost_forward.2} parent=51 // pred_check_branch
        %3455 = sbr.rel (%p3453) target = $region56
      $region55: #{unet_innermost_forward.2} parent=51 // pred_region
        %p3456 = scmp.lt.s32.totalorder %s19, 1
        %s3457 = scalar_select %p3456, %s19, 1
        %s3458 = smul.addr %s3457, 32
        %s3459 = smul.addr %s3458, 8
        %s3460 = scalar_lea.vmem %s5, %s3459
      $region56: #{unet_innermost_forward.2} parent=51 // pred_fallthru
        _
      // Predicated region
      $region57: #{unet_innermost_forward.2} parent=51 // pred_check
        %p3461 = pneg %p178
      $region58: #{unet_innermost_forward.2} parent=51 // pred_check_branch
        %3463 = sbr.rel (%p3461) target = $region60
      $region59: #{unet_innermost_forward.2} parent=51 // pred_region
        %p3464 = scmp.lt.s32.totalorder %s19, 1
        %s3465 = scalar_select %p3464, %s19, 1
        %s3466 = smul.addr %s3465, 2
        %s3467 = scalar_lea.vmem %s6, %s3466
      $region60: #{unet_innermost_forward.2} parent=51 // pred_fallthru
        _
    $region52: #{unet_innermost_forward.2} parent=5 // pred_fallthru
      _
  $region6: #{unet_innermost_forward.2} parent=0 // loop_footer
    %s17 = sadd.s32 1, %s13
  $region7: #{unet_innermost_forward.2} parent=0 // loop_footer_branch
    %12 = sbr.rel target = $region3
  $region8: #{unet_innermost_forward.2} parent=0 // loop_exit
    _

</llo_original>
